<compile_context>
chip_gen: v6e
topology: v6e:2x2x1
jax: 0.10.0
libtpu: 0.0.40
codegen_flags: <defaults>
</compile_context>

<pallas_src>
import functools
import math

import jax
import jax.numpy as jnp
from jax.experimental import pallas as pl
from jax.experimental.pallas import tpu as pltpu

D_MODEL = 256
LN_EPS = 1e-5


def _row_tile(m):
    """Largest row tile (multiple of 8) that divides m, else the full extent."""
    for t in (512, 256, 128, 64, 32, 16, 8):
        if m % t == 0:
            return t
    return m


# ----------------------------------------------------------------------------
# Kernels
# ----------------------------------------------------------------------------

def _linear_kernel(x_ref, w_ref, b_ref, o_ref):
    """y = x @ w + b.  x:(tm,K) bf16, w:(K,N) bf16, b:(1,N) f32 -> o:(tm,N)."""
    acc = jnp.dot(x_ref[...], w_ref[...], preferred_element_type=jnp.float32)
    acc = acc + b_ref[...]
    o_ref[...] = acc.astype(o_ref.dtype)


def _heads_kernel(x_ref, w_ref, b_ref, o_ref, *, num_classes):
    """Fused output heads: lane-dense padded matmul; sigmoid on the first num_classes cols."""
    acc = jnp.dot(x_ref[...], w_ref[...], preferred_element_type=jnp.float32)
    acc = acc + b_ref[...]
    col = jax.lax.broadcasted_iota(jnp.int32, acc.shape, 1)
    acc = jnp.where(col < num_classes, jax.nn.sigmoid(acc), acc)
    o_ref[...] = acc.astype(o_ref.dtype)


def _attn_ln_kernel(x_ref, wqkv_ref, bqkv_ref, wout_ref, bout_ref, g_ref, bln_ref,
                    o_ref, *, heads, scale, eps):
    """Fused attention sub-layer for one batch element.

    x:(1,S,D) bf16 -> QKV proj -> per-head softmax(QK^T/sqrt(Dh)) V -> out_proj ->
    residual -> LayerNorm -> o:(1,S,D) bf16.
    """
    S = x_ref.shape[1]
    D = x_ref.shape[2]
    H = heads
    Dh = D // H

    x_bf = x_ref[0]                                  # (S, D) bf16
    x_f32 = x_bf.astype(jnp.float32)

    # QKV projection: one big MXU-friendly matmul (S,D) @ (D,3D).
    qkv = jnp.dot(x_bf, wqkv_ref[...], preferred_element_type=jnp.float32)
    qkv = qkv + bqkv_ref[...]                        # (S, 3D) f32
    qkv_bf = qkv.astype(jnp.bfloat16)

    # Per-head scaled-dot-product attention, all heads inside this grid step.
    ctx_parts = []
    for h in range(H):                               # H is small; unrolled at trace time
        qh = qkv_bf[:, h * Dh:(h + 1) * Dh]                          # (S, Dh)
        kh = qkv_bf[:, D + h * Dh:D + (h + 1) * Dh]                  # (S, Dh)
        vh = qkv_bf[:, 2 * D + h * Dh:2 * D + (h + 1) * Dh]          # (S, Dh)
        # scores = q @ k^T via dot_general contraction on the last dim (no explicit .T)
        s = jax.lax.dot_general(qh, kh, (((1,), (1,)), ((), ())),
                                preferred_element_type=jnp.float32) * scale   # (S, S)
        m = jnp.max(s, axis=-1, keepdims=True)
        p = jnp.exp(s - m)
        p = p * pl.reciprocal(jnp.sum(p, axis=-1, keepdims=True), approx=True)
        ctx_parts.append(jnp.dot(p.astype(jnp.bfloat16), vh,
                                 preferred_element_type=jnp.float32))          # (S, Dh)
    ctx = jnp.concatenate(ctx_parts, axis=-1).astype(jnp.bfloat16)             # (S, D)

    # Output projection + residual + LayerNorm (f32 math).
    attn = jnp.dot(ctx, wout_ref[...], preferred_element_type=jnp.float32)
    attn = attn + bout_ref[...]
    y = x_f32 + attn
    mean = jnp.mean(y, axis=-1, keepdims=True)
    cen = y - mean
    var = jnp.mean(cen * cen, axis=-1, keepdims=True)
    yhat = cen * jax.lax.rsqrt(var + eps)
    o_ref[0] = (yhat * g_ref[...] + bln_ref[...]).astype(o_ref.dtype)


def _ffn_ln_kernel(x_ref, w1_ref, b1_ref, w2_ref, b2_ref, g_ref, bln_ref, o_ref, *, eps):
    """Fused FFN sub-layer: relu(x@W1+b1)@W2+b2 -> residual -> LayerNorm (f32 math)."""
    x_bf = x_ref[...]                                # (tm, D) bf16
    x_f32 = x_bf.astype(jnp.float32)

    h = jnp.dot(x_bf, w1_ref[...], preferred_element_type=jnp.float32) + b1_ref[...]
    h = jnp.maximum(h, 0.0).astype(jnp.bfloat16)     # (tm, dff) stays in VMEM only
    f = jnp.dot(h, w2_ref[...], preferred_element_type=jnp.float32) + b2_ref[...]

    y = x_f32 + f
    mean = jnp.mean(y, axis=-1, keepdims=True)
    cen = y - mean
    var = jnp.mean(cen * cen, axis=-1, keepdims=True)
    yhat = cen * jax.lax.rsqrt(var + eps)
    o_ref[...] = (yhat * g_ref[...] + bln_ref[...]).astype(o_ref.dtype)


# ----------------------------------------------------------------------------
# Pallas wrappers
# ----------------------------------------------------------------------------

_PARALLEL_1D = pltpu.CompilerParams(dimension_semantics=("parallel",))


def linear_tiled(x, w, b, out_dtype=jnp.bfloat16):
    """Row-tiled y = x @ w + b with grid over M (parallel -> v7x dual-core)."""
    M, K = x.shape
    N = w.shape[1]
    tm = _row_tile(M)
    # TODO(synk): for very small K (input_dim) the MXU contraction is underfilled;
    # acceptable since this matmul is a one-off per forward pass.
    return pl.pallas_call(
        _linear_kernel,
        out_shape=jax.ShapeDtypeStruct((M, N), out_dtype),
        grid=(M // tm,),
        in_specs=[pl.BlockSpec((tm, K), lambda i: (i, 0)),
                  pl.BlockSpec((K, N), lambda i: (0, 0)),
                  pl.BlockSpec((1, N), lambda i: (0, 0))],
        out_specs=pl.BlockSpec((tm, N), lambda i: (i, 0)),
        compiler_params=_PARALLEL_1D,
    )(x, w, b.reshape(1, N))


def heads_fused(x, w_pad, b_pad, num_classes):
    """Single lane-dense matmul for the three output heads (padded to 128 lanes)."""
    M, K = x.shape
    N = w_pad.shape[1]
    tm = _row_tile(M)
    return pl.pallas_call(
        functools.partial(_heads_kernel, num_classes=num_classes),
        out_shape=jax.ShapeDtypeStruct((M, N), jnp.float32),
        grid=(M // tm,),
        in_specs=[pl.BlockSpec((tm, K), lambda i: (i, 0)),
                  pl.BlockSpec((K, N), lambda i: (0, 0)),
                  pl.BlockSpec((1, N), lambda i: (0, 0))],
        out_specs=pl.BlockSpec((tm, N), lambda i: (i, 0)),
        compiler_params=_PARALLEL_1D,
    )(x, w_pad, b_pad.reshape(1, N))


def attention_sublayer(x3d, layer, heads):
    """x3d: (B, S, D) bf16 -> (B, S, D) bf16 (attention + residual + LN fused)."""
    B, S, D = x3d.shape
    scale = 1.0 / math.sqrt(D // heads)
    blk = pl.BlockSpec((1, S, D), lambda b: (b, 0, 0))
    full = lambda shape: pl.BlockSpec(shape, lambda b: (0, 0))
    return pl.pallas_call(
        functools.partial(_attn_ln_kernel, heads=heads, scale=scale, eps=LN_EPS),
        out_shape=jax.ShapeDtypeStruct((B, S, D), jnp.bfloat16),
        grid=(B,),
        in_specs=[blk,
                  full((D, 3 * D)), full((1, 3 * D)),
                  full((D, D)), full((1, D)),
                  full((1, D)), full((1, D))],
        out_specs=blk,
        compiler_params=_PARALLEL_1D,
    )(x3d,
      layer["in_proj_w"], layer["in_proj_b"].reshape(1, -1),
      layer["out_proj_w"], layer["out_proj_b"].reshape(1, -1),
      layer["ln1_g"].reshape(1, -1), layer["ln1_b"].reshape(1, -1))


def ffn_sublayer(x2d, layer):
    """x2d: (M, D) bf16 -> (M, D) bf16 (ffn1+relu+ffn2 + residual + LN fused)."""
    M, D = x2d.shape
    dff = layer["ffn1_w"].shape[1]
    tm = _row_tile(M)
    full = lambda shape: pl.BlockSpec(shape, lambda i: (0, 0))
    return pl.pallas_call(
        functools.partial(_ffn_ln_kernel, eps=LN_EPS),
        out_shape=jax.ShapeDtypeStruct((M, D), jnp.bfloat16),
        grid=(M // tm,),
        in_specs=[pl.BlockSpec((tm, D), lambda i: (i, 0)),
                  full((D, dff)), full((1, dff)),
                  full((dff, D)), full((1, D)),
                  full((1, D)), full((1, D))],
        out_specs=pl.BlockSpec((tm, D), lambda i: (i, 0)),
        compiler_params=_PARALLEL_1D,
    )(x2d,
      layer["ffn1_w"], layer["ffn1_b"].reshape(1, -1),
      layer["ffn2_w"], layer["ffn2_b"].reshape(1, -1),
      layer["ln2_g"].reshape(1, -1), layer["ln2_b"].reshape(1, -1))


# ----------------------------------------------------------------------------
# Model: params + forward
# ----------------------------------------------------------------------------

def init_params(key, input_dim, heads_num, dim_feedforward, num_layers, num_classes):
    def dense(k, fan_in, fan_out):
        kw, kb = jax.random.split(k)
        scale = 1.0 / math.sqrt(fan_in)
        w = jax.random.uniform(kw, (fan_in, fan_out), jnp.float32, -scale, scale)
        b = jax.random.uniform(kb, (fan_out,), jnp.float32, -scale, scale)
        return w, b

    keys = jax.random.split(key, 8 + num_layers)
    params = {}

    w, b = dense(keys[0], input_dim, D_MODEL)
    params["input_w"] = w.astype(jnp.bfloat16)
    params["input_b"] = b

    # Three output heads fused into one lane-dense (128-padded) matmul.
    out_w, out_b = dense(keys[1], D_MODEL, num_classes)
    dev_w, dev_b = dense(keys[2], D_MODEL, 4)
    lbl_w, lbl_b = dense(keys[3], D_MODEL, 4)
    n_heads_out = num_classes + 8
    n_pad = ((n_heads_out + 127) // 128) * 128
    w_cat = jnp.concatenate([out_w, dev_w, lbl_w], axis=1)
    b_cat = jnp.concatenate([out_b, dev_b, lbl_b], axis=0)
    params["heads_w"] = jnp.pad(w_cat, ((0, 0), (0, n_pad - n_heads_out))).astype(jnp.bfloat16)
    params["heads_b"] = jnp.pad(b_cat, (0, n_pad - n_heads_out))

    layers = []
    for li in range(num_layers):
        lk = jax.random.split(keys[8 + li], 4)
        layer = {}
        w, b = dense(lk[0], D_MODEL, 3 * D_MODEL)
        layer["in_proj_w"], layer["in_proj_b"] = w.astype(jnp.bfloat16), b
        w, b = dense(lk[1], D_MODEL, D_MODEL)
        layer["out_proj_w"], layer["out_proj_b"] = w.astype(jnp.bfloat16), b
        w, b = dense(lk[2], D_MODEL, dim_feedforward)
        layer["ffn1_w"], layer["ffn1_b"] = w.astype(jnp.bfloat16), b
        w, b = dense(lk[3], dim_feedforward, D_MODEL)
        layer["ffn2_w"], layer["ffn2_b"] = w.astype(jnp.bfloat16), b
        layer["ln1_g"] = jnp.ones((D_MODEL,), jnp.float32)
        layer["ln1_b"] = jnp.zeros((D_MODEL,), jnp.float32)
        layer["ln2_g"] = jnp.ones((D_MODEL,), jnp.float32)
        layer["ln2_b"] = jnp.zeros((D_MODEL,), jnp.float32)
        layers.append(layer)
    params["layers"] = layers
    return params


def discriminator_forward(params, x, *, heads_num, num_classes):
    """x: (S, B, input_dim) f32 -> (validity (S,B,nc), device_pred (S,B,4), label_pred (S,B,4))."""
    S, B, Din = x.shape

    # One-time layout change to (B, S, *) so each batch element is a contiguous slab
    # for the fused attention kernel; activations flow in bf16 afterwards.
    xb = jnp.transpose(x, (1, 0, 2)).astype(jnp.bfloat16)          # (B, S, Din)
    x2d = xb.reshape(B * S, Din)

    # Input projection (tiled, gridded over rows).
    h2d = linear_tiled(x2d, params["input_w"], params["input_b"])  # (B*S, 256) bf16
    h3d = h2d.reshape(B, S, D_MODEL)

    # Transformer encoder: two fused kernels per layer.
    for layer in params["layers"]:
        h3d = attention_sublayer(h3d, layer, heads_num)            # (B, S, 256)
        h2d = ffn_sublayer(h3d.reshape(B * S, D_MODEL), layer)     # (B*S, 256)
        h3d = h2d.reshape(B, S, D_MODEL)

    # Fused output heads (single lane-dense matmul), sliced in JAX.
    fused = heads_fused(h3d.reshape(B * S, D_MODEL),
                        params["heads_w"], params["heads_b"], num_classes)  # (B*S, 128) f32
    fused = jnp.transpose(fused.reshape(B, S, -1), (1, 0, 2))               # (S, B, 128)

    validity = fused[..., :num_classes]
    device_pred = fused[..., num_classes:num_classes + 4]
    label_pred = fused[..., num_classes + 4:num_classes + 8]
    return validity, device_pred, label_pred


if __name__ == "__main__":
    # Small deterministic configuration
    input_dim = 32
    heads_num = 4
    dim_feedforward = 64
    num_layers = 2
    num_classes = 4
    S, B = 8, 2

    key = jax.random.PRNGKey(0)
    kx, kp = jax.random.split(key)
    x = jax.random.normal(kx, (S, B, input_dim), jnp.float32)
    params = init_params(kp, input_dim, heads_num, dim_feedforward, num_layers, num_classes)

    fwd = jax.jit(functools.partial(discriminator_forward,
                                    heads_num=heads_num, num_classes=num_classes))
    validity, device_pred, label_pred = fwd(params, x)
    jax.block_until_ready((validity, device_pred, label_pred))

    assert validity.shape == (S, B, num_classes)
    assert device_pred.shape == (S, B, 4)
    assert label_pred.shape == (S, B, 4)
    assert bool(jnp.all(jnp.isfinite(validity)))
    assert bool(jnp.all(jnp.isfinite(device_pred)))
    assert bool(jnp.all(jnp.isfinite(label_pred)))
    assert bool(jnp.all((validity >= 0.0) & (validity <= 1.0)))
    print("KERNEL_OK")
</pallas_src>

<mosaic_0001>
module attributes {stable_mosaic.version = 11 : i64} {
  func.func @_linear_kernel(%arg0: i32, %arg1: memref<16x32xbf16, #tpu.memory_space<vmem>>, %arg2: memref<32x256xbf16, #tpu.memory_space<vmem>>, %arg3: memref<1x256xf32, #tpu.memory_space<vmem>>, %arg4: memref<16x256xbf16, #tpu.memory_space<vmem>>) attributes {dimension_semantics = [#tpu.dimension_semantics<parallel>], iteration_bounds = array<i64: 1>, scalar_prefetch = 0 : i64, scratch_operands = 0 : i64, tpu.core_type = #tpu.core_type<tc>, window_params = [{transform_indices = @transform_0, window_bounds = array<i64: 16, 32>}, {pipeline_mode = #tpu.pipeline_mode<synchronous>, transform_indices = @transform_1, window_bounds = array<i64: 32, 256>}, {pipeline_mode = #tpu.pipeline_mode<synchronous>, transform_indices = @transform_2, window_bounds = array<i64: 1, 256>}, {transform_indices = @transform_3, window_bounds = array<i64: 16, 256>}]} {
    %c0 = arith.constant 0 : index
    %c0_0 = arith.constant 0 : index
    %0 = vector.load %arg1[%c0, %c0_0] : memref<16x32xbf16, #tpu.memory_space<vmem>>, vector<16x32xbf16>
    %c0_1 = arith.constant 0 : index
    %c0_2 = arith.constant 0 : index
    %1 = vector.load %arg2[%c0_1, %c0_2] : memref<32x256xbf16, #tpu.memory_space<vmem>>, vector<32x256xbf16>
    %cst = arith.constant dense<0.000000e+00> : vector<16x256xf32>
    %2 = tpu.matmul %0, %1, %cst {dimension_numbers = #tpu.dot_dimension_numbers<[1], [0], [0], [1], [0, 0, 1, 1], [], []>} : vector<16x32xbf16>, vector<32x256xbf16>, vector<16x256xf32> -> vector<16x256xf32>
    %c0_3 = arith.constant 0 : index
    %c0_4 = arith.constant 0 : index
    %3 = vector.load %arg3[%c0_3, %c0_4] : memref<1x256xf32, #tpu.memory_space<vmem>>, vector<1x256xf32>
    %4 = vector.broadcast %3 : vector<1x256xf32> to vector<16x256xf32>
    %5 = arith.addf %2, %4 : vector<16x256xf32>
    %6 = arith.truncf %5 : vector<16x256xf32> to vector<16x256xbf16>
    %c0_5 = arith.constant 0 : index
    %c0_6 = arith.constant 0 : index
    %7 = vector.load %arg4[%c0_5, %c0_6] : memref<16x256xbf16, #tpu.memory_space<vmem>>, vector<16x256xbf16>
    tpu.vector_store %arg4[%c0_5, %c0_6], %6 {strides = array<i32>} : memref<16x256xbf16, #tpu.memory_space<vmem>>, vector<16x256xbf16>,
    return
  }
  func.func @transform_0(%arg0: i32) -> (i32, i32) {
    %c0_i32 = arith.constant 0 : i32
    %c0_i32_0 = arith.constant 0 : i32
    return %arg0, %c0_i32 : i32, i32
  }
  func.func @transform_1(%arg0: i32) -> (i32, i32) {
    %c0_i32 = arith.constant 0 : i32
    %c0_i32_0 = arith.constant 0 : i32
    %c0_i32_1 = arith.constant 0 : i32
    return %c0_i32, %c0_i32_0 : i32, i32
  }
  func.func @transform_2(%arg0: i32) -> (i32, i32) {
    %c0_i32 = arith.constant 0 : i32
    %c0_i32_0 = arith.constant 0 : i32
    %c0_i32_1 = arith.constant 0 : i32
    return %c0_i32, %c0_i32_0 : i32, i32
  }
  func.func @transform_3(%arg0: i32) -> (i32, i32) {
    %c0_i32 = arith.constant 0 : i32
    %c0_i32_0 = arith.constant 0 : i32
    return %arg0, %c0_i32 : i32, i32
  }
}

module attributes {stable_mosaic.version = 11 : i64} {
  func.func @_ffn_ln_kernel(%arg0: i32, %arg1: memref<16x256xbf16, #tpu.memory_space<vmem>>, %arg2: memref<256x64xbf16, #tpu.memory_space<vmem>>, %arg3: memref<1x64xf32, #tpu.memory_space<vmem>>, %arg4: memref<64x256xbf16, #tpu.memory_space<vmem>>, %arg5: memref<1x256xf32, #tpu.memory_space<vmem>>, %arg6: memref<1x256xf32, #tpu.memory_space<vmem>>, %arg7: memref<1x256xf32, #tpu.memory_space<vmem>>, %arg8: memref<16x256xbf16, #tpu.memory_space<vmem>>) attributes {dimension_semantics = [#tpu.dimension_semantics<parallel>], iteration_bounds = array<i64: 1>, scalar_prefetch = 0 : i64, scratch_operands = 0 : i64, tpu.core_type = #tpu.core_type<tc>, window_params = [{transform_indices = @transform_0, window_bounds = array<i64: 16, 256>}, {pipeline_mode = #tpu.pipeline_mode<synchronous>, transform_indices = @transform_1, window_bounds = array<i64: 256, 64>}, {pipeline_mode = #tpu.pipeline_mode<synchronous>, transform_indices = @transform_2, window_bounds = array<i64: 1, 64>}, {pipeline_mode = #tpu.pipeline_mode<synchronous>, transform_indices = @transform_3, window_bounds = array<i64: 64, 256>}, {pipeline_mode = #tpu.pipeline_mode<synchronous>, transform_indices = @transform_4, window_bounds = array<i64: 1, 256>}, {pipeline_mode = #tpu.pipeline_mode<synchronous>, transform_indices = @transform_5, window_bounds = array<i64: 1, 256>}, {pipeline_mode = #tpu.pipeline_mode<synchronous>, transform_indices = @transform_6, window_bounds = array<i64: 1, 256>}, {transform_indices = @transform_7, window_bounds = array<i64: 16, 256>}]} {
    %c0 = arith.constant 0 : index
    %c0_0 = arith.constant 0 : index
    %0 = vector.load %arg1[%c0, %c0_0] : memref<16x256xbf16, #tpu.memory_space<vmem>>, vector<16x256xbf16>
    %1 = arith.extf %0 : vector<16x256xbf16> to vector<16x256xf32>
    %c0_1 = arith.constant 0 : index
    %c0_2 = arith.constant 0 : index
    %2 = vector.load %arg2[%c0_1, %c0_2] : memref<256x64xbf16, #tpu.memory_space<vmem>>, vector<256x64xbf16>
    %cst = arith.constant dense<0.000000e+00> : vector<16x64xf32>
    %3 = tpu.matmul %0, %2, %cst {dimension_numbers = #tpu.dot_dimension_numbers<[1], [0], [0], [1], [0, 0, 1, 1], [], []>} : vector<16x256xbf16>, vector<256x64xbf16>, vector<16x64xf32> -> vector<16x64xf32>
    %c0_3 = arith.constant 0 : index
    %c0_4 = arith.constant 0 : index
    %4 = vector.load %arg3[%c0_3, %c0_4] : memref<1x64xf32, #tpu.memory_space<vmem>>, vector<1x64xf32>
    %5 = vector.broadcast %4 : vector<1x64xf32> to vector<16x64xf32>
    %6 = arith.addf %3, %5 : vector<16x64xf32>
    %cst_5 = arith.constant 0.000000e+00 : f32
    %7 = vector.broadcast %cst_5 : f32 to vector<16x64xf32>
    %8 = arith.maximumf %6, %7 : vector<16x64xf32>
    %9 = arith.truncf %8 : vector<16x64xf32> to vector<16x64xbf16>
    %c0_6 = arith.constant 0 : index
    %c0_7 = arith.constant 0 : index
    %10 = vector.load %arg4[%c0_6, %c0_7] : memref<64x256xbf16, #tpu.memory_space<vmem>>, vector<64x256xbf16>
    %cst_8 = arith.constant dense<0.000000e+00> : vector<16x256xf32>
    %11 = tpu.matmul %9, %10, %cst_8 {dimension_numbers = #tpu.dot_dimension_numbers<[1], [0], [0], [1], [0, 0, 1, 1], [], []>} : vector<16x64xbf16>, vector<64x256xbf16>, vector<16x256xf32> -> vector<16x256xf32>
    %c0_9 = arith.constant 0 : index
    %c0_10 = arith.constant 0 : index
    %12 = vector.load %arg5[%c0_9, %c0_10] : memref<1x256xf32, #tpu.memory_space<vmem>>, vector<1x256xf32>
    %13 = vector.broadcast %12 : vector<1x256xf32> to vector<16x256xf32>
    %14 = arith.addf %11, %13 : vector<16x256xf32>
    %15 = arith.addf %1, %14 : vector<16x256xf32>
    %cst_11 = arith.constant dense<0.000000e+00> : vector<16xf32>
    %16 = vector.multi_reduction <add>, %15, %cst_11 [1] : vector<16x256xf32> to vector<16xf32>
    %17 = vector.shape_cast %16 : vector<16xf32> to vector<16x1xf32>
    %cst_12 = arith.constant 2.560000e+02 : f32
    %18 = vector.broadcast %cst_12 : f32 to vector<16x1xf32>
    %19 = arith.divf %17, %18 : vector<16x1xf32>
    %20 = vector.broadcast %19 : vector<16x1xf32> to vector<16x256xf32>
    %21 = arith.subf %15, %20 : vector<16x256xf32>
    %22 = arith.mulf %21, %21 : vector<16x256xf32>
    %cst_13 = arith.constant dense<0.000000e+00> : vector<16xf32>
    %23 = vector.multi_reduction <add>, %22, %cst_13 [1] : vector<16x256xf32> to vector<16xf32>
    %24 = vector.shape_cast %23 : vector<16xf32> to vector<16x1xf32>
    %cst_14 = arith.constant 2.560000e+02 : f32
    %25 = vector.broadcast %cst_14 : f32 to vector<16x1xf32>
    %26 = arith.divf %24, %25 : vector<16x1xf32>
    %cst_15 = arith.constant 9.99999974E-6 : f32
    %27 = vector.broadcast %cst_15 : f32 to vector<16x1xf32>
    %28 = arith.addf %26, %27 : vector<16x1xf32>
    %29 = math.rsqrt %28 : vector<16x1xf32>
    %30 = vector.broadcast %29 : vector<16x1xf32> to vector<16x256xf32>
    %31 = arith.mulf %21, %30 : vector<16x256xf32>
    %c0_16 = arith.constant 0 : index
    %c0_17 = arith.constant 0 : index
    %32 = vector.load %arg6[%c0_16, %c0_17] : memref<1x256xf32, #tpu.memory_space<vmem>>, vector<1x256xf32>
    %33 = vector.broadcast %32 : vector<1x256xf32> to vector<16x256xf32>
    %34 = arith.mulf %31, %33 : vector<16x256xf32>
    %c0_18 = arith.constant 0 : index
    %c0_19 = arith.constant 0 : index
    %35 = vector.load %arg7[%c0_18, %c0_19] : memref<1x256xf32, #tpu.memory_space<vmem>>, vector<1x256xf32>
    %36 = vector.broadcast %35 : vector<1x256xf32> to vector<16x256xf32>
    %37 = arith.addf %34, %36 : vector<16x256xf32>
    %38 = arith.truncf %37 : vector<16x256xf32> to vector<16x256xbf16>
    %c0_20 = arith.constant 0 : index
    %c0_21 = arith.constant 0 : index
    %39 = vector.load %arg8[%c0_20, %c0_21] : memref<16x256xbf16, #tpu.memory_space<vmem>>, vector<16x256xbf16>
    tpu.vector_store %arg8[%c0_20, %c0_21], %38 {strides = array<i32>} : memref<16x256xbf16, #tpu.memory_space<vmem>>, vector<16x256xbf16>,
    return
  }
  func.func @transform_0(%arg0: i32) -> (i32, i32) {
    %c0_i32 = arith.constant 0 : i32
    %c0_i32_0 = arith.constant 0 : i32
    return %arg0, %c0_i32 : i32, i32
  }
  func.func @transform_1(%arg0: i32) -> (i32, i32) {
    %c0_i32 = arith.constant 0 : i32
    %c0_i32_0 = arith.constant 0 : i32
    %c0_i32_1 = arith.constant 0 : i32
    return %c0_i32, %c0_i32_0 : i32, i32
  }
  func.func @transform_2(%arg0: i32) -> (i32, i32) {
    %c0_i32 = arith.constant 0 : i32
    %c0_i32_0 = arith.constant 0 : i32
    %c0_i32_1 = arith.constant 0 : i32
    return %c0_i32, %c0_i32_0 : i32, i32
  }
  func.func @transform_3(%arg0: i32) -> (i32, i32) {
    %c0_i32 = arith.constant 0 : i32
    %c0_i32_0 = arith.constant 0 : i32
    %c0_i32_1 = arith.constant 0 : i32
    return %c0_i32, %c0_i32_0 : i32, i32
  }
  func.func @transform_4(%arg0: i32) -> (i32, i32) {
    %c0_i32 = arith.constant 0 : i32
    %c0_i32_0 = arith.constant 0 : i32
    %c0_i32_1 = arith.constant 0 : i32
    return %c0_i32, %c0_i32_0 : i32, i32
  }
  func.func @transform_5(%arg0: i32) -> (i32, i32) {
    %c0_i32 = arith.constant 0 : i32
    %c0_i32_0 = arith.constant 0 : i32
    %c0_i32_1 = arith.constant 0 : i32
    return %c0_i32, %c0_i32_0 : i32, i32
  }
  func.func @transform_6(%arg0: i32) -> (i32, i32) {
    %c0_i32 = arith.constant 0 : i32
    %c0_i32_0 = arith.constant 0 : i32
    %c0_i32_1 = arith.constant 0 : i32
    return %c0_i32, %c0_i32_0 : i32, i32
  }
  func.func @transform_7(%arg0: i32) -> (i32, i32) {
    %c0_i32 = arith.constant 0 : i32
    %c0_i32_0 = arith.constant 0 : i32
    return %arg0, %c0_i32 : i32, i32
  }
}

module attributes {stable_mosaic.version = 11 : i64} {
  func.func @_attn_ln_kernel(%arg0: i32, %arg1: memref<1x8x256xbf16, #tpu.memory_space<vmem>>, %arg2: memref<256x768xbf16, #tpu.memory_space<vmem>>, %arg3: memref<1x768xf32, #tpu.memory_space<vmem>>, %arg4: memref<256x256xbf16, #tpu.memory_space<vmem>>, %arg5: memref<1x256xf32, #tpu.memory_space<vmem>>, %arg6: memref<1x256xf32, #tpu.memory_space<vmem>>, %arg7: memref<1x256xf32, #tpu.memory_space<vmem>>, %arg8: memref<1x8x256xbf16, #tpu.memory_space<vmem>>) attributes {dimension_semantics = [#tpu.dimension_semantics<parallel>], iteration_bounds = array<i64: 2>, scalar_prefetch = 0 : i64, scratch_operands = 0 : i64, tpu.core_type = #tpu.core_type<tc>, window_params = [{transform_indices = @transform_0, window_bounds = array<i64: 1, 8, 256>}, {pipeline_mode = #tpu.pipeline_mode<synchronous>, transform_indices = @transform_1, window_bounds = array<i64: 256, 768>}, {pipeline_mode = #tpu.pipeline_mode<synchronous>, transform_indices = @transform_2, window_bounds = array<i64: 1, 768>}, {pipeline_mode = #tpu.pipeline_mode<synchronous>, transform_indices = @transform_3, window_bounds = array<i64: 256, 256>}, {pipeline_mode = #tpu.pipeline_mode<synchronous>, transform_indices = @transform_4, window_bounds = array<i64: 1, 256>}, {pipeline_mode = #tpu.pipeline_mode<synchronous>, transform_indices = @transform_5, window_bounds = array<i64: 1, 256>}, {pipeline_mode = #tpu.pipeline_mode<synchronous>, transform_indices = @transform_6, window_bounds = array<i64: 1, 256>}, {transform_indices = @transform_7, window_bounds = array<i64: 1, 8, 256>}]} {
    %c0 = arith.constant 0 : index
    %c0_0 = arith.constant 0 : index
    %c0_1 = arith.constant 0 : index
    %0 = vector.load %arg1[%c0, %c0_0, %c0_1] : memref<1x8x256xbf16, #tpu.memory_space<vmem>>, vector<1x8x256xbf16>
    %1 = vector.shape_cast %0 : vector<1x8x256xbf16> to vector<8x256xbf16>
    %2 = arith.extf %1 : vector<8x256xbf16> to vector<8x256xf32>
    %c0_2 = arith.constant 0 : index
    %c0_3 = arith.constant 0 : index
    %3 = vector.load %arg2[%c0_2, %c0_3] : memref<256x768xbf16, #tpu.memory_space<vmem>>, vector<256x768xbf16>
    %cst = arith.constant dense<0.000000e+00> : vector<8x768xf32>
    %4 = tpu.matmul %1, %3, %cst {dimension_numbers = #tpu.dot_dimension_numbers<[1], [0], [0], [1], [0, 0, 1, 1], [], []>} : vector<8x256xbf16>, vector<256x768xbf16>, vector<8x768xf32> -> vector<8x768xf32>
    %c0_4 = arith.constant 0 : index
    %c0_5 = arith.constant 0 : index
    %5 = vector.load %arg3[%c0_4, %c0_5] : memref<1x768xf32, #tpu.memory_space<vmem>>, vector<1x768xf32>
    %6 = vector.broadcast %5 : vector<1x768xf32> to vector<8x768xf32>
    %7 = arith.addf %4, %6 : vector<8x768xf32>
    %8 = arith.truncf %7 : vector<8x768xf32> to vector<8x768xbf16>
    %9 = vector.extract_strided_slice %8 {offsets = [0, 0], sizes = [8, 64], strides = [1, 1]} : vector<8x768xbf16> to vector<8x64xbf16>
    %10 = vector.extract_strided_slice %8 {offsets = [0, 256], sizes = [8, 64], strides = [1, 1]} : vector<8x768xbf16> to vector<8x64xbf16>
    %11 = vector.extract_strided_slice %8 {offsets = [0, 512], sizes = [8, 64], strides = [1, 1]} : vector<8x768xbf16> to vector<8x64xbf16>
    %cst_6 = arith.constant dense<0.000000e+00> : vector<8x8xf32>
    %12 = tpu.matmul %9, %10, %cst_6 {dimension_numbers = #tpu.dot_dimension_numbers<[1], [1], [0], [0], [0, 0, 1, 0], [], []>} : vector<8x64xbf16>, vector<8x64xbf16>, vector<8x8xf32> -> vector<8x8xf32>
    %cst_7 = arith.constant 1.250000e-01 : f32
    %13 = vector.broadcast %cst_7 : f32 to vector<8x8xf32>
    %14 = arith.mulf %12, %13 : vector<8x8xf32>
    %cst_8 = arith.constant dense<0xFF800000> : vector<8xf32>
    %15 = vector.multi_reduction <maximumf>, %14, %cst_8 [1] : vector<8x8xf32> to vector<8xf32>
    %16 = vector.shape_cast %15 : vector<8xf32> to vector<8x1xf32>
    %17 = vector.broadcast %16 : vector<8x1xf32> to vector<8x8xf32>
    %18 = arith.subf %14, %17 : vector<8x8xf32>
    %19 = math.exp %18 : vector<8x8xf32>
    %cst_9 = arith.constant dense<0.000000e+00> : vector<8xf32>
    %20 = vector.multi_reduction <add>, %19, %cst_9 [1] : vector<8x8xf32> to vector<8xf32>
    %21 = vector.shape_cast %20 : vector<8xf32> to vector<8x1xf32>
    %22 = tpu.reciprocal %21 {approx = true} : vector<8x1xf32> -> vector<8x1xf32>
    %23 = vector.broadcast %22 : vector<8x1xf32> to vector<8x8xf32>
    %24 = arith.mulf %19, %23 : vector<8x8xf32>
    %25 = arith.truncf %24 : vector<8x8xf32> to vector<8x8xbf16>
    %cst_10 = arith.constant dense<0.000000e+00> : vector<8x64xf32>
    %26 = tpu.matmul %25, %11, %cst_10 {dimension_numbers = #tpu.dot_dimension_numbers<[1], [0], [0], [1], [0, 0, 1, 1], [], []>} : vector<8x8xbf16>, vector<8x64xbf16>, vector<8x64xf32> -> vector<8x64xf32>
    %27 = vector.extract_strided_slice %8 {offsets = [0, 64], sizes = [8, 64], strides = [1, 1]} : vector<8x768xbf16> to vector<8x64xbf16>
    %28 = vector.extract_strided_slice %8 {offsets = [0, 320], sizes = [8, 64], strides = [1, 1]} : vector<8x768xbf16> to vector<8x64xbf16>
    %29 = vector.extract_strided_slice %8 {offsets = [0, 576], sizes = [8, 64], strides = [1, 1]} : vector<8x768xbf16> to vector<8x64xbf16>
    %cst_11 = arith.constant dense<0.000000e+00> : vector<8x8xf32>
    %30 = tpu.matmul %27, %28, %cst_11 {dimension_numbers = #tpu.dot_dimension_numbers<[1], [1], [0], [0], [0, 0, 1, 0], [], []>} : vector<8x64xbf16>, vector<8x64xbf16>, vector<8x8xf32> -> vector<8x8xf32>
    %cst_12 = arith.constant 1.250000e-01 : f32
    %31 = vector.broadcast %cst_12 : f32 to vector<8x8xf32>
    %32 = arith.mulf %30, %31 : vector<8x8xf32>
    %cst_13 = arith.constant dense<0xFF800000> : vector<8xf32>
    %33 = vector.multi_reduction <maximumf>, %32, %cst_13 [1] : vector<8x8xf32> to vector<8xf32>
    %34 = vector.shape_cast %33 : vector<8xf32> to vector<8x1xf32>
    %35 = vector.broadcast %34 : vector<8x1xf32> to vector<8x8xf32>
    %36 = arith.subf %32, %35 : vector<8x8xf32>
    %37 = math.exp %36 : vector<8x8xf32>
    %cst_14 = arith.constant dense<0.000000e+00> : vector<8xf32>
    %38 = vector.multi_reduction <add>, %37, %cst_14 [1] : vector<8x8xf32> to vector<8xf32>
    %39 = vector.shape_cast %38 : vector<8xf32> to vector<8x1xf32>
    %40 = tpu.reciprocal %39 {approx = true} : vector<8x1xf32> -> vector<8x1xf32>
    %41 = vector.broadcast %40 : vector<8x1xf32> to vector<8x8xf32>
    %42 = arith.mulf %37, %41 : vector<8x8xf32>
    %43 = arith.truncf %42 : vector<8x8xf32> to vector<8x8xbf16>
    %cst_15 = arith.constant dense<0.000000e+00> : vector<8x64xf32>
    %44 = tpu.matmul %43, %29, %cst_15 {dimension_numbers = #tpu.dot_dimension_numbers<[1], [0], [0], [1], [0, 0, 1, 1], [], []>} : vector<8x8xbf16>, vector<8x64xbf16>, vector<8x64xf32> -> vector<8x64xf32>
    %45 = vector.extract_strided_slice %8 {offsets = [0, 128], sizes = [8, 64], strides = [1, 1]} : vector<8x768xbf16> to vector<8x64xbf16>
    %46 = vector.extract_strided_slice %8 {offsets = [0, 384], sizes = [8, 64], strides = [1, 1]} : vector<8x768xbf16> to vector<8x64xbf16>
    %47 = vector.extract_strided_slice %8 {offsets = [0, 640], sizes = [8, 64], strides = [1, 1]} : vector<8x768xbf16> to vector<8x64xbf16>
    %cst_16 = arith.constant dense<0.000000e+00> : vector<8x8xf32>
    %48 = tpu.matmul %45, %46, %cst_16 {dimension_numbers = #tpu.dot_dimension_numbers<[1], [1], [0], [0], [0, 0, 1, 0], [], []>} : vector<8x64xbf16>, vector<8x64xbf16>, vector<8x8xf32> -> vector<8x8xf32>
    %cst_17 = arith.constant 1.250000e-01 : f32
    %49 = vector.broadcast %cst_17 : f32 to vector<8x8xf32>
    %50 = arith.mulf %48, %49 : vector<8x8xf32>
    %cst_18 = arith.constant dense<0xFF800000> : vector<8xf32>
    %51 = vector.multi_reduction <maximumf>, %50, %cst_18 [1] : vector<8x8xf32> to vector<8xf32>
    %52 = vector.shape_cast %51 : vector<8xf32> to vector<8x1xf32>
    %53 = vector.broadcast %52 : vector<8x1xf32> to vector<8x8xf32>
    %54 = arith.subf %50, %53 : vector<8x8xf32>
    %55 = math.exp %54 : vector<8x8xf32>
    %cst_19 = arith.constant dense<0.000000e+00> : vector<8xf32>
    %56 = vector.multi_reduction <add>, %55, %cst_19 [1] : vector<8x8xf32> to vector<8xf32>
    %57 = vector.shape_cast %56 : vector<8xf32> to vector<8x1xf32>
    %58 = tpu.reciprocal %57 {approx = true} : vector<8x1xf32> -> vector<8x1xf32>
    %59 = vector.broadcast %58 : vector<8x1xf32> to vector<8x8xf32>
    %60 = arith.mulf %55, %59 : vector<8x8xf32>
    %61 = arith.truncf %60 : vector<8x8xf32> to vector<8x8xbf16>
    %cst_20 = arith.constant dense<0.000000e+00> : vector<8x64xf32>
    %62 = tpu.matmul %61, %47, %cst_20 {dimension_numbers = #tpu.dot_dimension_numbers<[1], [0], [0], [1], [0, 0, 1, 1], [], []>} : vector<8x8xbf16>, vector<8x64xbf16>, vector<8x64xf32> -> vector<8x64xf32>
    %63 = vector.extract_strided_slice %8 {offsets = [0, 192], sizes = [8, 64], strides = [1, 1]} : vector<8x768xbf16> to vector<8x64xbf16>
    %64 = vector.extract_strided_slice %8 {offsets = [0, 448], sizes = [8, 64], strides = [1, 1]} : vector<8x768xbf16> to vector<8x64xbf16>
    %65 = vector.extract_strided_slice %8 {offsets = [0, 704], sizes = [8, 64], strides = [1, 1]} : vector<8x768xbf16> to vector<8x64xbf16>
    %cst_21 = arith.constant dense<0.000000e+00> : vector<8x8xf32>
    %66 = tpu.matmul %63, %64, %cst_21 {dimension_numbers = #tpu.dot_dimension_numbers<[1], [1], [0], [0], [0, 0, 1, 0], [], []>} : vector<8x64xbf16>, vector<8x64xbf16>, vector<8x8xf32> -> vector<8x8xf32>
    %cst_22 = arith.constant 1.250000e-01 : f32
    %67 = vector.broadcast %cst_22 : f32 to vector<8x8xf32>
    %68 = arith.mulf %66, %67 : vector<8x8xf32>
    %cst_23 = arith.constant dense<0xFF800000> : vector<8xf32>
    %69 = vector.multi_reduction <maximumf>, %68, %cst_23 [1] : vector<8x8xf32> to vector<8xf32>
    %70 = vector.shape_cast %69 : vector<8xf32> to vector<8x1xf32>
    %71 = vector.broadcast %70 : vector<8x1xf32> to vector<8x8xf32>
    %72 = arith.subf %68, %71 : vector<8x8xf32>
    %73 = math.exp %72 : vector<8x8xf32>
    %cst_24 = arith.constant dense<0.000000e+00> : vector<8xf32>
    %74 = vector.multi_reduction <add>, %73, %cst_24 [1] : vector<8x8xf32> to vector<8xf32>
    %75 = vector.shape_cast %74 : vector<8xf32> to vector<8x1xf32>
    %76 = tpu.reciprocal %75 {approx = true} : vector<8x1xf32> -> vector<8x1xf32>
    %77 = vector.broadcast %76 : vector<8x1xf32> to vector<8x8xf32>
    %78 = arith.mulf %73, %77 : vector<8x8xf32>
    %79 = arith.truncf %78 : vector<8x8xf32> to vector<8x8xbf16>
    %cst_25 = arith.constant dense<0.000000e+00> : vector<8x64xf32>
    %80 = tpu.matmul %79, %65, %cst_25 {dimension_numbers = #tpu.dot_dimension_numbers<[1], [0], [0], [1], [0, 0, 1, 1], [], []>} : vector<8x8xbf16>, vector<8x64xbf16>, vector<8x64xf32> -> vector<8x64xf32>
    %81 = tpu.concatenate %26, %44, %62, %80 in 1 : vector<8x64xf32>, vector<8x64xf32>, vector<8x64xf32>, vector<8x64xf32> -> vector<8x256xf32>
    %82 = arith.truncf %81 : vector<8x256xf32> to vector<8x256xbf16>
    %c0_26 = arith.constant 0 : index
    %c0_27 = arith.constant 0 : index
    %83 = vector.load %arg4[%c0_26, %c0_27] : memref<256x256xbf16, #tpu.memory_space<vmem>>, vector<256x256xbf16>
    %cst_28 = arith.constant dense<0.000000e+00> : vector<8x256xf32>
    %84 = tpu.matmul %82, %83, %cst_28 {dimension_numbers = #tpu.dot_dimension_numbers<[1], [0], [0], [1], [0, 0, 1, 1], [], []>} : vector<8x256xbf16>, vector<256x256xbf16>, vector<8x256xf32> -> vector<8x256xf32>
    %c0_29 = arith.constant 0 : index
    %c0_30 = arith.constant 0 : index
    %85 = vector.load %arg5[%c0_29, %c0_30] : memref<1x256xf32, #tpu.memory_space<vmem>>, vector<1x256xf32>
    %86 = vector.broadcast %85 : vector<1x256xf32> to vector<8x256xf32>
    %87 = arith.addf %84, %86 : vector<8x256xf32>
    %88 = arith.addf %2, %87 : vector<8x256xf32>
    %cst_31 = arith.constant dense<0.000000e+00> : vector<8xf32>
    %89 = vector.multi_reduction <add>, %88, %cst_31 [1] : vector<8x256xf32> to vector<8xf32>
    %90 = vector.shape_cast %89 : vector<8xf32> to vector<8x1xf32>
    %cst_32 = arith.constant 2.560000e+02 : f32
    %91 = vector.broadcast %cst_32 : f32 to vector<8x1xf32>
    %92 = arith.divf %90, %91 : vector<8x1xf32>
    %93 = vector.broadcast %92 : vector<8x1xf32> to vector<8x256xf32>
    %94 = arith.subf %88, %93 : vector<8x256xf32>
    %95 = arith.mulf %94, %94 : vector<8x256xf32>
    %cst_33 = arith.constant dense<0.000000e+00> : vector<8xf32>
    %96 = vector.multi_reduction <add>, %95, %cst_33 [1] : vector<8x256xf32> to vector<8xf32>
    %97 = vector.shape_cast %96 : vector<8xf32> to vector<8x1xf32>
    %cst_34 = arith.constant 2.560000e+02 : f32
    %98 = vector.broadcast %cst_34 : f32 to vector<8x1xf32>
    %99 = arith.divf %97, %98 : vector<8x1xf32>
    %cst_35 = arith.constant 9.99999974E-6 : f32
    %100 = vector.broadcast %cst_35 : f32 to vector<8x1xf32>
    %101 = arith.addf %99, %100 : vector<8x1xf32>
    %102 = math.rsqrt %101 : vector<8x1xf32>
    %103 = vector.broadcast %102 : vector<8x1xf32> to vector<8x256xf32>
    %104 = arith.mulf %94, %103 : vector<8x256xf32>
    %c0_36 = arith.constant 0 : index
    %c0_37 = arith.constant 0 : index
    %105 = vector.load %arg6[%c0_36, %c0_37] : memref<1x256xf32, #tpu.memory_space<vmem>>, vector<1x256xf32>
    %106 = vector.broadcast %105 : vector<1x256xf32> to vector<8x256xf32>
    %107 = arith.mulf %104, %106 : vector<8x256xf32>
    %c0_38 = arith.constant 0 : index
    %c0_39 = arith.constant 0 : index
    %108 = vector.load %arg7[%c0_38, %c0_39] : memref<1x256xf32, #tpu.memory_space<vmem>>, vector<1x256xf32>
    %109 = vector.broadcast %108 : vector<1x256xf32> to vector<8x256xf32>
    %110 = arith.addf %107, %109 : vector<8x256xf32>
    %111 = arith.truncf %110 : vector<8x256xf32> to vector<8x256xbf16>
    %c0_40 = arith.constant 0 : index
    %c0_41 = arith.constant 0 : index
    %c0_42 = arith.constant 0 : index
    %112 = vector.load %arg8[%c0_40, %c0_41, %c0_42] : memref<1x8x256xbf16, #tpu.memory_space<vmem>>, vector<1x8x256xbf16>
    %113 = vector.shape_cast %112 : vector<1x8x256xbf16> to vector<8x256xbf16>
    %114 = vector.shape_cast %111 : vector<8x256xbf16> to vector<1x8x256xbf16>
    tpu.vector_store %arg8[%c0_40, %c0_41, %c0_42], %114 {strides = array<i32>} : memref<1x8x256xbf16, #tpu.memory_space<vmem>>, vector<1x8x256xbf16>,
    return
  }
  func.func @transform_0(%arg0: i32) -> (i32, i32, i32) {
    %c0_i32 = arith.constant 0 : i32
    %c0_i32_0 = arith.constant 0 : i32
    %c0_i32_1 = arith.constant 0 : i32
    return %arg0, %c0_i32, %c0_i32_0 : i32, i32, i32
  }
  func.func @transform_1(%arg0: i32) -> (i32, i32) {
    %c0_i32 = arith.constant 0 : i32
    %c0_i32_0 = arith.constant 0 : i32
    %c0_i32_1 = arith.constant 0 : i32
    return %c0_i32, %c0_i32_0 : i32, i32
  }
  func.func @transform_2(%arg0: i32) -> (i32, i32) {
    %c0_i32 = arith.constant 0 : i32
    %c0_i32_0 = arith.constant 0 : i32
    %c0_i32_1 = arith.constant 0 : i32
    return %c0_i32, %c0_i32_0 : i32, i32
  }
  func.func @transform_3(%arg0: i32) -> (i32, i32) {
    %c0_i32 = arith.constant 0 : i32
    %c0_i32_0 = arith.constant 0 : i32
    %c0_i32_1 = arith.constant 0 : i32
    return %c0_i32, %c0_i32_0 : i32, i32
  }
  func.func @transform_4(%arg0: i32) -> (i32, i32) {
    %c0_i32 = arith.constant 0 : i32
    %c0_i32_0 = arith.constant 0 : i32
    %c0_i32_1 = arith.constant 0 : i32
    return %c0_i32, %c0_i32_0 : i32, i32
  }
  func.func @transform_5(%arg0: i32) -> (i32, i32) {
    %c0_i32 = arith.constant 0 : i32
    %c0_i32_0 = arith.constant 0 : i32
    %c0_i32_1 = arith.constant 0 : i32
    return %c0_i32, %c0_i32_0 : i32, i32
  }
  func.func @transform_6(%arg0: i32) -> (i32, i32) {
    %c0_i32 = arith.constant 0 : i32
    %c0_i32_0 = arith.constant 0 : i32
    %c0_i32_1 = arith.constant 0 : i32
    return %c0_i32, %c0_i32_0 : i32, i32
  }
  func.func @transform_7(%arg0: i32) -> (i32, i32, i32) {
    %c0_i32 = arith.constant 0 : i32
    %c0_i32_0 = arith.constant 0 : i32
    %c0_i32_1 = arith.constant 0 : i32
    return %arg0, %c0_i32, %c0_i32_0 : i32, i32, i32
  }
}

module attributes {stable_mosaic.version = 11 : i64} {
  func.func @_attn_ln_kernel(%arg0: i32, %arg1: memref<1x8x256xbf16, #tpu.memory_space<vmem>>, %arg2: memref<256x768xbf16, #tpu.memory_space<vmem>>, %arg3: memref<1x768xf32, #tpu.memory_space<vmem>>, %arg4: memref<256x256xbf16, #tpu.memory_space<vmem>>, %arg5: memref<1x256xf32, #tpu.memory_space<vmem>>, %arg6: memref<1x256xf32, #tpu.memory_space<vmem>>, %arg7: memref<1x256xf32, #tpu.memory_space<vmem>>, %arg8: memref<1x8x256xbf16, #tpu.memory_space<vmem>>) attributes {dimension_semantics = [#tpu.dimension_semantics<parallel>], iteration_bounds = array<i64: 2>, scalar_prefetch = 0 : i64, scratch_operands = 0 : i64, tpu.core_type = #tpu.core_type<tc>, window_params = [{transform_indices = @transform_0, window_bounds = array<i64: 1, 8, 256>}, {pipeline_mode = #tpu.pipeline_mode<synchronous>, transform_indices = @transform_1, window_bounds = array<i64: 256, 768>}, {pipeline_mode = #tpu.pipeline_mode<synchronous>, transform_indices = @transform_2, window_bounds = array<i64: 1, 768>}, {pipeline_mode = #tpu.pipeline_mode<synchronous>, transform_indices = @transform_3, window_bounds = array<i64: 256, 256>}, {pipeline_mode = #tpu.pipeline_mode<synchronous>, transform_indices = @transform_4, window_bounds = array<i64: 1, 256>}, {pipeline_mode = #tpu.pipeline_mode<synchronous>, transform_indices = @transform_5, window_bounds = array<i64: 1, 256>}, {pipeline_mode = #tpu.pipeline_mode<synchronous>, transform_indices = @transform_6, window_bounds = array<i64: 1, 256>}, {transform_indices = @transform_7, window_bounds = array<i64: 1, 8, 256>}]} {
    %c0 = arith.constant 0 : index
    %c0_0 = arith.constant 0 : index
    %c0_1 = arith.constant 0 : index
    %0 = vector.load %arg1[%c0, %c0_0, %c0_1] : memref<1x8x256xbf16, #tpu.memory_space<vmem>>, vector<1x8x256xbf16>
    %1 = vector.shape_cast %0 : vector<1x8x256xbf16> to vector<8x256xbf16>
    %2 = arith.extf %1 : vector<8x256xbf16> to vector<8x256xf32>
    %c0_2 = arith.constant 0 : index
    %c0_3 = arith.constant 0 : index
    %3 = vector.load %arg2[%c0_2, %c0_3] : memref<256x768xbf16, #tpu.memory_space<vmem>>, vector<256x768xbf16>
    %cst = arith.constant dense<0.000000e+00> : vector<8x768xf32>
    %4 = tpu.matmul %1, %3, %cst {dimension_numbers = #tpu.dot_dimension_numbers<[1], [0], [0], [1], [0, 0, 1, 1], [], []>} : vector<8x256xbf16>, vector<256x768xbf16>, vector<8x768xf32> -> vector<8x768xf32>
    %c0_4 = arith.constant 0 : index
    %c0_5 = arith.constant 0 : index
    %5 = vector.load %arg3[%c0_4, %c0_5] : memref<1x768xf32, #tpu.memory_space<vmem>>, vector<1x768xf32>
    %6 = vector.broadcast %5 : vector<1x768xf32> to vector<8x768xf32>
    %7 = arith.addf %4, %6 : vector<8x768xf32>
    %8 = arith.truncf %7 : vector<8x768xf32> to vector<8x768xbf16>
    %9 = vector.extract_strided_slice %8 {offsets = [0, 0], sizes = [8, 64], strides = [1, 1]} : vector<8x768xbf16> to vector<8x64xbf16>
    %10 = vector.extract_strided_slice %8 {offsets = [0, 256], sizes = [8, 64], strides = [1, 1]} : vector<8x768xbf16> to vector<8x64xbf16>
    %11 = vector.extract_strided_slice %8 {offsets = [0, 512], sizes = [8, 64], strides = [1, 1]} : vector<8x768xbf16> to vector<8x64xbf16>
    %cst_6 = arith.constant dense<0.000000e+00> : vector<8x8xf32>
    %12 = tpu.matmul %9, %10, %cst_6 {dimension_numbers = #tpu.dot_dimension_numbers<[1], [1], [0], [0], [0, 0, 1, 0], [], []>} : vector<8x64xbf16>, vector<8x64xbf16>, vector<8x8xf32> -> vector<8x8xf32>
    %cst_7 = arith.constant 1.250000e-01 : f32
    %13 = vector.broadcast %cst_7 : f32 to vector<8x8xf32>
    %14 = arith.mulf %12, %13 : vector<8x8xf32>
    %cst_8 = arith.constant dense<0xFF800000> : vector<8xf32>
    %15 = vector.multi_reduction <maximumf>, %14, %cst_8 [1] : vector<8x8xf32> to vector<8xf32>
    %16 = vector.shape_cast %15 : vector<8xf32> to vector<8x1xf32>
    %17 = vector.broadcast %16 : vector<8x1xf32> to vector<8x8xf32>
    %18 = arith.subf %14, %17 : vector<8x8xf32>
    %19 = math.exp %18 : vector<8x8xf32>
    %cst_9 = arith.constant dense<0.000000e+00> : vector<8xf32>
    %20 = vector.multi_reduction <add>, %19, %cst_9 [1] : vector<8x8xf32> to vector<8xf32>
    %21 = vector.shape_cast %20 : vector<8xf32> to vector<8x1xf32>
    %22 = tpu.reciprocal %21 {approx = true} : vector<8x1xf32> -> vector<8x1xf32>
    %23 = vector.broadcast %22 : vector<8x1xf32> to vector<8x8xf32>
    %24 = arith.mulf %19, %23 : vector<8x8xf32>
    %25 = arith.truncf %24 : vector<8x8xf32> to vector<8x8xbf16>
    %cst_10 = arith.constant dense<0.000000e+00> : vector<8x64xf32>
    %26 = tpu.matmul %25, %11, %cst_10 {dimension_numbers = #tpu.dot_dimension_numbers<[1], [0], [0], [1], [0, 0, 1, 1], [], []>} : vector<8x8xbf16>, vector<8x64xbf16>, vector<8x64xf32> -> vector<8x64xf32>
    %27 = vector.extract_strided_slice %8 {offsets = [0, 64], sizes = [8, 64], strides = [1, 1]} : vector<8x768xbf16> to vector<8x64xbf16>
    %28 = vector.extract_strided_slice %8 {offsets = [0, 320], sizes = [8, 64], strides = [1, 1]} : vector<8x768xbf16> to vector<8x64xbf16>
    %29 = vector.extract_strided_slice %8 {offsets = [0, 576], sizes = [8, 64], strides = [1, 1]} : vector<8x768xbf16> to vector<8x64xbf16>
    %cst_11 = arith.constant dense<0.000000e+00> : vector<8x8xf32>
    %30 = tpu.matmul %27, %28, %cst_11 {dimension_numbers = #tpu.dot_dimension_numbers<[1], [1], [0], [0], [0, 0, 1, 0], [], []>} : vector<8x64xbf16>, vector<8x64xbf16>, vector<8x8xf32> -> vector<8x8xf32>
    %cst_12 = arith.constant 1.250000e-01 : f32
    %31 = vector.broadcast %cst_12 : f32 to vector<8x8xf32>
    %32 = arith.mulf %30, %31 : vector<8x8xf32>
    %cst_13 = arith.constant dense<0xFF800000> : vector<8xf32>
    %33 = vector.multi_reduction <maximumf>, %32, %cst_13 [1] : vector<8x8xf32> to vector<8xf32>
    %34 = vector.shape_cast %33 : vector<8xf32> to vector<8x1xf32>
    %35 = vector.broadcast %34 : vector<8x1xf32> to vector<8x8xf32>
    %36 = arith.subf %32, %35 : vector<8x8xf32>
    %37 = math.exp %36 : vector<8x8xf32>
    %cst_14 = arith.constant dense<0.000000e+00> : vector<8xf32>
    %38 = vector.multi_reduction <add>, %37, %cst_14 [1] : vector<8x8xf32> to vector<8xf32>
    %39 = vector.shape_cast %38 : vector<8xf32> to vector<8x1xf32>
    %40 = tpu.reciprocal %39 {approx = true} : vector<8x1xf32> -> vector<8x1xf32>
    %41 = vector.broadcast %40 : vector<8x1xf32> to vector<8x8xf32>
    %42 = arith.mulf %37, %41 : vector<8x8xf32>
    %43 = arith.truncf %42 : vector<8x8xf32> to vector<8x8xbf16>
    %cst_15 = arith.constant dense<0.000000e+00> : vector<8x64xf32>
    %44 = tpu.matmul %43, %29, %cst_15 {dimension_numbers = #tpu.dot_dimension_numbers<[1], [0], [0], [1], [0, 0, 1, 1], [], []>} : vector<8x8xbf16>, vector<8x64xbf16>, vector<8x64xf32> -> vector<8x64xf32>
    %45 = vector.extract_strided_slice %8 {offsets = [0, 128], sizes = [8, 64], strides = [1, 1]} : vector<8x768xbf16> to vector<8x64xbf16>
    %46 = vector.extract_strided_slice %8 {offsets = [0, 384], sizes = [8, 64], strides = [1, 1]} : vector<8x768xbf16> to vector<8x64xbf16>
    %47 = vector.extract_strided_slice %8 {offsets = [0, 640], sizes = [8, 64], strides = [1, 1]} : vector<8x768xbf16> to vector<8x64xbf16>
    %cst_16 = arith.constant dense<0.000000e+00> : vector<8x8xf32>
    %48 = tpu.matmul %45, %46, %cst_16 {dimension_numbers = #tpu.dot_dimension_numbers<[1], [1], [0], [0], [0, 0, 1, 0], [], []>} : vector<8x64xbf16>, vector<8x64xbf16>, vector<8x8xf32> -> vector<8x8xf32>
    %cst_17 = arith.constant 1.250000e-01 : f32
    %49 = vector.broadcast %cst_17 : f32 to vector<8x8xf32>
    %50 = arith.mulf %48, %49 : vector<8x8xf32>
    %cst_18 = arith.constant dense<0xFF800000> : vector<8xf32>
    %51 = vector.multi_reduction <maximumf>, %50, %cst_18 [1] : vector<8x8xf32> to vector<8xf32>
    %52 = vector.shape_cast %51 : vector<8xf32> to vector<8x1xf32>
    %53 = vector.broadcast %52 : vector<8x1xf32> to vector<8x8xf32>
    %54 = arith.subf %50, %53 : vector<8x8xf32>
    %55 = math.exp %54 : vector<8x8xf32>
    %cst_19 = arith.constant dense<0.000000e+00> : vector<8xf32>
    %56 = vector.multi_reduction <add>, %55, %cst_19 [1] : vector<8x8xf32> to vector<8xf32>
    %57 = vector.shape_cast %56 : vector<8xf32> to vector<8x1xf32>
    %58 = tpu.reciprocal %57 {approx = true} : vector<8x1xf32> -> vector<8x1xf32>
    %59 = vector.broadcast %58 : vector<8x1xf32> to vector<8x8xf32>
    %60 = arith.mulf %55, %59 : vector<8x8xf32>
    %61 = arith.truncf %60 : vector<8x8xf32> to vector<8x8xbf16>
    %cst_20 = arith.constant dense<0.000000e+00> : vector<8x64xf32>
    %62 = tpu.matmul %61, %47, %cst_20 {dimension_numbers = #tpu.dot_dimension_numbers<[1], [0], [0], [1], [0, 0, 1, 1], [], []>} : vector<8x8xbf16>, vector<8x64xbf16>, vector<8x64xf32> -> vector<8x64xf32>
    %63 = vector.extract_strided_slice %8 {offsets = [0, 192], sizes = [8, 64], strides = [1, 1]} : vector<8x768xbf16> to vector<8x64xbf16>
    %64 = vector.extract_strided_slice %8 {offsets = [0, 448], sizes = [8, 64], strides = [1, 1]} : vector<8x768xbf16> to vector<8x64xbf16>
    %65 = vector.extract_strided_slice %8 {offsets = [0, 704], sizes = [8, 64], strides = [1, 1]} : vector<8x768xbf16> to vector<8x64xbf16>
    %cst_21 = arith.constant dense<0.000000e+00> : vector<8x8xf32>
    %66 = tpu.matmul %63, %64, %cst_21 {dimension_numbers = #tpu.dot_dimension_numbers<[1], [1], [0], [0], [0, 0, 1, 0], [], []>} : vector<8x64xbf16>, vector<8x64xbf16>, vector<8x8xf32> -> vector<8x8xf32>
    %cst_22 = arith.constant 1.250000e-01 : f32
    %67 = vector.broadcast %cst_22 : f32 to vector<8x8xf32>
    %68 = arith.mulf %66, %67 : vector<8x8xf32>
    %cst_23 = arith.constant dense<0xFF800000> : vector<8xf32>
    %69 = vector.multi_reduction <maximumf>, %68, %cst_23 [1] : vector<8x8xf32> to vector<8xf32>
    %70 = vector.shape_cast %69 : vector<8xf32> to vector<8x1xf32>
    %71 = vector.broadcast %70 : vector<8x1xf32> to vector<8x8xf32>
    %72 = arith.subf %68, %71 : vector<8x8xf32>
    %73 = math.exp %72 : vector<8x8xf32>
    %cst_24 = arith.constant dense<0.000000e+00> : vector<8xf32>
    %74 = vector.multi_reduction <add>, %73, %cst_24 [1] : vector<8x8xf32> to vector<8xf32>
    %75 = vector.shape_cast %74 : vector<8xf32> to vector<8x1xf32>
    %76 = tpu.reciprocal %75 {approx = true} : vector<8x1xf32> -> vector<8x1xf32>
    %77 = vector.broadcast %76 : vector<8x1xf32> to vector<8x8xf32>
    %78 = arith.mulf %73, %77 : vector<8x8xf32>
    %79 = arith.truncf %78 : vector<8x8xf32> to vector<8x8xbf16>
    %cst_25 = arith.constant dense<0.000000e+00> : vector<8x64xf32>
    %80 = tpu.matmul %79, %65, %cst_25 {dimension_numbers = #tpu.dot_dimension_numbers<[1], [0], [0], [1], [0, 0, 1, 1], [], []>} : vector<8x8xbf16>, vector<8x64xbf16>, vector<8x64xf32> -> vector<8x64xf32>
    %81 = tpu.concatenate %26, %44, %62, %80 in 1 : vector<8x64xf32>, vector<8x64xf32>, vector<8x64xf32>, vector<8x64xf32> -> vector<8x256xf32>
    %82 = arith.truncf %81 : vector<8x256xf32> to vector<8x256xbf16>
    %c0_26 = arith.constant 0 : index
    %c0_27 = arith.constant 0 : index
    %83 = vector.load %arg4[%c0_26, %c0_27] : memref<256x256xbf16, #tpu.memory_space<vmem>>, vector<256x256xbf16>
    %cst_28 = arith.constant dense<0.000000e+00> : vector<8x256xf32>
    %84 = tpu.matmul %82, %83, %cst_28 {dimension_numbers = #tpu.dot_dimension_numbers<[1], [0], [0], [1], [0, 0, 1, 1], [], []>} : vector<8x256xbf16>, vector<256x256xbf16>, vector<8x256xf32> -> vector<8x256xf32>
    %c0_29 = arith.constant 0 : index
    %c0_30 = arith.constant 0 : index
    %85 = vector.load %arg5[%c0_29, %c0_30] : memref<1x256xf32, #tpu.memory_space<vmem>>, vector<1x256xf32>
    %86 = vector.broadcast %85 : vector<1x256xf32> to vector<8x256xf32>
    %87 = arith.addf %84, %86 : vector<8x256xf32>
    %88 = arith.addf %2, %87 : vector<8x256xf32>
    %cst_31 = arith.constant dense<0.000000e+00> : vector<8xf32>
    %89 = vector.multi_reduction <add>, %88, %cst_31 [1] : vector<8x256xf32> to vector<8xf32>
    %90 = vector.shape_cast %89 : vector<8xf32> to vector<8x1xf32>
    %cst_32 = arith.constant 2.560000e+02 : f32
    %91 = vector.broadcast %cst_32 : f32 to vector<8x1xf32>
    %92 = arith.divf %90, %91 : vector<8x1xf32>
    %93 = vector.broadcast %92 : vector<8x1xf32> to vector<8x256xf32>
    %94 = arith.subf %88, %93 : vector<8x256xf32>
    %95 = arith.mulf %94, %94 : vector<8x256xf32>
    %cst_33 = arith.constant dense<0.000000e+00> : vector<8xf32>
    %96 = vector.multi_reduction <add>, %95, %cst_33 [1] : vector<8x256xf32> to vector<8xf32>
    %97 = vector.shape_cast %96 : vector<8xf32> to vector<8x1xf32>
    %cst_34 = arith.constant 2.560000e+02 : f32
    %98 = vector.broadcast %cst_34 : f32 to vector<8x1xf32>
    %99 = arith.divf %97, %98 : vector<8x1xf32>
    %cst_35 = arith.constant 9.99999974E-6 : f32
    %100 = vector.broadcast %cst_35 : f32 to vector<8x1xf32>
    %101 = arith.addf %99, %100 : vector<8x1xf32>
    %102 = math.rsqrt %101 : vector<8x1xf32>
    %103 = vector.broadcast %102 : vector<8x1xf32> to vector<8x256xf32>
    %104 = arith.mulf %94, %103 : vector<8x256xf32>
    %c0_36 = arith.constant 0 : index
    %c0_37 = arith.constant 0 : index
    %105 = vector.load %arg6[%c0_36, %c0_37] : memref<1x256xf32, #tpu.memory_space<vmem>>, vector<1x256xf32>
    %106 = vector.broadcast %105 : vector<1x256xf32> to vector<8x256xf32>
    %107 = arith.mulf %104, %106 : vector<8x256xf32>
    %c0_38 = arith.constant 0 : index
    %c0_39 = arith.constant 0 : index
    %108 = vector.load %arg7[%c0_38, %c0_39] : memref<1x256xf32, #tpu.memory_space<vmem>>, vector<1x256xf32>
    %109 = vector.broadcast %108 : vector<1x256xf32> to vector<8x256xf32>
    %110 = arith.addf %107, %109 : vector<8x256xf32>
    %111 = arith.truncf %110 : vector<8x256xf32> to vector<8x256xbf16>
    %c0_40 = arith.constant 0 : index
    %c0_41 = arith.constant 0 : index
    %c0_42 = arith.constant 0 : index
    %112 = vector.load %arg8[%c0_40, %c0_41, %c0_42] : memref<1x8x256xbf16, #tpu.memory_space<vmem>>, vector<1x8x256xbf16>
    %113 = vector.shape_cast %112 : vector<1x8x256xbf16> to vector<8x256xbf16>
    %114 = vector.shape_cast %111 : vector<8x256xbf16> to vector<1x8x256xbf16>
    tpu.vector_store %arg8[%c0_40, %c0_41, %c0_42], %114 {strides = array<i32>} : memref<1x8x256xbf16, #tpu.memory_space<vmem>>, vector<1x8x256xbf16>,
    return
  }
  func.func @transform_0(%arg0: i32) -> (i32, i32, i32) {
    %c0_i32 = arith.constant 0 : i32
    %c0_i32_0 = arith.constant 0 : i32
    %c0_i32_1 = arith.constant 0 : i32
    return %arg0, %c0_i32, %c0_i32_0 : i32, i32, i32
  }
  func.func @transform_1(%arg0: i32) -> (i32, i32) {
    %c0_i32 = arith.constant 0 : i32
    %c0_i32_0 = arith.constant 0 : i32
    %c0_i32_1 = arith.constant 0 : i32
    return %c0_i32, %c0_i32_0 : i32, i32
  }
  func.func @transform_2(%arg0: i32) -> (i32, i32) {
    %c0_i32 = arith.constant 0 : i32
    %c0_i32_0 = arith.constant 0 : i32
    %c0_i32_1 = arith.constant 0 : i32
    return %c0_i32, %c0_i32_0 : i32, i32
  }
  func.func @transform_3(%arg0: i32) -> (i32, i32) {
    %c0_i32 = arith.constant 0 : i32
    %c0_i32_0 = arith.constant 0 : i32
    %c0_i32_1 = arith.constant 0 : i32
    return %c0_i32, %c0_i32_0 : i32, i32
  }
  func.func @transform_4(%arg0: i32) -> (i32, i32) {
    %c0_i32 = arith.constant 0 : i32
    %c0_i32_0 = arith.constant 0 : i32
    %c0_i32_1 = arith.constant 0 : i32
    return %c0_i32, %c0_i32_0 : i32, i32
  }
  func.func @transform_5(%arg0: i32) -> (i32, i32) {
    %c0_i32 = arith.constant 0 : i32
    %c0_i32_0 = arith.constant 0 : i32
    %c0_i32_1 = arith.constant 0 : i32
    return %c0_i32, %c0_i32_0 : i32, i32
  }
  func.func @transform_6(%arg0: i32) -> (i32, i32) {
    %c0_i32 = arith.constant 0 : i32
    %c0_i32_0 = arith.constant 0 : i32
    %c0_i32_1 = arith.constant 0 : i32
    return %c0_i32, %c0_i32_0 : i32, i32
  }
  func.func @transform_7(%arg0: i32) -> (i32, i32, i32) {
    %c0_i32 = arith.constant 0 : i32
    %c0_i32_0 = arith.constant 0 : i32
    %c0_i32_1 = arith.constant 0 : i32
    return %arg0, %c0_i32, %c0_i32_0 : i32, i32, i32
  }
}

module attributes {stable_mosaic.version = 11 : i64} {
  func.func @_heads_kernel(%arg0: i32, %arg1: memref<16x256xbf16, #tpu.memory_space<vmem>>, %arg2: memref<256x128xbf16, #tpu.memory_space<vmem>>, %arg3: memref<1x128xf32, #tpu.memory_space<vmem>>, %arg4: memref<16x128xf32, #tpu.memory_space<vmem>>) attributes {dimension_semantics = [#tpu.dimension_semantics<parallel>], iteration_bounds = array<i64: 1>, scalar_prefetch = 0 : i64, scratch_operands = 0 : i64, tpu.core_type = #tpu.core_type<tc>, window_params = [{transform_indices = @transform_0, window_bounds = array<i64: 16, 256>}, {pipeline_mode = #tpu.pipeline_mode<synchronous>, transform_indices = @transform_1, window_bounds = array<i64: 256, 128>}, {pipeline_mode = #tpu.pipeline_mode<synchronous>, transform_indices = @transform_2, window_bounds = array<i64: 1, 128>}, {transform_indices = @transform_3, window_bounds = array<i64: 16, 128>}]} {
    %c0 = arith.constant 0 : index
    %c0_0 = arith.constant 0 : index
    %0 = vector.load %arg1[%c0, %c0_0] : memref<16x256xbf16, #tpu.memory_space<vmem>>, vector<16x256xbf16>
    %c0_1 = arith.constant 0 : index
    %c0_2 = arith.constant 0 : index
    %1 = vector.load %arg2[%c0_1, %c0_2] : memref<256x128xbf16, #tpu.memory_space<vmem>>, vector<256x128xbf16>
    %cst = arith.constant dense<0.000000e+00> : vector<16x128xf32>
    %2 = tpu.matmul %0, %1, %cst {dimension_numbers = #tpu.dot_dimension_numbers<[1], [0], [0], [1], [0, 0, 1, 1], [], []>} : vector<16x256xbf16>, vector<256x128xbf16>, vector<16x128xf32> -> vector<16x128xf32>
    %c0_3 = arith.constant 0 : index
    %c0_4 = arith.constant 0 : index
    %3 = vector.load %arg3[%c0_3, %c0_4] : memref<1x128xf32, #tpu.memory_space<vmem>>, vector<1x128xf32>
    %4 = vector.broadcast %3 : vector<1x128xf32> to vector<16x128xf32>
    %5 = arith.addf %2, %4 : vector<16x128xf32>
    %6 = tpu.iota {dimensions = array<i32: 1>} : vector<16x128xi32>
    %c4_i32 = arith.constant 4 : i32
    %7 = vector.broadcast %c4_i32 : i32 to vector<16x128xi32>
    %8 = arith.cmpi slt, %6, %7 : vector<16x128xi32>
    %9 = arith.negf %5 : vector<16x128xf32>
    %10 = math.exp %9 : vector<16x128xf32>
    %cst_5 = arith.constant 1.000000e+00 : f32
    %11 = vector.broadcast %cst_5 : f32 to vector<16x128xf32>
    %12 = arith.addf %11, %10 : vector<16x128xf32>
    %13 = arith.divf %11, %12 : vector<16x128xf32>
    %14 = arith.select %8, %13, %5 : vector<16x128xi1>, vector<16x128xf32>
    %c0_6 = arith.constant 0 : index
    %c0_7 = arith.constant 0 : index
    %15 = vector.load %arg4[%c0_6, %c0_7] : memref<16x128xf32, #tpu.memory_space<vmem>>, vector<16x128xf32>
    tpu.vector_store %arg4[%c0_6, %c0_7], %14 {strides = array<i32>} : memref<16x128xf32, #tpu.memory_space<vmem>>, vector<16x128xf32>,
    return
  }
  func.func @transform_0(%arg0: i32) -> (i32, i32) {
    %c0_i32 = arith.constant 0 : i32
    %c0_i32_0 = arith.constant 0 : i32
    return %arg0, %c0_i32 : i32, i32
  }
  func.func @transform_1(%arg0: i32) -> (i32, i32) {
    %c0_i32 = arith.constant 0 : i32
    %c0_i32_0 = arith.constant 0 : i32
    %c0_i32_1 = arith.constant 0 : i32
    return %c0_i32, %c0_i32_0 : i32, i32
  }
  func.func @transform_2(%arg0: i32) -> (i32, i32) {
    %c0_i32 = arith.constant 0 : i32
    %c0_i32_0 = arith.constant 0 : i32
    %c0_i32_1 = arith.constant 0 : i32
    return %c0_i32, %c0_i32_0 : i32, i32
  }
  func.func @transform_3(%arg0: i32) -> (i32, i32) {
    %c0_i32 = arith.constant 0 : i32
    %c0_i32_0 = arith.constant 0 : i32
    return %arg0, %c0_i32 : i32, i32
  }
}

</mosaic_0001>

<llo_original>
// kernel: discriminator_forward.6
$region0: #{discriminator_forward.6}
  #allocation0 [shape = 'u32[]', space=smem, size = 0x4, offset = 0x4, fixed_abs, tag = 'smem constant byte address 0x4 - core index']
  #allocation1 [shape = 'u32[144,128]{1,0:T(1,128)}', space=vmem, size = 0x12000, scoped, tag = 'internal scratch']
  %s0 = inlined_call_operand.vmem [shape: bf16[16,32], index: 0, kind: input, shape index: {}]
  %s1 = inlined_call_operand.vmem [shape: bf16[32,256], index: 1, kind: input, shape index: {}]
  %s2 = inlined_call_operand.vmem [shape: f32[1,256], index: 2, kind: input, shape index: {}]
  %s3 = inlined_call_operand.vmem [shape: bf16[16,256], index: 3, kind: output, shape index: {}]
  %s4 = sld [smem:[#allocation0]]
  $region22: #{discriminator_forward.6} parent=0
    _
  %s6 = ssub.s32 1, %s4
  %s7 = scalar_select 0, %s6, %s4
  // Predicated region
  $region2: #{discriminator_forward.6} parent=0 // pred_check
    _
  $region3: #{discriminator_forward.6} parent=0 // pred_check_branch
    %9 = sbr.rel (0) target = $region5
  $region4: #{discriminator_forward.6} parent=0 // pred_region
    _
  $region5: #{discriminator_forward.6} parent=0 // pred_fallthru
    _
  // Predicated region
  $region6: #{discriminator_forward.6} parent=0 // pred_check
    _
  $region7: #{discriminator_forward.6} parent=0 // pred_check_branch
    %11 = sbr.rel (0) target = $region9
  $region8: #{discriminator_forward.6} parent=0 // pred_region
    _
  $region9: #{discriminator_forward.6} parent=0 // pred_fallthru
    _
  // Predicated region
  $region10: #{discriminator_forward.6} parent=0 // pred_check
    _
  $region11: #{discriminator_forward.6} parent=0 // pred_check_branch
    %13 = sbr.rel (0) target = $region13
  $region12: #{discriminator_forward.6} parent=0 // pred_region
    _
  $region13: #{discriminator_forward.6} parent=0 // pred_fallthru
    _
  %v15 = vld [vmem:[%s0] sm:$0xf]
  %v16 = vld [vmem:[%s0 + $0x4] sm:$0xf]
  %v17 = vld [vmem:[%s1] sm:$0xff]
  %v18 = vld [vmem:[%s1 + $0x8] sm:$0xff]
  %v19 = vld [vmem:[%s1 + $0x10] sm:$0xff]
  %v20 = vld [vmem:[%s1 + $0x18] sm:$0xff]
  %v21 = vld [vmem:[%s2] sm:$0x3]
  %v23 = vlaneseq
  %v24 = vshrl.u32 %v23, 7
  %v25 = vsub.s32 0, %v24
  %v26 = vrot.slane %v21, %v25
  %v27 = vlaneseq
  %v28 = vshrl.u32 %v27, 7
  %v29 = vsub.s32 1, %v28
  %v30 = vrot.slane %v21, %v29
  %v35 = vunpack.c.l.b16 %v15
  %v36 = vunpack.c.l.b16 %v16
  %v37 = vpack.c.b16 %v36, %v35
  %v42 = vunpack.c.l.b16 %v17
  %v43 = vunpack.c.h.b16 %v17
  %v44 = vunpack.c.l.b16 %v18
  %v45 = vunpack.c.h.b16 %v18
  %v46 = vunpack.c.l.b16 %v19
  %v47 = vunpack.c.h.b16 %v19
  %v48 = vunpack.c.l.b16 %v20
  %v49 = vunpack.c.h.b16 %v20
  %v50 = vpack.c.b16 %v44, %v42
  %v51 = vpack.c.b16 %v45, %v43
  %v52 = vpack.c.b16 %v48, %v46
  %v53 = vpack.c.b16 %v49, %v47
  %vm58 = vcmask 261120
  %v60 = vsel %vm58, %v37, 0
  %62 = vmatprep.subr.bf16.mxu0 0
  %63 = vmatpush1.bf16.msra.mxu0 0
  %64 = vmatprep.subr.bf16.mxu0 0
  %65 = vmatpush1.bf16.msra.mxu0 0
  %66 = vmatprep.subr.bf16.mxu0 0
  %67 = vmatpush1.bf16.msra.mxu0 0
  %68 = vmatprep.subr.bf16.mxu0 0
  %69 = vmatpush1.bf16.msra.mxu0 0
  %70 = vmatprep.subr.bf16.mxu0 0
  %71 = vmatpush1.bf16.msra.mxu0 0
  %72 = vmatprep.subr.bf16.mxu0 0
  %73 = vmatpush1.bf16.msra.mxu0 0
  %74 = vmatprep.subr.bf16.mxu0 %v53
  %75 = vmatpush1.bf16.msra.mxu0 %v52
  %76 = vmatprep.subr.bf16.mxu0 %v51
  %77 = vmatpush1.bf16.msra.mxu0 %v50
  %78 = vmatprep.subr.bf16.mxu0 0
  %79 = vmatpush2.bf16.msra.mxu0 0
  %80 = vmatprep.subr.bf16.mxu0 0
  %81 = vmatpush2.bf16.msra.mxu0 0
  %82 = vmatprep.subr.bf16.mxu0 0
  %83 = vmatpush2.bf16.msra.mxu0 0
  %84 = vmatprep.subr.bf16.mxu0 0
  %85 = vmatpush2.bf16.msra.mxu0 0
  %86 = vmatprep.subr.bf16.mxu0 0
  %87 = vmatpush2.bf16.msra.mxu0 0
  %88 = vmatprep.subr.bf16.mxu0 0
  %89 = vmatpush2.bf16.msra.mxu0 0
  %90 = vmatprep.subr.bf16.mxu0 0
  %91 = vmatpush2.bf16.msra.mxu0 0
  %92 = vmatprep.subr.bf16.mxu0 0
  %93 = vmatpush2.bf16.msra.mxu0 0
  %94 = vmatprep.mubr.bf16.mxu0 0
  %95 = vmatmul.mubr.bf16.gmra.mxu0 %v60
  %v96 = vpop.f32.mrf.mxu0
  %v97 = vadd.f32 %v26, %v96
  %v98 = vpop.f32.mrf.mxu0
  %v99 = vadd.f32 %v30, %v98
  %v100 = vpop.f32.mrf.mxu0
  %v101 = vadd.f32 %v26, %v100
  %v102 = vpop.f32.mrf.mxu0
  %v103 = vadd.f32 %v30, %v102
  %104 = vdwg.mxu0
  %v105 = vpack.c.bf16 %v101, %v97
  %v106 = vpack.c.bf16 %v103, %v99
  %v109 = vunpack.c.l.b16 %v105
  %v110 = vunpack.c.l.b16 %v106
  %v111 = vunpack.c.h.b16 %v105
  %v112 = vunpack.c.h.b16 %v106
  %v113 = vpack.c.b16 %v110, %v109
  %v114 = vpack.c.b16 %v112, %v111
  %117 = vst [vmem:[%s3] sm:$0xff] %v113
  %118 = vst [vmem:[%s3 + $0x8] sm:$0xff] %v114
  // Predicated region
  $region14: #{discriminator_forward.6} parent=0 // pred_check
    _
  $region15: #{discriminator_forward.6} parent=0 // pred_check_branch
    %120 = sbr.rel (0) target = $region17
  $region16: #{discriminator_forward.6} parent=0 // pred_region
    _
  $region17: #{discriminator_forward.6} parent=0 // pred_fallthru
    _
  // Predicated region
  $region18: #{discriminator_forward.6} parent=0 // pred_check
    _
  $region19: #{discriminator_forward.6} parent=0 // pred_check_branch
    %122 = sbr.rel (0) target = $region21
  $region20: #{discriminator_forward.6} parent=0 // pred_region
    _
  $region21: #{discriminator_forward.6} parent=0 // pred_fallthru
    _

// kernel: discriminator_forward.8
$region0: #{discriminator_forward.8}
  #allocation0 [shape = 'u32[]', space=smem, size = 0x4, offset = 0x4, fixed_abs, tag = 'smem constant byte address 0x4 - core index']
  #allocation1 [shape = 'u32[144,128]{1,0:T(1,128)}', space=vmem, size = 0x12000, scoped, tag = 'internal scratch']
  %s0 = inlined_call_operand.vmem [shape: bf16[16,256], index: 0, kind: input, shape index: {}]
  %s1 = inlined_call_operand.vmem [shape: bf16[256,64], index: 1, kind: input, shape index: {}]
  %s2 = inlined_call_operand.vmem [shape: f32[1,64], index: 2, kind: input, shape index: {}]
  %s3 = inlined_call_operand.vmem [shape: bf16[64,256], index: 3, kind: input, shape index: {}]
  %s4 = inlined_call_operand.vmem [shape: f32[1,256], index: 4, kind: input, shape index: {}]
  %s5 = inlined_call_operand.vmem [shape: f32[1,256], index: 5, kind: input, shape index: {}]
  %s6 = inlined_call_operand.vmem [shape: f32[1,256], index: 6, kind: input, shape index: {}]
  %s7 = inlined_call_operand.vmem [shape: bf16[16,256], index: 7, kind: output, shape index: {}]
  %s8 = sld [smem:[#allocation0]]
  $region38: #{discriminator_forward.8} parent=0
    _
  %s10 = ssub.s32 1, %s8
  %s11 = scalar_select 0, %s10, %s8
  // Predicated region
  $region2: #{discriminator_forward.8} parent=0 // pred_check
    _
  $region3: #{discriminator_forward.8} parent=0 // pred_check_branch
    %13 = sbr.rel (0) target = $region5
  $region4: #{discriminator_forward.8} parent=0 // pred_region
    _
  $region5: #{discriminator_forward.8} parent=0 // pred_fallthru
    _
  // Predicated region
  $region6: #{discriminator_forward.8} parent=0 // pred_check
    _
  $region7: #{discriminator_forward.8} parent=0 // pred_check_branch
    %15 = sbr.rel (0) target = $region9
  $region8: #{discriminator_forward.8} parent=0 // pred_region
    _
  $region9: #{discriminator_forward.8} parent=0 // pred_fallthru
    _
  // Predicated region
  $region10: #{discriminator_forward.8} parent=0 // pred_check
    _
  $region11: #{discriminator_forward.8} parent=0 // pred_check_branch
    %17 = sbr.rel (0) target = $region13
  $region12: #{discriminator_forward.8} parent=0 // pred_region
    _
  $region13: #{discriminator_forward.8} parent=0 // pred_fallthru
    _
  // Predicated region
  $region14: #{discriminator_forward.8} parent=0 // pred_check
    _
  $region15: #{discriminator_forward.8} parent=0 // pred_check_branch
    %19 = sbr.rel (0) target = $region17
  $region16: #{discriminator_forward.8} parent=0 // pred_region
    _
  $region17: #{discriminator_forward.8} parent=0 // pred_fallthru
    _
  // Predicated region
  $region18: #{discriminator_forward.8} parent=0 // pred_check
    _
  $region19: #{discriminator_forward.8} parent=0 // pred_check_branch
    %21 = sbr.rel (0) target = $region21
  $region20: #{discriminator_forward.8} parent=0 // pred_region
    _
  $region21: #{discriminator_forward.8} parent=0 // pred_fallthru
    _
  // Predicated region
  $region22: #{discriminator_forward.8} parent=0 // pred_check
    _
  $region23: #{discriminator_forward.8} parent=0 // pred_check_branch
    %23 = sbr.rel (0) target = $region25
  $region24: #{discriminator_forward.8} parent=0 // pred_region
    _
  $region25: #{discriminator_forward.8} parent=0 // pred_fallthru
    _
  // Predicated region
  $region26: #{discriminator_forward.8} parent=0 // pred_check
    _
  $region27: #{discriminator_forward.8} parent=0 // pred_check_branch
    %25 = sbr.rel (0) target = $region29
  $region28: #{discriminator_forward.8} parent=0 // pred_region
    _
  $region29: #{discriminator_forward.8} parent=0 // pred_fallthru
    _
  %v27 = vld [vmem:[%s0] sm:$0xff]
  %v28 = vld [vmem:[%s0 + $0x8] sm:$0xff]
  %v29 = vunpack.c.l.bf16 %v27
  %v30 = vunpack.c.h.bf16 %v27
  %v31 = vunpack.c.l.bf16 %v28
  %v32 = vunpack.c.h.bf16 %v28
  %v33 = vld [vmem:[%s1] sm:$0xf]
  %v34 = vld [vmem:[%s1 + $0x4] sm:$0xf]
  %v35 = vld [vmem:[%s1 + $0x8] sm:$0xf]
  %v36 = vld [vmem:[%s1 + $0xc] sm:$0xf]
  %v37 = vld [vmem:[%s1 + $0x10] sm:$0xf]
  %v38 = vld [vmem:[%s1 + $0x14] sm:$0xf]
  %v39 = vld [vmem:[%s1 + $0x18] sm:$0xf]
  %v40 = vld [vmem:[%s1 + $0x1c] sm:$0xf]
  %v41 = vld [vmem:[%s1 + $0x20] sm:$0xf]
  %v42 = vld [vmem:[%s1 + $0x24] sm:$0xf]
  %v43 = vld [vmem:[%s1 + $0x28] sm:$0xf]
  %v44 = vld [vmem:[%s1 + $0x2c] sm:$0xf]
  %v45 = vld [vmem:[%s1 + $0x30] sm:$0xf]
  %v46 = vld [vmem:[%s1 + $0x34] sm:$0xf]
  %v47 = vld [vmem:[%s1 + $0x38] sm:$0xf]
  %v48 = vld [vmem:[%s1 + $0x3c] sm:$0xf]
  %v49 = vld [vmem:[%s1 + $0x40] sm:$0xf]
  %v50 = vld [vmem:[%s1 + $0x44] sm:$0xf]
  %v51 = vld [vmem:[%s1 + $0x48] sm:$0xf]
  %v52 = vld [vmem:[%s1 + $0x4c] sm:$0xf]
  %v53 = vld [vmem:[%s1 + $0x50] sm:$0xf]
  %v54 = vld [vmem:[%s1 + $0x54] sm:$0xf]
  %v55 = vld [vmem:[%s1 + $0x58] sm:$0xf]
  %v56 = vld [vmem:[%s1 + $0x5c] sm:$0xf]
  %v57 = vld [vmem:[%s1 + $0x60] sm:$0xf]
  %v58 = vld [vmem:[%s1 + $0x64] sm:$0xf]
  %v59 = vld [vmem:[%s1 + $0x68] sm:$0xf]
  %v60 = vld [vmem:[%s1 + $0x6c] sm:$0xf]
  %v61 = vld [vmem:[%s1 + $0x70] sm:$0xf]
  %v62 = vld [vmem:[%s1 + $0x74] sm:$0xf]
  %v63 = vld [vmem:[%s1 + $0x78] sm:$0xf]
  %v64 = vld [vmem:[%s1 + $0x7c] sm:$0xf]
  %v65 = vld [vmem:[%s2] sm:$0x1]
  %v67 = vlaneseq
  %v68 = vshrl.u32 %v67, 7
  %v69 = vsub.s32 0, %v68
  %v70 = vrot.slane %v65, %v69
  %v74 = vunpack.c.l.b16 %v27
  %v75 = vunpack.c.h.b16 %v27
  %v76 = vunpack.c.l.b16 %v28
  %v77 = vunpack.c.h.b16 %v28
  %v78 = vpack.c.b16 %v76, %v74
  %v79 = vpack.c.b16 %v77, %v75
  %v114 = vunpack.c.l.b16 %v33
  %v115 = vunpack.c.l.b16 %v34
  %v116 = vunpack.c.l.b16 %v35
  %v117 = vunpack.c.l.b16 %v36
  %v118 = vunpack.c.l.b16 %v37
  %v119 = vunpack.c.l.b16 %v38
  %v120 = vunpack.c.l.b16 %v39
  %v121 = vunpack.c.l.b16 %v40
  %v122 = vunpack.c.l.b16 %v41
  %v123 = vunpack.c.l.b16 %v42
  %v124 = vunpack.c.l.b16 %v43
  %v125 = vunpack.c.l.b16 %v44
  %v126 = vunpack.c.l.b16 %v45
  %v127 = vunpack.c.l.b16 %v46
  %v128 = vunpack.c.l.b16 %v47
  %v129 = vunpack.c.l.b16 %v48
  %v130 = vunpack.c.l.b16 %v49
  %v131 = vunpack.c.l.b16 %v50
  %v132 = vunpack.c.l.b16 %v51
  %v133 = vunpack.c.l.b16 %v52
  %v134 = vunpack.c.l.b16 %v53
  %v135 = vunpack.c.l.b16 %v54
  %v136 = vunpack.c.l.b16 %v55
  %v137 = vunpack.c.l.b16 %v56
  %v138 = vunpack.c.l.b16 %v57
  %v139 = vunpack.c.l.b16 %v58
  %v140 = vunpack.c.l.b16 %v59
  %v141 = vunpack.c.l.b16 %v60
  %v142 = vunpack.c.l.b16 %v61
  %v143 = vunpack.c.l.b16 %v62
  %v144 = vunpack.c.l.b16 %v63
  %v145 = vunpack.c.l.b16 %v64
  %v146 = vpack.c.b16 %v115, %v114
  %v147 = vpack.c.b16 %v117, %v116
  %v148 = vpack.c.b16 %v119, %v118
  %v149 = vpack.c.b16 %v121, %v120
  %v150 = vpack.c.b16 %v123, %v122
  %v151 = vpack.c.b16 %v125, %v124
  %v152 = vpack.c.b16 %v127, %v126
  %v153 = vpack.c.b16 %v129, %v128
  %v154 = vpack.c.b16 %v131, %v130
  %v155 = vpack.c.b16 %v133, %v132
  %v156 = vpack.c.b16 %v135, %v134
  %v157 = vpack.c.b16 %v137, %v136
  %v158 = vpack.c.b16 %v139, %v138
  %v159 = vpack.c.b16 %v141, %v140
  %v160 = vpack.c.b16 %v143, %v142
  %v161 = vpack.c.b16 %v145, %v144
  %178 = vmatprep.subr.bf16.mxu0 0
  %179 = vmatpush1.bf16.msra.mxu0 %v153
  %180 = vmatprep.subr.bf16.mxu0 0
  %181 = vmatpush1.bf16.msra.mxu0 %v152
  %182 = vmatprep.subr.bf16.mxu0 0
  %183 = vmatpush1.bf16.msra.mxu0 %v151
  %184 = vmatprep.subr.bf16.mxu0 0
  %185 = vmatpush1.bf16.msra.mxu0 %v150
  %186 = vmatprep.subr.bf16.mxu0 0
  %187 = vmatpush1.bf16.msra.mxu0 %v149
  %188 = vmatprep.subr.bf16.mxu0 0
  %189 = vmatpush1.bf16.msra.mxu0 %v148
  %190 = vmatprep.subr.bf16.mxu0 0
  %191 = vmatpush1.bf16.msra.mxu0 %v147
  %192 = vmatprep.subr.bf16.mxu0 0
  %193 = vmatpush1.bf16.msra.mxu0 %v146
  %194 = vmatprep.subr.bf16.mxu0 0
  %195 = vmatpush2.bf16.msra.mxu0 %v161
  %196 = vmatprep.subr.bf16.mxu0 0
  %197 = vmatpush2.bf16.msra.mxu0 %v160
  %198 = vmatprep.subr.bf16.mxu0 0
  %199 = vmatpush2.bf16.msra.mxu0 %v159
  %200 = vmatprep.subr.bf16.mxu0 0
  %201 = vmatpush2.bf16.msra.mxu0 %v158
  %202 = vmatprep.subr.bf16.mxu0 0
  %203 = vmatpush2.bf16.msra.mxu0 %v157
  %204 = vmatprep.subr.bf16.mxu0 0
  %205 = vmatpush2.bf16.msra.mxu0 %v156
  %206 = vmatprep.subr.bf16.mxu0 0
  %207 = vmatpush2.bf16.msra.mxu0 %v155
  %208 = vmatprep.subr.bf16.mxu0 0
  %209 = vmatpush2.bf16.msra.mxu0 %v154
  %210 = vmatprep.mubr.bf16.mxu0 %v79
  %211 = vmatmul.mubr.bf16.gmra.mxu0 %v78
  %v212 = vpop.f32.mrf.mxu0
  %v213 = vadd.f32 %v70, %v212
  %v214 = vpop.f32.mrf.mxu0
  %v215 = vpop.f32.mrf.mxu0
  %v216 = vadd.f32 %v70, %v215
  %v217 = vpop.f32.mrf.mxu0
  %218 = vdwg.mxu0
  %v219 = vmax.f32 %v213, 0.0
  %v220 = vmax.f32 %v216, 0.0
  %v221 = vpack.c.bf16 %v220, %v219
  %v222 = vld [vmem:[%s3] sm:$0xff]
  %v223 = vld [vmem:[%s3 + $0x8] sm:$0xff]
  %v224 = vld [vmem:[%s3 + $0x10] sm:$0xff]
  %v225 = vld [vmem:[%s3 + $0x18] sm:$0xff]
  %v226 = vld [vmem:[%s3 + $0x20] sm:$0xff]
  %v227 = vld [vmem:[%s3 + $0x28] sm:$0xff]
  %v228 = vld [vmem:[%s3 + $0x30] sm:$0xff]
  %v229 = vld [vmem:[%s3 + $0x38] sm:$0xff]
  %v230 = vld [vmem:[%s4] sm:$0x3]
  %v232 = vlaneseq
  %v233 = vshrl.u32 %v232, 7
  %v234 = vsub.s32 0, %v233
  %v235 = vrot.slane %v230, %v234
  %v236 = vlaneseq
  %v237 = vshrl.u32 %v236, 7
  %v238 = vsub.s32 1, %v237
  %v239 = vrot.slane %v230, %v238
  %v250 = vunpack.c.l.b16 %v222
  %v251 = vunpack.c.h.b16 %v222
  %v252 = vunpack.c.l.b16 %v223
  %v253 = vunpack.c.h.b16 %v223
  %v254 = vunpack.c.l.b16 %v224
  %v255 = vunpack.c.h.b16 %v224
  %v256 = vunpack.c.l.b16 %v225
  %v257 = vunpack.c.h.b16 %v225
  %v258 = vunpack.c.l.b16 %v226
  %v259 = vunpack.c.h.b16 %v226
  %v260 = vunpack.c.l.b16 %v227
  %v261 = vunpack.c.h.b16 %v227
  %v262 = vunpack.c.l.b16 %v228
  %v263 = vunpack.c.h.b16 %v228
  %v264 = vunpack.c.l.b16 %v229
  %v265 = vunpack.c.h.b16 %v229
  %v266 = vpack.c.b16 %v252, %v250
  %v267 = vpack.c.b16 %v253, %v251
  %v268 = vpack.c.b16 %v256, %v254
  %v269 = vpack.c.b16 %v257, %v255
  %v270 = vpack.c.b16 %v260, %v258
  %v271 = vpack.c.b16 %v261, %v259
  %v272 = vpack.c.b16 %v264, %v262
  %v273 = vpack.c.b16 %v265, %v263
  %vm282 = vcmask 523264
  %v284 = vsel %vm282, %v221, 0
  %286 = vmatprep.subr.bf16.mxu0 0
  %287 = vmatpush1.bf16.msra.mxu0 0
  %288 = vmatprep.subr.bf16.mxu0 0
  %289 = vmatpush1.bf16.msra.mxu0 0
  %290 = vmatprep.subr.bf16.mxu0 0
  %291 = vmatpush1.bf16.msra.mxu0 0
  %292 = vmatprep.subr.bf16.mxu0 0
  %293 = vmatpush1.bf16.msra.mxu0 0
  %294 = vmatprep.subr.bf16.mxu0 %v273
  %295 = vmatpush1.bf16.msra.mxu0 %v272
  %296 = vmatprep.subr.bf16.mxu0 %v271
  %297 = vmatpush1.bf16.msra.mxu0 %v270
  %298 = vmatprep.subr.bf16.mxu0 %v269
  %299 = vmatpush1.bf16.msra.mxu0 %v268
  %300 = vmatprep.subr.bf16.mxu0 %v267
  %301 = vmatpush1.bf16.msra.mxu0 %v266
  %302 = vmatprep.subr.bf16.mxu0 0
  %303 = vmatpush2.bf16.msra.mxu0 0
  %304 = vmatprep.subr.bf16.mxu0 0
  %305 = vmatpush2.bf16.msra.mxu0 0
  %306 = vmatprep.subr.bf16.mxu0 0
  %307 = vmatpush2.bf16.msra.mxu0 0
  %308 = vmatprep.subr.bf16.mxu0 0
  %309 = vmatpush2.bf16.msra.mxu0 0
  %310 = vmatprep.subr.bf16.mxu0 0
  %311 = vmatpush2.bf16.msra.mxu0 0
  %312 = vmatprep.subr.bf16.mxu0 0
  %313 = vmatpush2.bf16.msra.mxu0 0
  %314 = vmatprep.subr.bf16.mxu0 0
  %315 = vmatpush2.bf16.msra.mxu0 0
  %316 = vmatprep.subr.bf16.mxu0 0
  %317 = vmatpush2.bf16.msra.mxu0 0
  %318 = vmatprep.mubr.bf16.mxu0 0
  %319 = vmatmul.mubr.bf16.gmra.mxu0 %v284
  %v320 = vpop.f32.mrf.mxu0
  %v321 = vadd.f32 %v235, %v320
  %v322 = vpop.f32.mrf.mxu0
  %v323 = vadd.f32 %v239, %v322
  %v324 = vpop.f32.mrf.mxu0
  %v325 = vadd.f32 %v235, %v324
  %v326 = vpop.f32.mrf.mxu0
  %v327 = vadd.f32 %v239, %v326
  %328 = vdwg.mxu0
  %v329 = vadd.f32 %v29, %v321
  %v330 = vadd.f32 %v30, %v323
  %v331 = vadd.f32 %v31, %v325
  %v332 = vadd.f32 %v32, %v327
  %v333 = vadd.f32 %v329, %v330
  %334 = vadd.xlane.f32.xlu0 %v333
  %v335 = vpop.xlane.xlu0 %334
  %v336 = vadd.f32 %v331, %v332
  %337 = vadd.xlane.f32.xlu0 %v336
  %v338 = vpop.xlane.xlu0 %337
  %v339 = vrcp.pop 256.0
  %v340 = vmul.f32 %v335, %v339
  %v341 = vmul.f32 %v338, %v339
  %v342 = vsub.f32 %v329, %v340
  %v343 = vsub.f32 %v330, %v340
  %v344 = vsub.f32 %v331, %v341
  %v345 = vsub.f32 %v332, %v341
  %v346 = vmul.f32 %v342, %v342
  %v347 = vmul.f32 %v343, %v343
  %v348 = vmul.f32 %v344, %v344
  %v349 = vmul.f32 %v345, %v345
  %v350 = vadd.f32 %v346, %v347
  %351 = vadd.xlane.f32.xlu0 %v350
  %v352 = vpop.xlane.xlu0 %351
  %v353 = vadd.f32 %v348, %v349
  %354 = vadd.xlane.f32.xlu0 %v353
  %v355 = vpop.xlane.xlu0 %354
  %v356 = vmul.f32 %v352, %v339
  %v357 = vmul.f32 %v355, %v339
  %v358 = vadd.f32 %v356, 1e-05
  %v359 = vadd.f32 %v357, 1e-05
  %v360 = vrsqrt.pop %v358
  %v361 = vrsqrt.pop %v359
  %v362 = vmul.f32 %v342, %v360
  %v363 = vmul.f32 %v343, %v360
  %v364 = vmul.f32 %v344, %v361
  %v365 = vmul.f32 %v345, %v361
  %v366 = vld [vmem:[%s5] sm:$0x3]
  %v368 = vlaneseq
  %v369 = vshrl.u32 %v368, 7
  %v370 = vsub.s32 0, %v369
  %v371 = vrot.slane %v366, %v370
  %v372 = vlaneseq
  %v373 = vshrl.u32 %v372, 7
  %v374 = vsub.s32 1, %v373
  %v375 = vrot.slane %v366, %v374
  %v378 = vmul.f32 %v362, %v371
  %v379 = vmul.f32 %v363, %v375
  %v380 = vmul.f32 %v364, %v371
  %v381 = vmul.f32 %v365, %v375
  %v382 = vld [vmem:[%s6] sm:$0x3]
  %v384 = vlaneseq
  %v385 = vshrl.u32 %v384, 7
  %v386 = vsub.s32 0, %v385
  %v387 = vrot.slane %v382, %v386
  %v388 = vlaneseq
  %v389 = vshrl.u32 %v388, 7
  %v390 = vsub.s32 1, %v389
  %v391 = vrot.slane %v382, %v390
  %v394 = vadd.f32 %v378, %v387
  %v395 = vadd.f32 %v379, %v391
  %v396 = vadd.f32 %v380, %v387
  %v397 = vadd.f32 %v381, %v391
  %v398 = vpack.c.bf16 %v396, %v394
  %v399 = vpack.c.bf16 %v397, %v395
  %v402 = vunpack.c.l.b16 %v398
  %v403 = vunpack.c.l.b16 %v399
  %v404 = vunpack.c.h.b16 %v398
  %v405 = vunpack.c.h.b16 %v399
  %v406 = vpack.c.b16 %v403, %v402
  %v407 = vpack.c.b16 %v405, %v404
  %410 = vst [vmem:[%s7] sm:$0xff] %v406
  %411 = vst [vmem:[%s7 + $0x8] sm:$0xff] %v407
  // Predicated region
  $region30: #{discriminator_forward.8} parent=0 // pred_check
    _
  $region31: #{discriminator_forward.8} parent=0 // pred_check_branch
    %413 = sbr.rel (0) target = $region33
  $region32: #{discriminator_forward.8} parent=0 // pred_region
    _
  $region33: #{discriminator_forward.8} parent=0 // pred_fallthru
    _
  // Predicated region
  $region34: #{discriminator_forward.8} parent=0 // pred_check
    _
  $region35: #{discriminator_forward.8} parent=0 // pred_check_branch
    %415 = sbr.rel (0) target = $region37
  $region36: #{discriminator_forward.8} parent=0 // pred_region
    _
  $region37: #{discriminator_forward.8} parent=0 // pred_fallthru
    _

// kernel: discriminator_forward.11
$region0: #{discriminator_forward.11}
  #allocation0 [shape = 'u32[]', space=smem, size = 0x4, offset = 0x4, fixed_abs, tag = 'smem constant byte address 0x4 - core index']
  #allocation1 [shape = 'u32[144,128]{1,0:T(1,128)}', space=vmem, size = 0x12000, scoped, tag = 'internal scratch']
  %s0 = inlined_call_operand.vmem [shape: bf16[16,256], index: 0, kind: input, shape index: {}]
  %s1 = inlined_call_operand.vmem [shape: bf16[256,128], index: 1, kind: input, shape index: {}]
  %s2 = inlined_call_operand.vmem [shape: f32[1,128], index: 2, kind: input, shape index: {}]
  %s3 = inlined_call_operand.vmem [shape: f32[16,128], index: 3, kind: output, shape index: {}]
  %s4 = sld [smem:[#allocation0]]
  $region22: #{discriminator_forward.11} parent=0
    _
  %s6 = ssub.s32 1, %s4
  %s7 = scalar_select 0, %s6, %s4
  // Predicated region
  $region2: #{discriminator_forward.11} parent=0 // pred_check
    _
  $region3: #{discriminator_forward.11} parent=0 // pred_check_branch
    %9 = sbr.rel (0) target = $region5
  $region4: #{discriminator_forward.11} parent=0 // pred_region
    _
  $region5: #{discriminator_forward.11} parent=0 // pred_fallthru
    _
  // Predicated region
  $region6: #{discriminator_forward.11} parent=0 // pred_check
    _
  $region7: #{discriminator_forward.11} parent=0 // pred_check_branch
    %11 = sbr.rel (0) target = $region9
  $region8: #{discriminator_forward.11} parent=0 // pred_region
    _
  $region9: #{discriminator_forward.11} parent=0 // pred_fallthru
    _
  // Predicated region
  $region10: #{discriminator_forward.11} parent=0 // pred_check
    _
  $region11: #{discriminator_forward.11} parent=0 // pred_check_branch
    %13 = sbr.rel (0) target = $region13
  $region12: #{discriminator_forward.11} parent=0 // pred_region
    _
  $region13: #{discriminator_forward.11} parent=0 // pred_fallthru
    _
  %v15 = vld [vmem:[%s0] sm:$0xff]
  %v16 = vld [vmem:[%s0 + $0x8] sm:$0xff]
  %v17 = vld [vmem:[%s1] sm:$0xf]
  %v18 = vld [vmem:[%s1 + $0x4] sm:$0xf]
  %v19 = vld [vmem:[%s1 + $0x8] sm:$0xf]
  %v20 = vld [vmem:[%s1 + $0xc] sm:$0xf]
  %v21 = vld [vmem:[%s1 + $0x10] sm:$0xf]
  %v22 = vld [vmem:[%s1 + $0x14] sm:$0xf]
  %v23 = vld [vmem:[%s1 + $0x18] sm:$0xf]
  %v24 = vld [vmem:[%s1 + $0x1c] sm:$0xf]
  %v25 = vld [vmem:[%s1 + $0x20] sm:$0xf]
  %v26 = vld [vmem:[%s1 + $0x24] sm:$0xf]
  %v27 = vld [vmem:[%s1 + $0x28] sm:$0xf]
  %v28 = vld [vmem:[%s1 + $0x2c] sm:$0xf]
  %v29 = vld [vmem:[%s1 + $0x30] sm:$0xf]
  %v30 = vld [vmem:[%s1 + $0x34] sm:$0xf]
  %v31 = vld [vmem:[%s1 + $0x38] sm:$0xf]
  %v32 = vld [vmem:[%s1 + $0x3c] sm:$0xf]
  %v33 = vld [vmem:[%s1 + $0x40] sm:$0xf]
  %v34 = vld [vmem:[%s1 + $0x44] sm:$0xf]
  %v35 = vld [vmem:[%s1 + $0x48] sm:$0xf]
  %v36 = vld [vmem:[%s1 + $0x4c] sm:$0xf]
  %v37 = vld [vmem:[%s1 + $0x50] sm:$0xf]
  %v38 = vld [vmem:[%s1 + $0x54] sm:$0xf]
  %v39 = vld [vmem:[%s1 + $0x58] sm:$0xf]
  %v40 = vld [vmem:[%s1 + $0x5c] sm:$0xf]
  %v41 = vld [vmem:[%s1 + $0x60] sm:$0xf]
  %v42 = vld [vmem:[%s1 + $0x64] sm:$0xf]
  %v43 = vld [vmem:[%s1 + $0x68] sm:$0xf]
  %v44 = vld [vmem:[%s1 + $0x6c] sm:$0xf]
  %v45 = vld [vmem:[%s1 + $0x70] sm:$0xf]
  %v46 = vld [vmem:[%s1 + $0x74] sm:$0xf]
  %v47 = vld [vmem:[%s1 + $0x78] sm:$0xf]
  %v48 = vld [vmem:[%s1 + $0x7c] sm:$0xf]
  %v49 = vld [vmem:[%s2] sm:$0x1]
  %v51 = vlaneseq
  %v52 = vshrl.u32 %v51, 7
  %v53 = vsub.s32 0, %v52
  %v54 = vrot.slane %v49, %v53
  %v58 = vunpack.c.l.b16 %v15
  %v59 = vunpack.c.h.b16 %v15
  %v60 = vunpack.c.l.b16 %v16
  %v61 = vunpack.c.h.b16 %v16
  %v62 = vpack.c.b16 %v60, %v58
  %v63 = vpack.c.b16 %v61, %v59
  %v98 = vunpack.c.l.b16 %v17
  %v99 = vunpack.c.l.b16 %v18
  %v100 = vunpack.c.l.b16 %v19
  %v101 = vunpack.c.l.b16 %v20
  %v102 = vunpack.c.l.b16 %v21
  %v103 = vunpack.c.l.b16 %v22
  %v104 = vunpack.c.l.b16 %v23
  %v105 = vunpack.c.l.b16 %v24
  %v106 = vunpack.c.l.b16 %v25
  %v107 = vunpack.c.l.b16 %v26
  %v108 = vunpack.c.l.b16 %v27
  %v109 = vunpack.c.l.b16 %v28
  %v110 = vunpack.c.l.b16 %v29
  %v111 = vunpack.c.l.b16 %v30
  %v112 = vunpack.c.l.b16 %v31
  %v113 = vunpack.c.l.b16 %v32
  %v114 = vunpack.c.l.b16 %v33
  %v115 = vunpack.c.l.b16 %v34
  %v116 = vunpack.c.l.b16 %v35
  %v117 = vunpack.c.l.b16 %v36
  %v118 = vunpack.c.l.b16 %v37
  %v119 = vunpack.c.l.b16 %v38
  %v120 = vunpack.c.l.b16 %v39
  %v121 = vunpack.c.l.b16 %v40
  %v122 = vunpack.c.l.b16 %v41
  %v123 = vunpack.c.l.b16 %v42
  %v124 = vunpack.c.l.b16 %v43
  %v125 = vunpack.c.l.b16 %v44
  %v126 = vunpack.c.l.b16 %v45
  %v127 = vunpack.c.l.b16 %v46
  %v128 = vunpack.c.l.b16 %v47
  %v129 = vunpack.c.l.b16 %v48
  %v130 = vpack.c.b16 %v99, %v98
  %v131 = vpack.c.b16 %v101, %v100
  %v132 = vpack.c.b16 %v103, %v102
  %v133 = vpack.c.b16 %v105, %v104
  %v134 = vpack.c.b16 %v107, %v106
  %v135 = vpack.c.b16 %v109, %v108
  %v136 = vpack.c.b16 %v111, %v110
  %v137 = vpack.c.b16 %v113, %v112
  %v138 = vpack.c.b16 %v115, %v114
  %v139 = vpack.c.b16 %v117, %v116
  %v140 = vpack.c.b16 %v119, %v118
  %v141 = vpack.c.b16 %v121, %v120
  %v142 = vpack.c.b16 %v123, %v122
  %v143 = vpack.c.b16 %v125, %v124
  %v144 = vpack.c.b16 %v127, %v126
  %v145 = vpack.c.b16 %v129, %v128
  %162 = vmatprep.subr.bf16.mxu0 0
  %163 = vmatpush1.bf16.msra.mxu0 %v137
  %164 = vmatprep.subr.bf16.mxu0 0
  %165 = vmatpush1.bf16.msra.mxu0 %v136
  %166 = vmatprep.subr.bf16.mxu0 0
  %167 = vmatpush1.bf16.msra.mxu0 %v135
  %168 = vmatprep.subr.bf16.mxu0 0
  %169 = vmatpush1.bf16.msra.mxu0 %v134
  %170 = vmatprep.subr.bf16.mxu0 0
  %171 = vmatpush1.bf16.msra.mxu0 %v133
  %172 = vmatprep.subr.bf16.mxu0 0
  %173 = vmatpush1.bf16.msra.mxu0 %v132
  %174 = vmatprep.subr.bf16.mxu0 0
  %175 = vmatpush1.bf16.msra.mxu0 %v131
  %176 = vmatprep.subr.bf16.mxu0 0
  %177 = vmatpush1.bf16.msra.mxu0 %v130
  %178 = vmatprep.subr.bf16.mxu0 0
  %179 = vmatpush2.bf16.msra.mxu0 %v145
  %180 = vmatprep.subr.bf16.mxu0 0
  %181 = vmatpush2.bf16.msra.mxu0 %v144
  %182 = vmatprep.subr.bf16.mxu0 0
  %183 = vmatpush2.bf16.msra.mxu0 %v143
  %184 = vmatprep.subr.bf16.mxu0 0
  %185 = vmatpush2.bf16.msra.mxu0 %v142
  %186 = vmatprep.subr.bf16.mxu0 0
  %187 = vmatpush2.bf16.msra.mxu0 %v141
  %188 = vmatprep.subr.bf16.mxu0 0
  %189 = vmatpush2.bf16.msra.mxu0 %v140
  %190 = vmatprep.subr.bf16.mxu0 0
  %191 = vmatpush2.bf16.msra.mxu0 %v139
  %192 = vmatprep.subr.bf16.mxu0 0
  %193 = vmatpush2.bf16.msra.mxu0 %v138
  %194 = vmatprep.mubr.bf16.mxu0 %v63
  %195 = vmatmul.mubr.bf16.gmra.mxu0 %v62
  %v196 = vpop.f32.mrf.mxu0
  %v197 = vadd.f32 %v54, %v196
  %v198 = vpop.f32.mrf.mxu0
  %v199 = vpop.f32.mrf.mxu0
  %v200 = vadd.f32 %v54, %v199
  %v201 = vpop.f32.mrf.mxu0
  %202 = vdwg.mxu0
  %v203 = vlaneseq
  %v204 = vand.u32 %v203, 127
  %vm205 = vcmp.lt.s32.totalorder %v204, 4
  %v206 = vxor.u32 %v197, 2147483648
  %v207 = vxor.u32 %v200, 2147483648
  %v208 = vmul.f32 %v206, 1.442695
  %v209 = vpow.pop %v208
  %v210 = vmul.f32 %v207, 1.442695
  %v211 = vpow.pop %v210
  %v212 = vadd.f32 %v209, 1.0
  %v213 = vadd.f32 %v211, 1.0
  %v214 = vrcp.pop %v212
  %v215 = vmul.f32 1.0, %v214
  %v216 = vrcp.pop %v213
  %v217 = vmul.f32 1.0, %v216
  %v218 = vsel %vm205, %v215, %v197
  %v219 = vsel %vm205, %v217, %v200
  %220 = vst [vmem:[%s3] sm:$0xff] %v218
  %221 = vst [vmem:[%s3 + $0x8] sm:$0xff] %v219
  // Predicated region
  $region14: #{discriminator_forward.11} parent=0 // pred_check
    _
  $region15: #{discriminator_forward.11} parent=0 // pred_check_branch
    %223 = sbr.rel (0) target = $region17
  $region16: #{discriminator_forward.11} parent=0 // pred_region
    _
  $region17: #{discriminator_forward.11} parent=0 // pred_fallthru
    _
  // Predicated region
  $region18: #{discriminator_forward.11} parent=0 // pred_check
    _
  $region19: #{discriminator_forward.11} parent=0 // pred_check_branch
    %225 = sbr.rel (0) target = $region21
  $region20: #{discriminator_forward.11} parent=0 // pred_region
    _
  $region21: #{discriminator_forward.11} parent=0 // pred_fallthru
    _

// kernel: discriminator_forward.9
$region0: #{discriminator_forward.9}
  #allocation0 [shape = 'u32[]', space=smem, size = 0x4, offset = 0x4, fixed_abs, tag = 'smem constant byte address 0x4 - core index']
  #allocation1 [shape = 'u32[144,128]{1,0:T(1,128)}', space=vmem, size = 0x12000, scoped, tag = 'internal scratch']
  %s0 = inlined_call_operand.vmem [shape: bf16[2,8,256], index: 0, kind: input, shape index: {}]
  %s1 = inlined_call_operand.vmem [shape: bf16[256,768], index: 1, kind: input, shape index: {}]
  %s2 = inlined_call_operand.vmem [shape: f32[1,768], index: 2, kind: input, shape index: {}]
  %s3 = inlined_call_operand.vmem [shape: bf16[256,256], index: 3, kind: input, shape index: {}]
  %s4 = inlined_call_operand.vmem [shape: f32[1,256], index: 4, kind: input, shape index: {}]
  %s5 = inlined_call_operand.vmem [shape: f32[1,256], index: 5, kind: input, shape index: {}]
  %s6 = inlined_call_operand.vmem [shape: f32[1,256], index: 6, kind: input, shape index: {}]
  %s7 = inlined_call_operand.vmem [shape: bf16[2,8,256], index: 7, kind: output, shape index: {}]
  %s8 = sld [smem:[#allocation0]]
  $region61: #{discriminator_forward.9} parent=0
    _
  %s10 = ssub.s32 1, %s8
  %s11 = scalar_select 0, %s10, %s8
  loop: start=0, step=1, limit=4
  $region2: #{discriminator_forward.9} parent=0 // loop_pre_header
    _
  $region3: #{discriminator_forward.9} parent=0 // loop_header
    %s13 = sphi 0, %s17
    %p14 = scmp.ge.s32.totalorder %s13, 4
    %s23 = sphi 0, %s25
    %s26 = sphi 0, %s23
    %s27 = sphi 0, %s26
    %s43 = sphi 0, %s27
    %s47 = sphi 0, %s47
    %s49 = sphi 0, %s47
    %s50 = sphi 0, %s49
    %s64 = sphi 0, %s50
    %s68 = sphi 0, %s68
    %s70 = sphi 0, %s68
    %s71 = sphi 0, %s70
    %s85 = sphi 0, %s71
    %s89 = sphi 0, %s89
    %s91 = sphi 0, %s89
    %s92 = sphi 0, %s91
    %s106 = sphi 0, %s92
    %s110 = sphi 0, %s110
    %s112 = sphi 0, %s110
    %s113 = sphi 0, %s112
    %s127 = sphi 0, %s113
    %s131 = sphi 0, %s131
    %s133 = sphi 0, %s131
    %s134 = sphi 0, %s133
    %s148 = sphi 0, %s134
    %s152 = sphi 0, %s152
    %s154 = sphi 0, %s152
    %s155 = sphi 0, %s154
    %s169 = sphi 0, %s155
    %s175 = sphi 0, %s177
    %s178 = sphi 0, %s175
    %s179 = sphi 0, %s178
    %s195 = sphi 0, %s179
  $region4: #{discriminator_forward.9} parent=0 // loop_header_branch
    %16 = sbr.rel (%p14) target = $region8
  $region5: #{discriminator_forward.9} parent=0 // loop_body
    %s18 = ssub.s32 %s13, 1
    %s19 = ssub.s32 %s13, 2
    %s20 = sadd.s32 %s13, 1
    %s21 = ssub.s32 %s13, %s20
    %p22 = scmp.eq.s32.totalorder %s21, 0
    %s24 = sadd.s32 %s23, 1
    %s25 = scalar_select %p22, %s23, %s24
    %p28 = pneg %p22
    %p29 = scmp.eq.s32.totalorder %s13, 1
    %p30 = por %p28, %p29
    %p31 = scmp.ne.s32.totalorder %s23, %s26
    %p32 = scmp.eq.s32.totalorder %s13, 0
    %p33 = por %p31, %p32
    %p34 = scmp.ne.s32.totalorder %s23, %s26
    %p35 = scmp.eq.s32.totalorder %s18, 1
    %p36 = por %p34, %p35
    %p37 = scmp.ne.s32.totalorder %s26, %s27
    %p38 = scmp.eq.s32.totalorder %s18, 0
    %p39 = por %p37, %p38
    %p40 = scmp.ne.s32.totalorder %s26, %s27
    %p41 = scmp.eq.s32.totalorder %s19, 1
    %p42 = por %p40, %p41
    %p44 = scmp.ne.s32.totalorder %s27, %s43
    %p45 = scmp.eq.s32.totalorder %s19, 0
    %p46 = por %p44, %p45
    %s48 = sadd.s32 %s47, 1
    %p51 = scmp.eq.s32.totalorder %s13, 1
    %p52 = scmp.ne.s32.totalorder %s47, %s49
    %p53 = scmp.eq.s32.totalorder %s13, 0
    %p54 = por %p52, %p53
    %p55 = scmp.ne.s32.totalorder %s47, %s49
    %p56 = scmp.eq.s32.totalorder %s18, 1
    %p57 = por %p55, %p56
    %p58 = scmp.ne.s32.totalorder %s49, %s50
    %p59 = scmp.eq.s32.totalorder %s18, 0
    %p60 = por %p58, %p59
    %p61 = scmp.ne.s32.totalorder %s49, %s50
    %p62 = scmp.eq.s32.totalorder %s19, 1
    %p63 = por %p61, %p62
    %p65 = scmp.ne.s32.totalorder %s50, %s64
    %p66 = scmp.eq.s32.totalorder %s19, 0
    %p67 = por %p65, %p66
    %s69 = sadd.s32 %s68, 1
    %p72 = scmp.eq.s32.totalorder %s13, 1
    %p73 = scmp.ne.s32.totalorder %s68, %s70
    %p74 = scmp.eq.s32.totalorder %s13, 0
    %p75 = por %p73, %p74
    %p76 = scmp.ne.s32.totalorder %s68, %s70
    %p77 = scmp.eq.s32.totalorder %s18, 1
    %p78 = por %p76, %p77
    %p79 = scmp.ne.s32.totalorder %s70, %s71
    %p80 = scmp.eq.s32.totalorder %s18, 0
    %p81 = por %p79, %p80
    %p82 = scmp.ne.s32.totalorder %s70, %s71
    %p83 = scmp.eq.s32.totalorder %s19, 1
    %p84 = por %p82, %p83
    %p86 = scmp.ne.s32.totalorder %s71, %s85
    %p87 = scmp.eq.s32.totalorder %s19, 0
    %p88 = por %p86, %p87
    %s90 = sadd.s32 %s89, 1
    %p93 = scmp.eq.s32.totalorder %s13, 1
    %p94 = scmp.ne.s32.totalorder %s89, %s91
    %p95 = scmp.eq.s32.totalorder %s13, 0
    %p96 = por %p94, %p95
    %p97 = scmp.ne.s32.totalorder %s89, %s91
    %p98 = scmp.eq.s32.totalorder %s18, 1
    %p99 = por %p97, %p98
    %p100 = scmp.ne.s32.totalorder %s91, %s92
    %p101 = scmp.eq.s32.totalorder %s18, 0
    %p102 = por %p100, %p101
    %p103 = scmp.ne.s32.totalorder %s91, %s92
    %p104 = scmp.eq.s32.totalorder %s19, 1
    %p105 = por %p103, %p104
    %p107 = scmp.ne.s32.totalorder %s92, %s106
    %p108 = scmp.eq.s32.totalorder %s19, 0
    %p109 = por %p107, %p108
    %s111 = sadd.s32 %s110, 1
    %p114 = scmp.eq.s32.totalorder %s13, 1
    %p115 = scmp.ne.s32.totalorder %s110, %s112
    %p116 = scmp.eq.s32.totalorder %s13, 0
    %p117 = por %p115, %p116
    %p118 = scmp.ne.s32.totalorder %s110, %s112
    %p119 = scmp.eq.s32.totalorder %s18, 1
    %p120 = por %p118, %p119
    %p121 = scmp.ne.s32.totalorder %s112, %s113
    %p122 = scmp.eq.s32.totalorder %s18, 0
    %p123 = por %p121, %p122
    %p124 = scmp.ne.s32.totalorder %s112, %s113
    %p125 = scmp.eq.s32.totalorder %s19, 1
    %p126 = por %p124, %p125
    %p128 = scmp.ne.s32.totalorder %s113, %s127
    %p129 = scmp.eq.s32.totalorder %s19, 0
    %p130 = por %p128, %p129
    %s132 = sadd.s32 %s131, 1
    %p135 = scmp.eq.s32.totalorder %s13, 1
    %p136 = scmp.ne.s32.totalorder %s131, %s133
    %p137 = scmp.eq.s32.totalorder %s13, 0
    %p138 = por %p136, %p137
    %p139 = scmp.ne.s32.totalorder %s131, %s133
    %p140 = scmp.eq.s32.totalorder %s18, 1
    %p141 = por %p139, %p140
    %p142 = scmp.ne.s32.totalorder %s133, %s134
    %p143 = scmp.eq.s32.totalorder %s18, 0
    %p144 = por %p142, %p143
    %p145 = scmp.ne.s32.totalorder %s133, %s134
    %p146 = scmp.eq.s32.totalorder %s19, 1
    %p147 = por %p145, %p146
    %p149 = scmp.ne.s32.totalorder %s134, %s148
    %p150 = scmp.eq.s32.totalorder %s19, 0
    %p151 = por %p149, %p150
    %s153 = sadd.s32 %s152, 1
    %p156 = scmp.eq.s32.totalorder %s13, 1
    %p157 = scmp.ne.s32.totalorder %s152, %s154
    %p158 = scmp.eq.s32.totalorder %s13, 0
    %p159 = por %p157, %p158
    %p160 = scmp.ne.s32.totalorder %s152, %s154
    %p161 = scmp.eq.s32.totalorder %s18, 1
    %p162 = por %p160, %p161
    %p163 = scmp.ne.s32.totalorder %s154, %s155
    %p164 = scmp.eq.s32.totalorder %s18, 0
    %p165 = por %p163, %p164
    %p166 = scmp.ne.s32.totalorder %s154, %s155
    %p167 = scmp.eq.s32.totalorder %s19, 1
    %p168 = por %p166, %p167
    %p170 = scmp.ne.s32.totalorder %s155, %s169
    %p171 = scmp.eq.s32.totalorder %s19, 0
    %p172 = por %p170, %p171
    %s173 = ssub.s32 %s13, %s20
    %p174 = scmp.eq.s32.totalorder %s173, 0
    %s176 = sadd.s32 %s175, 1
    %s177 = scalar_select %p174, %s175, %s176
    %p180 = pneg %p174
    %p181 = scmp.eq.s32.totalorder %s13, 1
    %p182 = por %p180, %p181
    %p183 = scmp.ne.s32.totalorder %s175, %s178
    %p184 = scmp.eq.s32.totalorder %s13, 0
    %p185 = por %p183, %p184
    %p186 = scmp.ne.s32.totalorder %s175, %s178
    %p187 = scmp.eq.s32.totalorder %s18, 1
    %p188 = por %p186, %p187
    %p189 = scmp.ne.s32.totalorder %s178, %s179
    %p190 = scmp.eq.s32.totalorder %s18, 0
    %p191 = por %p189, %p190
    %p192 = scmp.ne.s32.totalorder %s178, %s179
    %p193 = scmp.eq.s32.totalorder %s19, 1
    %p194 = por %p192, %p193
    %p196 = scmp.ne.s32.totalorder %s179, %s195
    %p197 = scmp.eq.s32.totalorder %s19, 0
    %p198 = por %p196, %p197
    %p199 = scmp.le.s32.totalorder 1, %s13
    %p200 = scmp.lt.s32.totalorder %s13, 3
    %p201 = pnand %p199, %p200
    %p202 = pneg %p201
    // Predicated region
    $region9: #{discriminator_forward.9} parent=5 // pred_check
      _
    $region10: #{discriminator_forward.9} parent=5 // pred_check_branch
      %204 = sbr.rel (%p201) target = $region12
    $region11: #{discriminator_forward.9} parent=5 // pred_region
      %s205 = ssub.s32 %s13, 1
      // Predicated region
      $region13: #{discriminator_forward.9} parent=11 // pred_check
        %p206 = pneg %p60
      $region14: #{discriminator_forward.9} parent=11 // pred_check_branch
        %208 = sbr.rel (%p206) target = $region16
      $region15: #{discriminator_forward.9} parent=11 // pred_region
        _
      $region16: #{discriminator_forward.9} parent=11 // pred_fallthru
        _
      // Predicated region
      $region17: #{discriminator_forward.9} parent=11 // pred_check
        %p209 = pneg %p81
      $region18: #{discriminator_forward.9} parent=11 // pred_check_branch
        %211 = sbr.rel (%p209) target = $region20
      $region19: #{discriminator_forward.9} parent=11 // pred_region
        _
      $region20: #{discriminator_forward.9} parent=11 // pred_fallthru
        _
      // Predicated region
      $region21: #{discriminator_forward.9} parent=11 // pred_check
        %p212 = pneg %p102
      $region22: #{discriminator_forward.9} parent=11 // pred_check_branch
        %214 = sbr.rel (%p212) target = $region24
      $region23: #{discriminator_forward.9} parent=11 // pred_region
        _
      $region24: #{discriminator_forward.9} parent=11 // pred_fallthru
        _
      // Predicated region
      $region25: #{discriminator_forward.9} parent=11 // pred_check
        %p215 = pneg %p123
      $region26: #{discriminator_forward.9} parent=11 // pred_check_branch
        %217 = sbr.rel (%p215) target = $region28
      $region27: #{discriminator_forward.9} parent=11 // pred_region
        _
      $region28: #{discriminator_forward.9} parent=11 // pred_fallthru
        _
      // Predicated region
      $region29: #{discriminator_forward.9} parent=11 // pred_check
        %p218 = pneg %p144
      $region30: #{discriminator_forward.9} parent=11 // pred_check_branch
        %220 = sbr.rel (%p218) target = $region32
      $region31: #{discriminator_forward.9} parent=11 // pred_region
        _
      $region32: #{discriminator_forward.9} parent=11 // pred_fallthru
        _
      // Predicated region
      $region33: #{discriminator_forward.9} parent=11 // pred_check
        %p221 = pneg %p165
      $region34: #{discriminator_forward.9} parent=11 // pred_check_branch
        %223 = sbr.rel (%p221) target = $region36
      $region35: #{discriminator_forward.9} parent=11 // pred_region
        _
      $region36: #{discriminator_forward.9} parent=11 // pred_fallthru
        _
    $region12: #{discriminator_forward.9} parent=5 // pred_fallthru
      _
    %p224 = scmp.lt.s32.totalorder %s13, 2
    // Predicated region
    $region37: #{discriminator_forward.9} parent=5 // pred_check
      %p225 = pneg %p224
    $region38: #{discriminator_forward.9} parent=5 // pred_check_branch
      %227 = sbr.rel (%p225) target = $region40
    $region39: #{discriminator_forward.9} parent=5 // pred_region
      // Predicated region
      $region41: #{discriminator_forward.9} parent=39 // pred_check
        %p228 = pneg %p33
      $region42: #{discriminator_forward.9} parent=39 // pred_check_branch
        %230 = sbr.rel (%p228) target = $region44
      $region43: #{discriminator_forward.9} parent=39 // pred_region
        %p231 = scmp.lt.s32.totalorder %s13, 1
        %s232 = scalar_select %p231, %s13, 1
        %s233 = smul.addr %s232, 2
        %s234 = smul.addr %s233, 4
        %s235 = scalar_lea.vmem %s0, %s234
      $region44: #{discriminator_forward.9} parent=39 // pred_fallthru
        _
    $region40: #{discriminator_forward.9} parent=5 // pred_fallthru
      _
    %p236 = scmp.le.s32.totalorder 1, %s13
    %p237 = scmp.lt.s32.totalorder %s13, 3
    %p238 = pnand %p236, %p237
    %p239 = pneg %p238
    // Predicated region
    $region45: #{discriminator_forward.9} parent=5 // pred_check
      _
    $region46: #{discriminator_forward.9} parent=5 // pred_check_branch
      %241 = sbr.rel (%p238) target = $region48
    $region47: #{discriminator_forward.9} parent=5 // pred_region
      %s242 = ssub.s32 %s13, 1
      %p243 = scmp.lt.s32.totalorder %s18, 1
      %s244 = scalar_select %p243, %s18, 1
      %s245 = smul.addr %s244, 2
      %s246 = smul.addr %s245, 4
      %s247 = scalar_lea.vmem %s0, %s246
      %p248 = pneg %p39
      %p249 = pneg %p36
      %p250 = pneg %p60
      %p251 = pneg %p57
      %p252 = pneg %p81
      %p253 = pneg %p78
      %p254 = pneg %p102
      %p255 = pneg %p99
      %p256 = pneg %p123
      %p257 = pneg %p120
      %p258 = pneg %p144
      %p259 = pneg %p141
      %p260 = pneg %p165
      %p261 = pneg %p162
      %p262 = pneg %p191
      %p263 = pneg %p188
      %p264 = scmp.lt.s32.totalorder %s18, 1
      %s265 = scalar_select %p264, %s18, 1
      %s266 = smul.addr %s265, 2
      %s267 = smul.addr %s266, 4
      %s268 = scalar_lea.vmem %s7, %s267
      %p269 = scmp.lt.s32.totalorder %s18, 1
      %s270 = scalar_select %p269, %s18, 1
      %s271 = smul.addr %s270, 2
      %s272 = smul.addr %s271, 4
      %s273 = scalar_lea.vmem %s0, %s272
      %p274 = scmp.lt.s32.totalorder %s18, 1
      %s275 = scalar_select %p274, %s18, 1
      %s276 = smul.addr %s275, 2
      %s277 = smul.addr %s276, 4
      %s278 = scalar_lea.vmem %s7, %s277
      %v280 = vld [vmem:[%s273] sm:$0xff]
      %v281 = vunpack.c.l.bf16 %v280
      %v282 = vunpack.c.h.bf16 %v280
      %v283 = vld [vmem:[%s1] sm:$0xff]
      %v284 = vld [vmem:[%s1 + $0x8] sm:$0xff]
      %v285 = vld [vmem:[%s1 + $0x10] sm:$0xff]
      %v286 = vld [vmem:[%s1 + $0x18] sm:$0xff]
      %v287 = vld [vmem:[%s1 + $0x20] sm:$0xff]
      %v288 = vld [vmem:[%s1 + $0x28] sm:$0xff]
      %v289 = vld [vmem:[%s1 + $0x30] sm:$0xff]
      %v290 = vld [vmem:[%s1 + $0x38] sm:$0xff]
      %v291 = vld [vmem:[%s1 + $0x40] sm:$0xff]
      %v292 = vld [vmem:[%s1 + $0x48] sm:$0xff]
      %v293 = vld [vmem:[%s1 + $0x50] sm:$0xff]
      %v294 = vld [vmem:[%s1 + $0x58] sm:$0xff]
      %v295 = vld [vmem:[%s1 + $0x60] sm:$0xff]
      %v296 = vld [vmem:[%s1 + $0x68] sm:$0xff]
      %v297 = vld [vmem:[%s1 + $0x70] sm:$0xff]
      %v298 = vld [vmem:[%s1 + $0x78] sm:$0xff]
      %v299 = vld [vmem:[%s1 + $0x80] sm:$0xff]
      %v300 = vld [vmem:[%s1 + $0x88] sm:$0xff]
      %v301 = vld [vmem:[%s1 + $0x90] sm:$0xff]
      %v302 = vld [vmem:[%s1 + $0x98] sm:$0xff]
      %v303 = vld [vmem:[%s1 + $0xa0] sm:$0xff]
      %v304 = vld [vmem:[%s1 + $0xa8] sm:$0xff]
      %v305 = vld [vmem:[%s1 + $0xb0] sm:$0xff]
      %v306 = vld [vmem:[%s1 + $0xb8] sm:$0xff]
      %v307 = vld [vmem:[%s1 + $0xc0] sm:$0xff]
      %v308 = vld [vmem:[%s1 + $0xc8] sm:$0xff]
      %v309 = vld [vmem:[%s1 + $0xd0] sm:$0xff]
      %v310 = vld [vmem:[%s1 + $0xd8] sm:$0xff]
      %v311 = vld [vmem:[%s1 + $0xe0] sm:$0xff]
      %v312 = vld [vmem:[%s1 + $0xe8] sm:$0xff]
      %v313 = vld [vmem:[%s1 + $0xf0] sm:$0xff]
      %v314 = vld [vmem:[%s1 + $0xf8] sm:$0xff]
      %v315 = vld [vmem:[%s1 + $0x100] sm:$0xff]
      %v316 = vld [vmem:[%s1 + $0x108] sm:$0xff]
      %v317 = vld [vmem:[%s1 + $0x110] sm:$0xff]
      %v318 = vld [vmem:[%s1 + $0x118] sm:$0xff]
      %v319 = vld [vmem:[%s1 + $0x120] sm:$0xff]
      %v320 = vld [vmem:[%s1 + $0x128] sm:$0xff]
      %v321 = vld [vmem:[%s1 + $0x130] sm:$0xff]
      %v322 = vld [vmem:[%s1 + $0x138] sm:$0xff]
      %v323 = vld [vmem:[%s1 + $0x140] sm:$0xff]
      %v324 = vld [vmem:[%s1 + $0x148] sm:$0xff]
      %v325 = vld [vmem:[%s1 + $0x150] sm:$0xff]
      %v326 = vld [vmem:[%s1 + $0x158] sm:$0xff]
      %v327 = vld [vmem:[%s1 + $0x160] sm:$0xff]
      %v328 = vld [vmem:[%s1 + $0x168] sm:$0xff]
      %v329 = vld [vmem:[%s1 + $0x170] sm:$0xff]
      %v330 = vld [vmem:[%s1 + $0x178] sm:$0xff]
      %v331 = vld [vmem:[%s1 + $0x180] sm:$0xff]
      %v332 = vld [vmem:[%s1 + $0x188] sm:$0xff]
      %v333 = vld [vmem:[%s1 + $0x190] sm:$0xff]
      %v334 = vld [vmem:[%s1 + $0x198] sm:$0xff]
      %v335 = vld [vmem:[%s1 + $0x1a0] sm:$0xff]
      %v336 = vld [vmem:[%s1 + $0x1a8] sm:$0xff]
      %v337 = vld [vmem:[%s1 + $0x1b0] sm:$0xff]
      %v338 = vld [vmem:[%s1 + $0x1b8] sm:$0xff]
      %v339 = vld [vmem:[%s1 + $0x1c0] sm:$0xff]
      %v340 = vld [vmem:[%s1 + $0x1c8] sm:$0xff]
      %v341 = vld [vmem:[%s1 + $0x1d0] sm:$0xff]
      %v342 = vld [vmem:[%s1 + $0x1d8] sm:$0xff]
      %v343 = vld [vmem:[%s1 + $0x1e0] sm:$0xff]
      %v344 = vld [vmem:[%s1 + $0x1e8] sm:$0xff]
      %v345 = vld [vmem:[%s1 + $0x1f0] sm:$0xff]
      %v346 = vld [vmem:[%s1 + $0x1f8] sm:$0xff]
      %v347 = vld [vmem:[%s1 + $0x200] sm:$0xff]
      %v348 = vld [vmem:[%s1 + $0x208] sm:$0xff]
      %v349 = vld [vmem:[%s1 + $0x210] sm:$0xff]
      %v350 = vld [vmem:[%s1 + $0x218] sm:$0xff]
      %v351 = vld [vmem:[%s1 + $0x220] sm:$0xff]
      %v352 = vld [vmem:[%s1 + $0x228] sm:$0xff]
      %v353 = vld [vmem:[%s1 + $0x230] sm:$0xff]
      %v354 = vld [vmem:[%s1 + $0x238] sm:$0xff]
      %v355 = vld [vmem:[%s1 + $0x240] sm:$0xff]
      %v356 = vld [vmem:[%s1 + $0x248] sm:$0xff]
      %v357 = vld [vmem:[%s1 + $0x250] sm:$0xff]
      %v358 = vld [vmem:[%s1 + $0x258] sm:$0xff]
      %v359 = vld [vmem:[%s1 + $0x260] sm:$0xff]
      %v360 = vld [vmem:[%s1 + $0x268] sm:$0xff]
      %v361 = vld [vmem:[%s1 + $0x270] sm:$0xff]
      %v362 = vld [vmem:[%s1 + $0x278] sm:$0xff]
      %v363 = vld [vmem:[%s1 + $0x280] sm:$0xff]
      %v364 = vld [vmem:[%s1 + $0x288] sm:$0xff]
      %v365 = vld [vmem:[%s1 + $0x290] sm:$0xff]
      %v366 = vld [vmem:[%s1 + $0x298] sm:$0xff]
      %v367 = vld [vmem:[%s1 + $0x2a0] sm:$0xff]
      %v368 = vld [vmem:[%s1 + $0x2a8] sm:$0xff]
      %v369 = vld [vmem:[%s1 + $0x2b0] sm:$0xff]
      %v370 = vld [vmem:[%s1 + $0x2b8] sm:$0xff]
      %v371 = vld [vmem:[%s1 + $0x2c0] sm:$0xff]
      %v372 = vld [vmem:[%s1 + $0x2c8] sm:$0xff]
      %v373 = vld [vmem:[%s1 + $0x2d0] sm:$0xff]
      %v374 = vld [vmem:[%s1 + $0x2d8] sm:$0xff]
      %v375 = vld [vmem:[%s1 + $0x2e0] sm:$0xff]
      %v376 = vld [vmem:[%s1 + $0x2e8] sm:$0xff]
      %v377 = vld [vmem:[%s1 + $0x2f0] sm:$0xff]
      %v378 = vld [vmem:[%s1 + $0x2f8] sm:$0xff]
      %v379 = vld [vmem:[%s2] sm:$0x3f]
      %v381 = vlaneseq
      %v382 = vshrl.u32 %v381, 7
      %v383 = vsub.s32 0, %v382
      %v384 = vrot.slane %v379, %v383
      %v385 = vlaneseq
      %v386 = vshrl.u32 %v385, 7
      %v387 = vsub.s32 1, %v386
      %v388 = vrot.slane %v379, %v387
      %v389 = vlaneseq
      %v390 = vshrl.u32 %v389, 7
      %v391 = vsub.s32 2, %v390
      %v392 = vrot.slane %v379, %v391
      %v393 = vlaneseq
      %v394 = vshrl.u32 %v393, 7
      %v395 = vsub.s32 3, %v394
      %v396 = vrot.slane %v379, %v395
      %v397 = vlaneseq
      %v398 = vshrl.u32 %v397, 7
      %v399 = vsub.s32 4, %v398
      %v400 = vrot.slane %v379, %v399
      %v401 = vlaneseq
      %v402 = vshrl.u32 %v401, 7
      %v403 = vsub.s32 5, %v402
      %v404 = vrot.slane %v379, %v403
      %v412 = vunpack.c.l.b16 %v280
      %v413 = vunpack.c.h.b16 %v280
      %v414 = vpack.c.b16 %v412, %v412
      %v415 = vpack.c.b16 %v413, %v413
      %v514 = vunpack.c.l.b16 %v283
      %v515 = vunpack.c.h.b16 %v283
      %v516 = vunpack.c.l.b16 %v284
      %v517 = vunpack.c.h.b16 %v284
      %v518 = vunpack.c.l.b16 %v285
      %v519 = vunpack.c.h.b16 %v285
      %v520 = vunpack.c.l.b16 %v286
      %v521 = vunpack.c.h.b16 %v286
      %v522 = vunpack.c.l.b16 %v287
      %v523 = vunpack.c.h.b16 %v287
      %v524 = vunpack.c.l.b16 %v288
      %v525 = vunpack.c.h.b16 %v288
      %v526 = vunpack.c.l.b16 %v289
      %v527 = vunpack.c.h.b16 %v289
      %v528 = vunpack.c.l.b16 %v290
      %v529 = vunpack.c.h.b16 %v290
      %v530 = vunpack.c.l.b16 %v291
      %v531 = vunpack.c.h.b16 %v291
      %v532 = vunpack.c.l.b16 %v292
      %v533 = vunpack.c.h.b16 %v292
      %v534 = vunpack.c.l.b16 %v293
      %v535 = vunpack.c.h.b16 %v293
      %v536 = vunpack.c.l.b16 %v294
      %v537 = vunpack.c.h.b16 %v294
      %v538 = vunpack.c.l.b16 %v295
      %v539 = vunpack.c.h.b16 %v295
      %v540 = vunpack.c.l.b16 %v296
      %v541 = vunpack.c.h.b16 %v296
      %v542 = vunpack.c.l.b16 %v297
      %v543 = vunpack.c.h.b16 %v297
      %v544 = vunpack.c.l.b16 %v298
      %v545 = vunpack.c.h.b16 %v298
      %v546 = vunpack.c.l.b16 %v299
      %v547 = vunpack.c.h.b16 %v299
      %v548 = vunpack.c.l.b16 %v300
      %v549 = vunpack.c.h.b16 %v300
      %v550 = vunpack.c.l.b16 %v301
      %v551 = vunpack.c.h.b16 %v301
      %v552 = vunpack.c.l.b16 %v302
      %v553 = vunpack.c.h.b16 %v302
      %v554 = vunpack.c.l.b16 %v303
      %v555 = vunpack.c.h.b16 %v303
      %v556 = vunpack.c.l.b16 %v304
      %v557 = vunpack.c.h.b16 %v304
      %v558 = vunpack.c.l.b16 %v305
      %v559 = vunpack.c.h.b16 %v305
      %v560 = vunpack.c.l.b16 %v306
      %v561 = vunpack.c.h.b16 %v306
      %v562 = vunpack.c.l.b16 %v307
      %v563 = vunpack.c.h.b16 %v307
      %v564 = vunpack.c.l.b16 %v308
      %v565 = vunpack.c.h.b16 %v308
      %v566 = vunpack.c.l.b16 %v309
      %v567 = vunpack.c.h.b16 %v309
      %v568 = vunpack.c.l.b16 %v310
      %v569 = vunpack.c.h.b16 %v310
      %v570 = vunpack.c.l.b16 %v311
      %v571 = vunpack.c.h.b16 %v311
      %v572 = vunpack.c.l.b16 %v312
      %v573 = vunpack.c.h.b16 %v312
      %v574 = vunpack.c.l.b16 %v313
      %v575 = vunpack.c.h.b16 %v313
      %v576 = vunpack.c.l.b16 %v314
      %v577 = vunpack.c.h.b16 %v314
      %v578 = vunpack.c.l.b16 %v315
      %v579 = vunpack.c.h.b16 %v315
      %v580 = vunpack.c.l.b16 %v316
      %v581 = vunpack.c.h.b16 %v316
      %v582 = vunpack.c.l.b16 %v317
      %v583 = vunpack.c.h.b16 %v317
      %v584 = vunpack.c.l.b16 %v318
      %v585 = vunpack.c.h.b16 %v318
      %v586 = vunpack.c.l.b16 %v319
      %v587 = vunpack.c.h.b16 %v319
      %v588 = vunpack.c.l.b16 %v320
      %v589 = vunpack.c.h.b16 %v320
      %v590 = vunpack.c.l.b16 %v321
      %v591 = vunpack.c.h.b16 %v321
      %v592 = vunpack.c.l.b16 %v322
      %v593 = vunpack.c.h.b16 %v322
      %v594 = vunpack.c.l.b16 %v323
      %v595 = vunpack.c.h.b16 %v323
      %v596 = vunpack.c.l.b16 %v324
      %v597 = vunpack.c.h.b16 %v324
      %v598 = vunpack.c.l.b16 %v325
      %v599 = vunpack.c.h.b16 %v325
      %v600 = vunpack.c.l.b16 %v326
      %v601 = vunpack.c.h.b16 %v326
      %v602 = vunpack.c.l.b16 %v327
      %v603 = vunpack.c.h.b16 %v327
      %v604 = vunpack.c.l.b16 %v328
      %v605 = vunpack.c.h.b16 %v328
      %v606 = vunpack.c.l.b16 %v329
      %v607 = vunpack.c.h.b16 %v329
      %v608 = vunpack.c.l.b16 %v330
      %v609 = vunpack.c.h.b16 %v330
      %v610 = vunpack.c.l.b16 %v331
      %v611 = vunpack.c.h.b16 %v331
      %v612 = vunpack.c.l.b16 %v332
      %v613 = vunpack.c.h.b16 %v332
      %v614 = vunpack.c.l.b16 %v333
      %v615 = vunpack.c.h.b16 %v333
      %v616 = vunpack.c.l.b16 %v334
      %v617 = vunpack.c.h.b16 %v334
      %v618 = vunpack.c.l.b16 %v335
      %v619 = vunpack.c.h.b16 %v335
      %v620 = vunpack.c.l.b16 %v336
      %v621 = vunpack.c.h.b16 %v336
      %v622 = vunpack.c.l.b16 %v337
      %v623 = vunpack.c.h.b16 %v337
      %v624 = vunpack.c.l.b16 %v338
      %v625 = vunpack.c.h.b16 %v338
      %v626 = vunpack.c.l.b16 %v339
      %v627 = vunpack.c.h.b16 %v339
      %v628 = vunpack.c.l.b16 %v340
      %v629 = vunpack.c.h.b16 %v340
      %v630 = vunpack.c.l.b16 %v341
      %v631 = vunpack.c.h.b16 %v341
      %v632 = vunpack.c.l.b16 %v342
      %v633 = vunpack.c.h.b16 %v342
      %v634 = vunpack.c.l.b16 %v343
      %v635 = vunpack.c.h.b16 %v343
      %v636 = vunpack.c.l.b16 %v344
      %v637 = vunpack.c.h.b16 %v344
      %v638 = vunpack.c.l.b16 %v345
      %v639 = vunpack.c.h.b16 %v345
      %v640 = vunpack.c.l.b16 %v346
      %v641 = vunpack.c.h.b16 %v346
      %v642 = vunpack.c.l.b16 %v347
      %v643 = vunpack.c.h.b16 %v347
      %v644 = vunpack.c.l.b16 %v348
      %v645 = vunpack.c.h.b16 %v348
      %v646 = vunpack.c.l.b16 %v349
      %v647 = vunpack.c.h.b16 %v349
      %v648 = vunpack.c.l.b16 %v350
      %v649 = vunpack.c.h.b16 %v350
      %v650 = vunpack.c.l.b16 %v351
      %v651 = vunpack.c.h.b16 %v351
      %v652 = vunpack.c.l.b16 %v352
      %v653 = vunpack.c.h.b16 %v352
      %v654 = vunpack.c.l.b16 %v353
      %v655 = vunpack.c.h.b16 %v353
      %v656 = vunpack.c.l.b16 %v354
      %v657 = vunpack.c.h.b16 %v354
      %v658 = vunpack.c.l.b16 %v355
      %v659 = vunpack.c.h.b16 %v355
      %v660 = vunpack.c.l.b16 %v356
      %v661 = vunpack.c.h.b16 %v356
      %v662 = vunpack.c.l.b16 %v357
      %v663 = vunpack.c.h.b16 %v357
      %v664 = vunpack.c.l.b16 %v358
      %v665 = vunpack.c.h.b16 %v358
      %v666 = vunpack.c.l.b16 %v359
      %v667 = vunpack.c.h.b16 %v359
      %v668 = vunpack.c.l.b16 %v360
      %v669 = vunpack.c.h.b16 %v360
      %v670 = vunpack.c.l.b16 %v361
      %v671 = vunpack.c.h.b16 %v361
      %v672 = vunpack.c.l.b16 %v362
      %v673 = vunpack.c.h.b16 %v362
      %v674 = vunpack.c.l.b16 %v363
      %v675 = vunpack.c.h.b16 %v363
      %v676 = vunpack.c.l.b16 %v364
      %v677 = vunpack.c.h.b16 %v364
      %v678 = vunpack.c.l.b16 %v365
      %v679 = vunpack.c.h.b16 %v365
      %v680 = vunpack.c.l.b16 %v366
      %v681 = vunpack.c.h.b16 %v366
      %v682 = vunpack.c.l.b16 %v367
      %v683 = vunpack.c.h.b16 %v367
      %v684 = vunpack.c.l.b16 %v368
      %v685 = vunpack.c.h.b16 %v368
      %v686 = vunpack.c.l.b16 %v369
      %v687 = vunpack.c.h.b16 %v369
      %v688 = vunpack.c.l.b16 %v370
      %v689 = vunpack.c.h.b16 %v370
      %v690 = vunpack.c.l.b16 %v371
      %v691 = vunpack.c.h.b16 %v371
      %v692 = vunpack.c.l.b16 %v372
      %v693 = vunpack.c.h.b16 %v372
      %v694 = vunpack.c.l.b16 %v373
      %v695 = vunpack.c.h.b16 %v373
      %v696 = vunpack.c.l.b16 %v374
      %v697 = vunpack.c.h.b16 %v374
      %v698 = vunpack.c.l.b16 %v375
      %v699 = vunpack.c.h.b16 %v375
      %v700 = vunpack.c.l.b16 %v376
      %v701 = vunpack.c.h.b16 %v376
      %v702 = vunpack.c.l.b16 %v377
      %v703 = vunpack.c.h.b16 %v377
      %v704 = vunpack.c.l.b16 %v378
      %v705 = vunpack.c.h.b16 %v378
      %v706 = vpack.c.b16 %v520, %v514
      %v707 = vpack.c.b16 %v521, %v515
      %v708 = vpack.c.b16 %v522, %v516
      %v709 = vpack.c.b16 %v523, %v517
      %v710 = vpack.c.b16 %v524, %v518
      %v711 = vpack.c.b16 %v525, %v519
      %v712 = vpack.c.b16 %v532, %v526
      %v713 = vpack.c.b16 %v533, %v527
      %v714 = vpack.c.b16 %v534, %v528
      %v715 = vpack.c.b16 %v535, %v529
      %v716 = vpack.c.b16 %v536, %v530
      %v717 = vpack.c.b16 %v537, %v531
      %v718 = vpack.c.b16 %v544, %v538
      %v719 = vpack.c.b16 %v545, %v539
      %v720 = vpack.c.b16 %v546, %v540
      %v721 = vpack.c.b16 %v547, %v541
      %v722 = vpack.c.b16 %v548, %v542
      %v723 = vpack.c.b16 %v549, %v543
      %v724 = vpack.c.b16 %v556, %v550
      %v725 = vpack.c.b16 %v557, %v551
      %v726 = vpack.c.b16 %v558, %v552
      %v727 = vpack.c.b16 %v559, %v553
      %v728 = vpack.c.b16 %v560, %v554
      %v729 = vpack.c.b16 %v561, %v555
      %v730 = vpack.c.b16 %v568, %v562
      %v731 = vpack.c.b16 %v569, %v563
      %v732 = vpack.c.b16 %v570, %v564
      %v733 = vpack.c.b16 %v571, %v565
      %v734 = vpack.c.b16 %v572, %v566
      %v735 = vpack.c.b16 %v573, %v567
      %v736 = vpack.c.b16 %v580, %v574
      %v737 = vpack.c.b16 %v581, %v575
      %v738 = vpack.c.b16 %v582, %v576
      %v739 = vpack.c.b16 %v583, %v577
      %v740 = vpack.c.b16 %v584, %v578
      %v741 = vpack.c.b16 %v585, %v579
      %v742 = vpack.c.b16 %v592, %v586
      %v743 = vpack.c.b16 %v593, %v587
      %v744 = vpack.c.b16 %v594, %v588
      %v745 = vpack.c.b16 %v595, %v589
      %v746 = vpack.c.b16 %v596, %v590
      %v747 = vpack.c.b16 %v597, %v591
      %v748 = vpack.c.b16 %v604, %v598
      %v749 = vpack.c.b16 %v605, %v599
      %v750 = vpack.c.b16 %v606, %v600
      %v751 = vpack.c.b16 %v607, %v601
      %v752 = vpack.c.b16 %v608, %v602
      %v753 = vpack.c.b16 %v609, %v603
      %v754 = vpack.c.b16 %v616, %v610
      %v755 = vpack.c.b16 %v617, %v611
      %v756 = vpack.c.b16 %v618, %v612
      %v757 = vpack.c.b16 %v619, %v613
      %v758 = vpack.c.b16 %v620, %v614
      %v759 = vpack.c.b16 %v621, %v615
      %v760 = vpack.c.b16 %v628, %v622
      %v761 = vpack.c.b16 %v629, %v623
      %v762 = vpack.c.b16 %v630, %v624
      %v763 = vpack.c.b16 %v631, %v625
      %v764 = vpack.c.b16 %v632, %v626
      %v765 = vpack.c.b16 %v633, %v627
      %v766 = vpack.c.b16 %v640, %v634
      %v767 = vpack.c.b16 %v641, %v635
      %v768 = vpack.c.b16 %v642, %v636
      %v769 = vpack.c.b16 %v643, %v637
      %v770 = vpack.c.b16 %v644, %v638
      %v771 = vpack.c.b16 %v645, %v639
      %v772 = vpack.c.b16 %v652, %v646
      %v773 = vpack.c.b16 %v653, %v647
      %v774 = vpack.c.b16 %v654, %v648
      %v775 = vpack.c.b16 %v655, %v649
      %v776 = vpack.c.b16 %v656, %v650
      %v777 = vpack.c.b16 %v657, %v651
      %v778 = vpack.c.b16 %v664, %v658
      %v779 = vpack.c.b16 %v665, %v659
      %v780 = vpack.c.b16 %v666, %v660
      %v781 = vpack.c.b16 %v667, %v661
      %v782 = vpack.c.b16 %v668, %v662
      %v783 = vpack.c.b16 %v669, %v663
      %v784 = vpack.c.b16 %v676, %v670
      %v785 = vpack.c.b16 %v677, %v671
      %v786 = vpack.c.b16 %v678, %v672
      %v787 = vpack.c.b16 %v679, %v673
      %v788 = vpack.c.b16 %v680, %v674
      %v789 = vpack.c.b16 %v681, %v675
      %v790 = vpack.c.b16 %v688, %v682
      %v791 = vpack.c.b16 %v689, %v683
      %v792 = vpack.c.b16 %v690, %v684
      %v793 = vpack.c.b16 %v691, %v685
      %v794 = vpack.c.b16 %v692, %v686
      %v795 = vpack.c.b16 %v693, %v687
      %v796 = vpack.c.b16 %v700, %v694
      %v797 = vpack.c.b16 %v701, %v695
      %v798 = vpack.c.b16 %v702, %v696
      %v799 = vpack.c.b16 %v703, %v697
      %v800 = vpack.c.b16 %v704, %v698
      %v801 = vpack.c.b16 %v705, %v699
      %898 = vmatprep.subr.bf16.mxu0 %v749
      %899 = vmatpush1.bf16.msra.mxu0 %v748
      %900 = vmatprep.subr.bf16.mxu0 %v743
      %901 = vmatpush1.bf16.msra.mxu0 %v742
      %902 = vmatprep.subr.bf16.mxu0 %v737
      %903 = vmatpush1.bf16.msra.mxu0 %v736
      %904 = vmatprep.subr.bf16.mxu0 %v731
      %905 = vmatpush1.bf16.msra.mxu0 %v730
      %906 = vmatprep.subr.bf16.mxu0 %v725
      %907 = vmatpush1.bf16.msra.mxu0 %v724
      %908 = vmatprep.subr.bf16.mxu0 %v719
      %909 = vmatpush1.bf16.msra.mxu0 %v718
      %910 = vmatprep.subr.bf16.mxu0 %v713
      %911 = vmatpush1.bf16.msra.mxu0 %v712
      %912 = vmatprep.subr.bf16.mxu0 %v707
      %913 = vmatpush1.bf16.msra.mxu0 %v706
      %914 = vmatprep.subr.bf16.mxu0 %v797
      %915 = vmatpush2.bf16.msra.mxu0 %v796
      %916 = vmatprep.subr.bf16.mxu0 %v791
      %917 = vmatpush2.bf16.msra.mxu0 %v790
      %918 = vmatprep.subr.bf16.mxu0 %v785
      %919 = vmatpush2.bf16.msra.mxu0 %v784
      %920 = vmatprep.subr.bf16.mxu0 %v779
      %921 = vmatpush2.bf16.msra.mxu0 %v778
      %922 = vmatprep.subr.bf16.mxu0 %v773
      %923 = vmatpush2.bf16.msra.mxu0 %v772
      %924 = vmatprep.subr.bf16.mxu0 %v767
      %925 = vmatpush2.bf16.msra.mxu0 %v766
      %926 = vmatprep.subr.bf16.mxu0 %v761
      %927 = vmatpush2.bf16.msra.mxu0 %v760
      %928 = vmatprep.subr.bf16.mxu0 %v755
      %929 = vmatpush2.bf16.msra.mxu0 %v754
      %930 = vmatprep.mubr.bf16.mxu0 %v415
      %931 = vmatmul.mubr.bf16.gmra.mxu0 %v414
      %v932 = vpop.f32.mrf.mxu0
      %v933 = vadd.f32 %v384, %v932
      %v934 = vpop.f32.mrf.mxu0
      %v935 = vadd.f32 %v388, %v934
      %v936 = vpop.f32.mrf.mxu0
      %v937 = vpop.f32.mrf.mxu0
      %938 = vdwg.mxu0
      %939 = vmatprep.subr.bf16.mxu0 %v751
      %940 = vmatpush1.bf16.msra.mxu0 %v750
      %941 = vmatprep.subr.bf16.mxu0 %v745
      %942 = vmatpush1.bf16.msra.mxu0 %v744
      %943 = vmatprep.subr.bf16.mxu0 %v739
      %944 = vmatpush1.bf16.msra.mxu0 %v738
      %945 = vmatprep.subr.bf16.mxu0 %v733
      %946 = vmatpush1.bf16.msra.mxu0 %v732
      %947 = vmatprep.subr.bf16.mxu0 %v727
      %948 = vmatpush1.bf16.msra.mxu0 %v726
      %949 = vmatprep.subr.bf16.mxu0 %v721
      %950 = vmatpush1.bf16.msra.mxu0 %v720
      %951 = vmatprep.subr.bf16.mxu0 %v715
      %952 = vmatpush1.bf16.msra.mxu0 %v714
      %953 = vmatprep.subr.bf16.mxu0 %v709
      %954 = vmatpush1.bf16.msra.mxu0 %v708
      %955 = vmatprep.subr.bf16.mxu0 %v799
      %956 = vmatpush2.bf16.msra.mxu0 %v798
      %957 = vmatprep.subr.bf16.mxu0 %v793
      %958 = vmatpush2.bf16.msra.mxu0 %v792
      %959 = vmatprep.subr.bf16.mxu0 %v787
      %960 = vmatpush2.bf16.msra.mxu0 %v786
      %961 = vmatprep.subr.bf16.mxu0 %v781
      %962 = vmatpush2.bf16.msra.mxu0 %v780
      %963 = vmatprep.subr.bf16.mxu0 %v775
      %964 = vmatpush2.bf16.msra.mxu0 %v774
      %965 = vmatprep.subr.bf16.mxu0 %v769
      %966 = vmatpush2.bf16.msra.mxu0 %v768
      %967 = vmatprep.subr.bf16.mxu0 %v763
      %968 = vmatpush2.bf16.msra.mxu0 %v762
      %969 = vmatprep.subr.bf16.mxu0 %v757
      %970 = vmatpush2.bf16.msra.mxu0 %v756
      %971 = vmatprep.mubr.bf16.mxu0 %v415
      %972 = vmatmul.mubr.bf16.gmra.mxu0 %v414
      %v973 = vpop.f32.mrf.mxu0
      %v974 = vadd.f32 %v392, %v973
      %v975 = vpop.f32.mrf.mxu0
      %v976 = vadd.f32 %v396, %v975
      %v977 = vpop.f32.mrf.mxu0
      %v978 = vpop.f32.mrf.mxu0
      %979 = vdwg.mxu0
      %980 = vmatprep.subr.bf16.mxu0 %v753
      %981 = vmatpush1.bf16.msra.mxu0 %v752
      %982 = vmatprep.subr.bf16.mxu0 %v747
      %983 = vmatpush1.bf16.msra.mxu0 %v746
      %984 = vmatprep.subr.bf16.mxu0 %v741
      %985 = vmatpush1.bf16.msra.mxu0 %v740
      %986 = vmatprep.subr.bf16.mxu0 %v735
      %987 = vmatpush1.bf16.msra.mxu0 %v734
      %988 = vmatprep.subr.bf16.mxu0 %v729
      %989 = vmatpush1.bf16.msra.mxu0 %v728
      %990 = vmatprep.subr.bf16.mxu0 %v723
      %991 = vmatpush1.bf16.msra.mxu0 %v722
      %992 = vmatprep.subr.bf16.mxu0 %v717
      %993 = vmatpush1.bf16.msra.mxu0 %v716
      %994 = vmatprep.subr.bf16.mxu0 %v711
      %995 = vmatpush1.bf16.msra.mxu0 %v710
      %996 = vmatprep.subr.bf16.mxu0 %v801
      %997 = vmatpush2.bf16.msra.mxu0 %v800
      %998 = vmatprep.subr.bf16.mxu0 %v795
      %999 = vmatpush2.bf16.msra.mxu0 %v794
      %1000 = vmatprep.subr.bf16.mxu0 %v789
      %1001 = vmatpush2.bf16.msra.mxu0 %v788
      %1002 = vmatprep.subr.bf16.mxu0 %v783
      %1003 = vmatpush2.bf16.msra.mxu0 %v782
      %1004 = vmatprep.subr.bf16.mxu0 %v777
      %1005 = vmatpush2.bf16.msra.mxu0 %v776
      %1006 = vmatprep.subr.bf16.mxu0 %v771
      %1007 = vmatpush2.bf16.msra.mxu0 %v770
      %1008 = vmatprep.subr.bf16.mxu0 %v765
      %1009 = vmatpush2.bf16.msra.mxu0 %v764
      %1010 = vmatprep.subr.bf16.mxu0 %v759
      %1011 = vmatpush2.bf16.msra.mxu0 %v758
      %1012 = vmatprep.mubr.bf16.mxu0 %v415
      %1013 = vmatmul.mubr.bf16.gmra.mxu0 %v414
      %v1014 = vpop.f32.mrf.mxu0
      %v1015 = vadd.f32 %v400, %v1014
      %v1016 = vpop.f32.mrf.mxu0
      %v1017 = vadd.f32 %v404, %v1016
      %v1018 = vpop.f32.mrf.mxu0
      %v1019 = vpop.f32.mrf.mxu0
      %1020 = vdwg.mxu0
      %v1021 = vpack.c.bf16 %v933, %v933
      %v1022 = vpack.c.bf16 %v935, %v935
      %v1023 = vpack.c.bf16 %v974, %v974
      %v1024 = vpack.c.bf16 %v976, %v976
      %v1025 = vpack.c.bf16 %v1015, %v1015
      %v1026 = vpack.c.bf16 %v1017, %v1017
      %vm1027 = vcmask 523264
      %v1029 = vsel %vm1027, %v1021, 0
      %v1032 = vsel %vm1027, %v1023, 0
      %1034 = vmatprep.subr.bf16.mxu0 0
      %1035 = vmatpush1.bf16.xpose.msra.mxu0 0
      %1036 = vmatprep.subr.bf16.mxu0 0
      %1037 = vmatpush1.bf16.xpose.msra.mxu0 0
      %1038 = vmatprep.subr.bf16.mxu0 0
      %1039 = vmatpush1.bf16.xpose.msra.mxu0 0
      %1040 = vmatprep.subr.bf16.mxu0 0
      %1041 = vmatpush1.bf16.xpose.msra.mxu0 0
      %1042 = vmatprep.subr.bf16.mxu0 0
      %1043 = vmatpush1.bf16.xpose.msra.mxu0 0
      %1044 = vmatprep.subr.bf16.mxu0 0
      %1045 = vmatpush1.bf16.xpose.msra.mxu0 0
      %1046 = vmatprep.subr.bf16.mxu0 0
      %1047 = vmatpush1.bf16.xpose.msra.mxu0 0
      %1048 = vmatprep.subr.bf16.mxu0 0
      %1049 = vmatpush1.bf16.xpose.msra.mxu0 %v1032
      %1050 = vmatprep.subr.bf16.mxu0 0
      %1051 = vmatpush2.bf16.xpose.msra.mxu0 0
      %1052 = vmatprep.subr.bf16.mxu0 0
      %1053 = vmatpush2.bf16.xpose.msra.mxu0 0
      %1054 = vmatprep.subr.bf16.mxu0 0
      %1055 = vmatpush2.bf16.xpose.msra.mxu0 0
      %1056 = vmatprep.subr.bf16.mxu0 0
      %1057 = vmatpush2.bf16.xpose.msra.mxu0 0
      %1058 = vmatprep.subr.bf16.mxu0 0
      %1059 = vmatpush2.bf16.xpose.msra.mxu0 0
      %1060 = vmatprep.subr.bf16.mxu0 0
      %1061 = vmatpush2.bf16.xpose.msra.mxu0 0
      %1062 = vmatprep.subr.bf16.mxu0 0
      %1063 = vmatpush2.bf16.xpose.msra.mxu0 0
      %1064 = vmatprep.subr.bf16.mxu0 0
      %1065 = vmatpush2.bf16.xpose.msra.mxu0 0
      %1066 = vmatprep.mubr.bf16.mxu0 0
      %1067 = vmatmul.mubr.bf16.gmra.mxu0 %v1029
      %v1068 = vpop.f32.mrf.mxu0
      %v1069 = vadd.f32 0.0, %v1068
      %v1070 = vpop.f32.mrf.mxu0
      %v1071 = vpop.f32.mrf.mxu0
      %v1072 = vpop.f32.mrf.mxu0
      %1073 = vdwg.mxu0
      %v1074 = vmul.f32 %v1069, 0.125
      %vm1075 = vcmask 64512
      %v1076 = vsel %vm1075, %v1074, -inf
      %1077 = vmax.xlane.f32.xlu0 %v1076
      %v1078 = vpop.xlane.xlu0 %1077
      %v1079 = vsub.f32 %v1074, %v1078
      %v1080 = vmul.f32 %v1079, 1.442695
      %v1081 = vpow.pop %v1080
      %v1082 = vsel %vm1075, %v1081, 0.0
      %1083 = vadd.xlane.f32.xlu0 %v1082
      %v1084 = vpop.xlane.xlu0 %1083
      %v1085 = vrcp.pop %v1084
      %v1086 = vmul.f32 %v1081, %v1085
      %v1087 = vpack.c.bf16 %v1086, %v1086
      %v1089 = vsel %vm1075, %v1087, 0
      %vm1091 = vcmask 1043456
      %v1093 = vsel %vm1091, %v1025, 0
      %1095 = vmatprep.subr.bf16.mxu0 0
      %1096 = vmatpush1.bf16.msra.mxu0 0
      %1097 = vmatprep.subr.bf16.mxu0 0
      %1098 = vmatpush1.bf16.msra.mxu0 0
      %1099 = vmatprep.subr.bf16.mxu0 0
      %1100 = vmatpush1.bf16.msra.mxu0 0
      %1101 = vmatprep.subr.bf16.mxu0 0
      %1102 = vmatpush1.bf16.msra.mxu0 0
      %1103 = vmatprep.subr.bf16.mxu0 0
      %1104 = vmatpush1.bf16.msra.mxu0 0
      %1105 = vmatprep.subr.bf16.mxu0 0
      %1106 = vmatpush1.bf16.msra.mxu0 0
      %1107 = vmatprep.subr.bf16.mxu0 0
      %1108 = vmatpush1.bf16.msra.mxu0 0
      %1109 = vmatprep.subr.bf16.mxu0 0
      %1110 = vmatpush1.bf16.msra.mxu0 %v1093
      %1111 = vmatprep.subr.bf16.mxu0 0
      %1112 = vmatpush2.bf16.msra.mxu0 0
      %1113 = vmatprep.subr.bf16.mxu0 0
      %1114 = vmatpush2.bf16.msra.mxu0 0
      %1115 = vmatprep.subr.bf16.mxu0 0
      %1116 = vmatpush2.bf16.msra.mxu0 0
      %1117 = vmatprep.subr.bf16.mxu0 0
      %1118 = vmatpush2.bf16.msra.mxu0 0
      %1119 = vmatprep.subr.bf16.mxu0 0
      %1120 = vmatpush2.bf16.msra.mxu0 0
      %1121 = vmatprep.subr.bf16.mxu0 0
      %1122 = vmatpush2.bf16.msra.mxu0 0
      %1123 = vmatprep.subr.bf16.mxu0 0
      %1124 = vmatpush2.bf16.msra.mxu0 0
      %1125 = vmatprep.subr.bf16.mxu0 0
      %1126 = vmatpush2.bf16.msra.mxu0 0
      %1127 = vmatprep.mubr.bf16.mxu0 0
      %1128 = vmatmul.mubr.bf16.gmra.mxu0 %v1089
      %v1129 = vpop.f32.mrf.mxu0
      %v1130 = vadd.f32 0.0, %v1129
      %v1131 = vpop.f32.mrf.mxu0
      %v1132 = vpop.f32.mrf.mxu0
      %v1133 = vpop.f32.mrf.mxu0
      %1134 = vdwg.mxu0
      %1136 = vrot.lane.b32.xlu0 %v1021, 64
      %v1137 = vpop.permute.xlu0 %1136
      %1139 = vrot.lane.b32.xlu0 %v1023, 64
      %v1140 = vpop.permute.xlu0 %1139
      %v1142 = vsel %vm1027, %v1137, 0
      %v1145 = vsel %vm1027, %v1140, 0
      %1147 = vmatprep.subr.bf16.mxu0 0
      %1148 = vmatpush1.bf16.xpose.msra.mxu0 0
      %1149 = vmatprep.subr.bf16.mxu0 0
      %1150 = vmatpush1.bf16.xpose.msra.mxu0 0
      %1151 = vmatprep.subr.bf16.mxu0 0
      %1152 = vmatpush1.bf16.xpose.msra.mxu0 0
      %1153 = vmatprep.subr.bf16.mxu0 0
      %1154 = vmatpush1.bf16.xpose.msra.mxu0 0
      %1155 = vmatprep.subr.bf16.mxu0 0
      %1156 = vmatpush1.bf16.xpose.msra.mxu0 0
      %1157 = vmatprep.subr.bf16.mxu0 0
      %1158 = vmatpush1.bf16.xpose.msra.mxu0 0
      %1159 = vmatprep.subr.bf16.mxu0 0
      %1160 = vmatpush1.bf16.xpose.msra.mxu0 0
      %1161 = vmatprep.subr.bf16.mxu0 0
      %1162 = vmatpush1.bf16.xpose.msra.mxu0 %v1145
      %1163 = vmatprep.subr.bf16.mxu0 0
      %1164 = vmatpush2.bf16.xpose.msra.mxu0 0
      %1165 = vmatprep.subr.bf16.mxu0 0
      %1166 = vmatpush2.bf16.xpose.msra.mxu0 0
      %1167 = vmatprep.subr.bf16.mxu0 0
      %1168 = vmatpush2.bf16.xpose.msra.mxu0 0
      %1169 = vmatprep.subr.bf16.mxu0 0
      %1170 = vmatpush2.bf16.xpose.msra.mxu0 0
      %1171 = vmatprep.subr.bf16.mxu0 0
      %1172 = vmatpush2.bf16.xpose.msra.mxu0 0
      %1173 = vmatprep.subr.bf16.mxu0 0
      %1174 = vmatpush2.bf16.xpose.msra.mxu0 0
      %1175 = vmatprep.subr.bf16.mxu0 0
      %1176 = vmatpush2.bf16.xpose.msra.mxu0 0
      %1177 = vmatprep.subr.bf16.mxu0 0
      %1178 = vmatpush2.bf16.xpose.msra.mxu0 0
      %1179 = vmatprep.mubr.bf16.mxu0 0
      %1180 = vmatmul.mubr.bf16.gmra.mxu0 %v1142
      %v1181 = vpop.f32.mrf.mxu0
      %v1182 = vadd.f32 0.0, %v1181
      %v1183 = vpop.f32.mrf.mxu0
      %v1184 = vpop.f32.mrf.mxu0
      %v1185 = vpop.f32.mrf.mxu0
      %1186 = vdwg.mxu0
      %v1187 = vmul.f32 %v1182, 0.125
      %v1188 = vsel %vm1075, %v1187, -inf
      %1189 = vmax.xlane.f32.xlu0 %v1188
      %v1190 = vpop.xlane.xlu0 %1189
      %v1191 = vsub.f32 %v1187, %v1190
      %v1192 = vmul.f32 %v1191, 1.442695
      %v1193 = vpow.pop %v1192
      %v1194 = vsel %vm1075, %v1193, 0.0
      %1195 = vadd.xlane.f32.xlu0 %v1194
      %v1196 = vpop.xlane.xlu0 %1195
      %v1197 = vrcp.pop %v1196
      %v1198 = vmul.f32 %v1193, %v1197
      %v1199 = vpack.c.bf16 %v1198, %v1198
      %1201 = vrot.lane.b32.xlu0 %v1025, 64
      %v1202 = vpop.permute.xlu0 %1201
      %v1204 = vsel %vm1075, %v1199, 0
      %v1207 = vsel %vm1091, %v1202, 0
      %1209 = vmatprep.subr.bf16.mxu0 0
      %1210 = vmatpush1.bf16.msra.mxu0 0
      %1211 = vmatprep.subr.bf16.mxu0 0
      %1212 = vmatpush1.bf16.msra.mxu0 0
      %1213 = vmatprep.subr.bf16.mxu0 0
      %1214 = vmatpush1.bf16.msra.mxu0 0
      %1215 = vmatprep.subr.bf16.mxu0 0
      %1216 = vmatpush1.bf16.msra.mxu0 0
      %1217 = vmatprep.subr.bf16.mxu0 0
      %1218 = vmatpush1.bf16.msra.mxu0 0
      %1219 = vmatprep.subr.bf16.mxu0 0
      %1220 = vmatpush1.bf16.msra.mxu0 0
      %1221 = vmatprep.subr.bf16.mxu0 0
      %1222 = vmatpush1.bf16.msra.mxu0 0
      %1223 = vmatprep.subr.bf16.mxu0 0
      %1224 = vmatpush1.bf16.msra.mxu0 %v1207
      %1225 = vmatprep.subr.bf16.mxu0 0
      %1226 = vmatpush2.bf16.msra.mxu0 0
      %1227 = vmatprep.subr.bf16.mxu0 0
      %1228 = vmatpush2.bf16.msra.mxu0 0
      %1229 = vmatprep.subr.bf16.mxu0 0
      %1230 = vmatpush2.bf16.msra.mxu0 0
      %1231 = vmatprep.subr.bf16.mxu0 0
      %1232 = vmatpush2.bf16.msra.mxu0 0
      %1233 = vmatprep.subr.bf16.mxu0 0
      %1234 = vmatpush2.bf16.msra.mxu0 0
      %1235 = vmatprep.subr.bf16.mxu0 0
      %1236 = vmatpush2.bf16.msra.mxu0 0
      %1237 = vmatprep.subr.bf16.mxu0 0
      %1238 = vmatpush2.bf16.msra.mxu0 0
      %1239 = vmatprep.subr.bf16.mxu0 0
      %1240 = vmatpush2.bf16.msra.mxu0 0
      %1241 = vmatprep.mubr.bf16.mxu0 0
      %1242 = vmatmul.mubr.bf16.gmra.mxu0 %v1204
      %v1243 = vpop.f32.mrf.mxu0
      %v1244 = vadd.f32 0.0, %v1243
      %v1245 = vpop.f32.mrf.mxu0
      %v1246 = vpop.f32.mrf.mxu0
      %v1247 = vpop.f32.mrf.mxu0
      %1248 = vdwg.mxu0
      %v1250 = vsel %vm1027, %v1022, 0
      %v1253 = vsel %vm1027, %v1024, 0
      %1255 = vmatprep.subr.bf16.mxu0 0
      %1256 = vmatpush1.bf16.xpose.msra.mxu0 0
      %1257 = vmatprep.subr.bf16.mxu0 0
      %1258 = vmatpush1.bf16.xpose.msra.mxu0 0
      %1259 = vmatprep.subr.bf16.mxu0 0
      %1260 = vmatpush1.bf16.xpose.msra.mxu0 0
      %1261 = vmatprep.subr.bf16.mxu0 0
      %1262 = vmatpush1.bf16.xpose.msra.mxu0 0
      %1263 = vmatprep.subr.bf16.mxu0 0
      %1264 = vmatpush1.bf16.xpose.msra.mxu0 0
      %1265 = vmatprep.subr.bf16.mxu0 0
      %1266 = vmatpush1.bf16.xpose.msra.mxu0 0
      %1267 = vmatprep.subr.bf16.mxu0 0
      %1268 = vmatpush1.bf16.xpose.msra.mxu0 0
      %1269 = vmatprep.subr.bf16.mxu0 0
      %1270 = vmatpush1.bf16.xpose.msra.mxu0 %v1253
      %1271 = vmatprep.subr.bf16.mxu0 0
      %1272 = vmatpush2.bf16.xpose.msra.mxu0 0
      %1273 = vmatprep.subr.bf16.mxu0 0
      %1274 = vmatpush2.bf16.xpose.msra.mxu0 0
      %1275 = vmatprep.subr.bf16.mxu0 0
      %1276 = vmatpush2.bf16.xpose.msra.mxu0 0
      %1277 = vmatprep.subr.bf16.mxu0 0
      %1278 = vmatpush2.bf16.xpose.msra.mxu0 0
      %1279 = vmatprep.subr.bf16.mxu0 0
      %1280 = vmatpush2.bf16.xpose.msra.mxu0 0
      %1281 = vmatprep.subr.bf16.mxu0 0
      %1282 = vmatpush2.bf16.xpose.msra.mxu0 0
      %1283 = vmatprep.subr.bf16.mxu0 0
      %1284 = vmatpush2.bf16.xpose.msra.mxu0 0
      %1285 = vmatprep.subr.bf16.mxu0 0
      %1286 = vmatpush2.bf16.xpose.msra.mxu0 0
      %1287 = vmatprep.mubr.bf16.mxu0 0
      %1288 = vmatmul.mubr.bf16.gmra.mxu0 %v1250
      %v1289 = vpop.f32.mrf.mxu0
      %v1290 = vadd.f32 0.0, %v1289
      %v1291 = vpop.f32.mrf.mxu0
      %v1292 = vpop.f32.mrf.mxu0
      %v1293 = vpop.f32.mrf.mxu0
      %1294 = vdwg.mxu0
      %v1295 = vmul.f32 %v1290, 0.125
      %v1296 = vsel %vm1075, %v1295, -inf
      %1297 = vmax.xlane.f32.xlu0 %v1296
      %v1298 = vpop.xlane.xlu0 %1297
      %v1299 = vsub.f32 %v1295, %v1298
      %v1300 = vmul.f32 %v1299, 1.442695
      %v1301 = vpow.pop %v1300
      %v1302 = vsel %vm1075, %v1301, 0.0
      %1303 = vadd.xlane.f32.xlu0 %v1302
      %v1304 = vpop.xlane.xlu0 %1303
      %v1305 = vrcp.pop %v1304
      %v1306 = vmul.f32 %v1301, %v1305
      %v1307 = vpack.c.bf16 %v1306, %v1306
      %v1309 = vsel %vm1075, %v1307, 0
      %v1312 = vsel %vm1091, %v1026, 0
      %1314 = vmatprep.subr.bf16.mxu0 0
      %1315 = vmatpush1.bf16.msra.mxu0 0
      %1316 = vmatprep.subr.bf16.mxu0 0
      %1317 = vmatpush1.bf16.msra.mxu0 0
      %1318 = vmatprep.subr.bf16.mxu0 0
      %1319 = vmatpush1.bf16.msra.mxu0 0
      %1320 = vmatprep.subr.bf16.mxu0 0
      %1321 = vmatpush1.bf16.msra.mxu0 0
      %1322 = vmatprep.subr.bf16.mxu0 0
      %1323 = vmatpush1.bf16.msra.mxu0 0
      %1324 = vmatprep.subr.bf16.mxu0 0
      %1325 = vmatpush1.bf16.msra.mxu0 0
      %1326 = vmatprep.subr.bf16.mxu0 0
      %1327 = vmatpush1.bf16.msra.mxu0 0
      %1328 = vmatprep.subr.bf16.mxu0 0
      %1329 = vmatpush1.bf16.msra.mxu0 %v1312
      %1330 = vmatprep.subr.bf16.mxu0 0
      %1331 = vmatpush2.bf16.msra.mxu0 0
      %1332 = vmatprep.subr.bf16.mxu0 0
      %1333 = vmatpush2.bf16.msra.mxu0 0
      %1334 = vmatprep.subr.bf16.mxu0 0
      %1335 = vmatpush2.bf16.msra.mxu0 0
      %1336 = vmatprep.subr.bf16.mxu0 0
      %1337 = vmatpush2.bf16.msra.mxu0 0
      %1338 = vmatprep.subr.bf16.mxu0 0
      %1339 = vmatpush2.bf16.msra.mxu0 0
      %1340 = vmatprep.subr.bf16.mxu0 0
      %1341 = vmatpush2.bf16.msra.mxu0 0
      %1342 = vmatprep.subr.bf16.mxu0 0
      %1343 = vmatpush2.bf16.msra.mxu0 0
      %1344 = vmatprep.subr.bf16.mxu0 0
      %1345 = vmatpush2.bf16.msra.mxu0 0
      %1346 = vmatprep.mubr.bf16.mxu0 0
      %1347 = vmatmul.mubr.bf16.gmra.mxu0 %v1309
      %v1348 = vpop.f32.mrf.mxu0
      %v1349 = vadd.f32 0.0, %v1348
      %v1350 = vpop.f32.mrf.mxu0
      %v1351 = vpop.f32.mrf.mxu0
      %v1352 = vpop.f32.mrf.mxu0
      %1353 = vdwg.mxu0
      %1355 = vrot.lane.b32.xlu0 %v1022, 64
      %v1356 = vpop.permute.xlu0 %1355
      %1358 = vrot.lane.b32.xlu0 %v1024, 64
      %v1359 = vpop.permute.xlu0 %1358
      %v1361 = vsel %vm1027, %v1356, 0
      %v1364 = vsel %vm1027, %v1359, 0
      %1366 = vmatprep.subr.bf16.mxu0 0
      %1367 = vmatpush1.bf16.xpose.msra.mxu0 0
      %1368 = vmatprep.subr.bf16.mxu0 0
      %1369 = vmatpush1.bf16.xpose.msra.mxu0 0
      %1370 = vmatprep.subr.bf16.mxu0 0
      %1371 = vmatpush1.bf16.xpose.msra.mxu0 0
      %1372 = vmatprep.subr.bf16.mxu0 0
      %1373 = vmatpush1.bf16.xpose.msra.mxu0 0
      %1374 = vmatprep.subr.bf16.mxu0 0
      %1375 = vmatpush1.bf16.xpose.msra.mxu0 0
      %1376 = vmatprep.subr.bf16.mxu0 0
      %1377 = vmatpush1.bf16.xpose.msra.mxu0 0
      %1378 = vmatprep.subr.bf16.mxu0 0
      %1379 = vmatpush1.bf16.xpose.msra.mxu0 0
      %1380 = vmatprep.subr.bf16.mxu0 0
      %1381 = vmatpush1.bf16.xpose.msra.mxu0 %v1364
      %1382 = vmatprep.subr.bf16.mxu0 0
      %1383 = vmatpush2.bf16.xpose.msra.mxu0 0
      %1384 = vmatprep.subr.bf16.mxu0 0
      %1385 = vmatpush2.bf16.xpose.msra.mxu0 0
      %1386 = vmatprep.subr.bf16.mxu0 0
      %1387 = vmatpush2.bf16.xpose.msra.mxu0 0
      %1388 = vmatprep.subr.bf16.mxu0 0
      %1389 = vmatpush2.bf16.xpose.msra.mxu0 0
      %1390 = vmatprep.subr.bf16.mxu0 0
      %1391 = vmatpush2.bf16.xpose.msra.mxu0 0
      %1392 = vmatprep.subr.bf16.mxu0 0
      %1393 = vmatpush2.bf16.xpose.msra.mxu0 0
      %1394 = vmatprep.subr.bf16.mxu0 0
      %1395 = vmatpush2.bf16.xpose.msra.mxu0 0
      %1396 = vmatprep.subr.bf16.mxu0 0
      %1397 = vmatpush2.bf16.xpose.msra.mxu0 0
      %1398 = vmatprep.mubr.bf16.mxu0 0
      %1399 = vmatmul.mubr.bf16.gmra.mxu0 %v1361
      %v1400 = vpop.f32.mrf.mxu0
      %v1401 = vadd.f32 0.0, %v1400
      %v1402 = vpop.f32.mrf.mxu0
      %v1403 = vpop.f32.mrf.mxu0
      %v1404 = vpop.f32.mrf.mxu0
      %1405 = vdwg.mxu0
      %v1406 = vmul.f32 %v1401, 0.125
      %v1407 = vsel %vm1075, %v1406, -inf
      %1408 = vmax.xlane.f32.xlu0 %v1407
      %v1409 = vpop.xlane.xlu0 %1408
      %v1410 = vsub.f32 %v1406, %v1409
      %v1411 = vmul.f32 %v1410, 1.442695
      %v1412 = vpow.pop %v1411
      %v1413 = vsel %vm1075, %v1412, 0.0
      %1414 = vadd.xlane.f32.xlu0 %v1413
      %v1415 = vpop.xlane.xlu0 %1414
      %v1416 = vrcp.pop %v1415
      %v1417 = vmul.f32 %v1412, %v1416
      %v1418 = vpack.c.bf16 %v1417, %v1417
      %1420 = vrot.lane.b32.xlu0 %v1026, 64
      %v1421 = vpop.permute.xlu0 %1420
      %v1423 = vsel %vm1075, %v1418, 0
      %v1426 = vsel %vm1091, %v1421, 0
      %1428 = vmatprep.subr.bf16.mxu0 0
      %1429 = vmatpush1.bf16.msra.mxu0 0
      %1430 = vmatprep.subr.bf16.mxu0 0
      %1431 = vmatpush1.bf16.msra.mxu0 0
      %1432 = vmatprep.subr.bf16.mxu0 0
      %1433 = vmatpush1.bf16.msra.mxu0 0
      %1434 = vmatprep.subr.bf16.mxu0 0
      %1435 = vmatpush1.bf16.msra.mxu0 0
      %1436 = vmatprep.subr.bf16.mxu0 0
      %1437 = vmatpush1.bf16.msra.mxu0 0
      %1438 = vmatprep.subr.bf16.mxu0 0
      %1439 = vmatpush1.bf16.msra.mxu0 0
      %1440 = vmatprep.subr.bf16.mxu0 0
      %1441 = vmatpush1.bf16.msra.mxu0 0
      %1442 = vmatprep.subr.bf16.mxu0 0
      %1443 = vmatpush1.bf16.msra.mxu0 %v1426
      %1444 = vmatprep.subr.bf16.mxu0 0
      %1445 = vmatpush2.bf16.msra.mxu0 0
      %1446 = vmatprep.subr.bf16.mxu0 0
      %1447 = vmatpush2.bf16.msra.mxu0 0
      %1448 = vmatprep.subr.bf16.mxu0 0
      %1449 = vmatpush2.bf16.msra.mxu0 0
      %1450 = vmatprep.subr.bf16.mxu0 0
      %1451 = vmatpush2.bf16.msra.mxu0 0
      %1452 = vmatprep.subr.bf16.mxu0 0
      %1453 = vmatpush2.bf16.msra.mxu0 0
      %1454 = vmatprep.subr.bf16.mxu0 0
      %1455 = vmatpush2.bf16.msra.mxu0 0
      %1456 = vmatprep.subr.bf16.mxu0 0
      %1457 = vmatpush2.bf16.msra.mxu0 0
      %1458 = vmatprep.subr.bf16.mxu0 0
      %1459 = vmatpush2.bf16.msra.mxu0 0
      %1460 = vmatprep.mubr.bf16.mxu0 0
      %1461 = vmatmul.mubr.bf16.gmra.mxu0 %v1423
      %v1462 = vpop.f32.mrf.mxu0
      %v1463 = vadd.f32 0.0, %v1462
      %v1464 = vpop.f32.mrf.mxu0
      %v1465 = vpop.f32.mrf.mxu0
      %v1466 = vpop.f32.mrf.mxu0
      %1467 = vdwg.mxu0
      %1469 = vrot.lane.b32.xlu0 %v1244, 64
      %v1470 = vpop.permute.xlu0 %1469
      %1473 = vrot.lane.b32.xlu0 %v1463, 64
      %v1474 = vpop.permute.xlu0 %1473
      %v1476 = vsel %vm1027, %v1130, %v1470
      %v1477 = vsel %vm1027, %v1349, %v1474
      %v1478 = vpack.c.bf16 %v1476, %v1476
      %v1479 = vpack.c.bf16 %v1477, %v1477
      %v1480 = vld [vmem:[%s3] sm:$0xff]
      %v1481 = vld [vmem:[%s3 + $0x8] sm:$0xff]
      %v1482 = vld [vmem:[%s3 + $0x10] sm:$0xff]
      %v1483 = vld [vmem:[%s3 + $0x18] sm:$0xff]
      %v1484 = vld [vmem:[%s3 + $0x20] sm:$0xff]
      %v1485 = vld [vmem:[%s3 + $0x28] sm:$0xff]
      %v1486 = vld [vmem:[%s3 + $0x30] sm:$0xff]
      %v1487 = vld [vmem:[%s3 + $0x38] sm:$0xff]
      %v1488 = vld [vmem:[%s3 + $0x40] sm:$0xff]
      %v1489 = vld [vmem:[%s3 + $0x48] sm:$0xff]
      %v1490 = vld [vmem:[%s3 + $0x50] sm:$0xff]
      %v1491 = vld [vmem:[%s3 + $0x58] sm:$0xff]
      %v1492 = vld [vmem:[%s3 + $0x60] sm:$0xff]
      %v1493 = vld [vmem:[%s3 + $0x68] sm:$0xff]
      %v1494 = vld [vmem:[%s3 + $0x70] sm:$0xff]
      %v1495 = vld [vmem:[%s3 + $0x78] sm:$0xff]
      %v1496 = vld [vmem:[%s3 + $0x80] sm:$0xff]
      %v1497 = vld [vmem:[%s3 + $0x88] sm:$0xff]
      %v1498 = vld [vmem:[%s3 + $0x90] sm:$0xff]
      %v1499 = vld [vmem:[%s3 + $0x98] sm:$0xff]
      %v1500 = vld [vmem:[%s3 + $0xa0] sm:$0xff]
      %v1501 = vld [vmem:[%s3 + $0xa8] sm:$0xff]
      %v1502 = vld [vmem:[%s3 + $0xb0] sm:$0xff]
      %v1503 = vld [vmem:[%s3 + $0xb8] sm:$0xff]
      %v1504 = vld [vmem:[%s3 + $0xc0] sm:$0xff]
      %v1505 = vld [vmem:[%s3 + $0xc8] sm:$0xff]
      %v1506 = vld [vmem:[%s3 + $0xd0] sm:$0xff]
      %v1507 = vld [vmem:[%s3 + $0xd8] sm:$0xff]
      %v1508 = vld [vmem:[%s3 + $0xe0] sm:$0xff]
      %v1509 = vld [vmem:[%s3 + $0xe8] sm:$0xff]
      %v1510 = vld [vmem:[%s3 + $0xf0] sm:$0xff]
      %v1511 = vld [vmem:[%s3 + $0xf8] sm:$0xff]
      %v1512 = vld [vmem:[%s4] sm:$0x3]
      %v1514 = vlaneseq
      %v1515 = vshrl.u32 %v1514, 7
      %v1516 = vsub.s32 0, %v1515
      %v1517 = vrot.slane %v1512, %v1516
      %v1518 = vlaneseq
      %v1519 = vshrl.u32 %v1518, 7
      %v1520 = vsub.s32 1, %v1519
      %v1521 = vrot.slane %v1512, %v1520
      %v1556 = vunpack.c.l.b16 %v1480
      %v1557 = vunpack.c.h.b16 %v1480
      %v1558 = vunpack.c.l.b16 %v1481
      %v1559 = vunpack.c.h.b16 %v1481
      %v1560 = vunpack.c.l.b16 %v1482
      %v1561 = vunpack.c.h.b16 %v1482
      %v1562 = vunpack.c.l.b16 %v1483
      %v1563 = vunpack.c.h.b16 %v1483
      %v1564 = vunpack.c.l.b16 %v1484
      %v1565 = vunpack.c.h.b16 %v1484
      %v1566 = vunpack.c.l.b16 %v1485
      %v1567 = vunpack.c.h.b16 %v1485
      %v1568 = vunpack.c.l.b16 %v1486
      %v1569 = vunpack.c.h.b16 %v1486
      %v1570 = vunpack.c.l.b16 %v1487
      %v1571 = vunpack.c.h.b16 %v1487
      %v1572 = vunpack.c.l.b16 %v1488
      %v1573 = vunpack.c.h.b16 %v1488
      %v1574 = vunpack.c.l.b16 %v1489
      %v1575 = vunpack.c.h.b16 %v1489
      %v1576 = vunpack.c.l.b16 %v1490
      %v1577 = vunpack.c.h.b16 %v1490
      %v1578 = vunpack.c.l.b16 %v1491
      %v1579 = vunpack.c.h.b16 %v1491
      %v1580 = vunpack.c.l.b16 %v1492
      %v1581 = vunpack.c.h.b16 %v1492
      %v1582 = vunpack.c.l.b16 %v1493
      %v1583 = vunpack.c.h.b16 %v1493
      %v1584 = vunpack.c.l.b16 %v1494
      %v1585 = vunpack.c.h.b16 %v1494
      %v1586 = vunpack.c.l.b16 %v1495
      %v1587 = vunpack.c.h.b16 %v1495
      %v1588 = vunpack.c.l.b16 %v1496
      %v1589 = vunpack.c.h.b16 %v1496
      %v1590 = vunpack.c.l.b16 %v1497
      %v1591 = vunpack.c.h.b16 %v1497
      %v1592 = vunpack.c.l.b16 %v1498
      %v1593 = vunpack.c.h.b16 %v1498
      %v1594 = vunpack.c.l.b16 %v1499
      %v1595 = vunpack.c.h.b16 %v1499
      %v1596 = vunpack.c.l.b16 %v1500
      %v1597 = vunpack.c.h.b16 %v1500
      %v1598 = vunpack.c.l.b16 %v1501
      %v1599 = vunpack.c.h.b16 %v1501
      %v1600 = vunpack.c.l.b16 %v1502
      %v1601 = vunpack.c.h.b16 %v1502
      %v1602 = vunpack.c.l.b16 %v1503
      %v1603 = vunpack.c.h.b16 %v1503
      %v1604 = vunpack.c.l.b16 %v1504
      %v1605 = vunpack.c.h.b16 %v1504
      %v1606 = vunpack.c.l.b16 %v1505
      %v1607 = vunpack.c.h.b16 %v1505
      %v1608 = vunpack.c.l.b16 %v1506
      %v1609 = vunpack.c.h.b16 %v1506
      %v1610 = vunpack.c.l.b16 %v1507
      %v1611 = vunpack.c.h.b16 %v1507
      %v1612 = vunpack.c.l.b16 %v1508
      %v1613 = vunpack.c.h.b16 %v1508
      %v1614 = vunpack.c.l.b16 %v1509
      %v1615 = vunpack.c.h.b16 %v1509
      %v1616 = vunpack.c.l.b16 %v1510
      %v1617 = vunpack.c.h.b16 %v1510
      %v1618 = vunpack.c.l.b16 %v1511
      %v1619 = vunpack.c.h.b16 %v1511
      %v1620 = vpack.c.b16 %v1558, %v1556
      %v1621 = vpack.c.b16 %v1559, %v1557
      %v1622 = vpack.c.b16 %v1562, %v1560
      %v1623 = vpack.c.b16 %v1563, %v1561
      %v1624 = vpack.c.b16 %v1566, %v1564
      %v1625 = vpack.c.b16 %v1567, %v1565
      %v1626 = vpack.c.b16 %v1570, %v1568
      %v1627 = vpack.c.b16 %v1571, %v1569
      %v1628 = vpack.c.b16 %v1574, %v1572
      %v1629 = vpack.c.b16 %v1575, %v1573
      %v1630 = vpack.c.b16 %v1578, %v1576
      %v1631 = vpack.c.b16 %v1579, %v1577
      %v1632 = vpack.c.b16 %v1582, %v1580
      %v1633 = vpack.c.b16 %v1583, %v1581
      %v1634 = vpack.c.b16 %v1586, %v1584
      %v1635 = vpack.c.b16 %v1587, %v1585
      %v1636 = vpack.c.b16 %v1590, %v1588
      %v1637 = vpack.c.b16 %v1591, %v1589
      %v1638 = vpack.c.b16 %v1594, %v1592
      %v1639 = vpack.c.b16 %v1595, %v1593
      %v1640 = vpack.c.b16 %v1598, %v1596
      %v1641 = vpack.c.b16 %v1599, %v1597
      %v1642 = vpack.c.b16 %v1602, %v1600
      %v1643 = vpack.c.b16 %v1603, %v1601
      %v1644 = vpack.c.b16 %v1606, %v1604
      %v1645 = vpack.c.b16 %v1607, %v1605
      %v1646 = vpack.c.b16 %v1610, %v1608
      %v1647 = vpack.c.b16 %v1611, %v1609
      %v1648 = vpack.c.b16 %v1614, %v1612
      %v1649 = vpack.c.b16 %v1615, %v1613
      %v1650 = vpack.c.b16 %v1618, %v1616
      %v1651 = vpack.c.b16 %v1619, %v1617
      %1684 = vmatprep.subr.bf16.mxu0 %v1635
      %1685 = vmatpush1.bf16.msra.mxu0 %v1634
      %1686 = vmatprep.subr.bf16.mxu0 %v1633
      %1687 = vmatpush1.bf16.msra.mxu0 %v1632
      %1688 = vmatprep.subr.bf16.mxu0 %v1631
      %1689 = vmatpush1.bf16.msra.mxu0 %v1630
      %1690 = vmatprep.subr.bf16.mxu0 %v1629
      %1691 = vmatpush1.bf16.msra.mxu0 %v1628
      %1692 = vmatprep.subr.bf16.mxu0 %v1627
      %1693 = vmatpush1.bf16.msra.mxu0 %v1626
      %1694 = vmatprep.subr.bf16.mxu0 %v1625
      %1695 = vmatpush1.bf16.msra.mxu0 %v1624
      %1696 = vmatprep.subr.bf16.mxu0 %v1623
      %1697 = vmatpush1.bf16.msra.mxu0 %v1622
      %1698 = vmatprep.subr.bf16.mxu0 %v1621
      %1699 = vmatpush1.bf16.msra.mxu0 %v1620
      %1700 = vmatprep.subr.bf16.mxu0 %v1651
      %1701 = vmatpush2.bf16.msra.mxu0 %v1650
      %1702 = vmatprep.subr.bf16.mxu0 %v1649
      %1703 = vmatpush2.bf16.msra.mxu0 %v1648
      %1704 = vmatprep.subr.bf16.mxu0 %v1647
      %1705 = vmatpush2.bf16.msra.mxu0 %v1646
      %1706 = vmatprep.subr.bf16.mxu0 %v1645
      %1707 = vmatpush2.bf16.msra.mxu0 %v1644
      %1708 = vmatprep.subr.bf16.mxu0 %v1643
      %1709 = vmatpush2.bf16.msra.mxu0 %v1642
      %1710 = vmatprep.subr.bf16.mxu0 %v1641
      %1711 = vmatpush2.bf16.msra.mxu0 %v1640
      %1712 = vmatprep.subr.bf16.mxu0 %v1639
      %1713 = vmatpush2.bf16.msra.mxu0 %v1638
      %1714 = vmatprep.subr.bf16.mxu0 %v1637
      %1715 = vmatpush2.bf16.msra.mxu0 %v1636
      %1716 = vmatprep.mubr.bf16.mxu0 %v1479
      %1717 = vmatmul.mubr.bf16.gmra.mxu0 %v1478
      %v1718 = vpop.f32.mrf.mxu0
      %v1719 = vadd.f32 %v1517, %v1718
      %v1720 = vpop.f32.mrf.mxu0
      %v1721 = vadd.f32 %v1521, %v1720
      %v1722 = vpop.f32.mrf.mxu0
      %v1723 = vpop.f32.mrf.mxu0
      %1724 = vdwg.mxu0
      %v1725 = vadd.f32 %v281, %v1719
      %v1726 = vadd.f32 %v282, %v1721
      %v1727 = vadd.f32 %v1725, %v1726
      %1728 = vadd.xlane.f32.xlu0 %v1727
      %v1729 = vpop.xlane.xlu0 %1728
      %v1730 = vrcp.pop 256.0
      %v1731 = vmul.f32 %v1729, %v1730
      %v1732 = vsub.f32 %v1725, %v1731
      %v1733 = vsub.f32 %v1726, %v1731
      %v1734 = vmul.f32 %v1732, %v1732
      %v1735 = vmul.f32 %v1733, %v1733
      %v1736 = vadd.f32 %v1734, %v1735
      %1737 = vadd.xlane.f32.xlu0 %v1736
      %v1738 = vpop.xlane.xlu0 %1737
      %v1739 = vmul.f32 %v1738, %v1730
      %v1740 = vadd.f32 %v1739, 1e-05
      %v1741 = vrsqrt.pop %v1740
      %v1742 = vmul.f32 %v1732, %v1741
      %v1743 = vmul.f32 %v1733, %v1741
      %v1744 = vld [vmem:[%s5] sm:$0x3]
      %v1746 = vlaneseq
      %v1747 = vshrl.u32 %v1746, 7
      %v1748 = vsub.s32 0, %v1747
      %v1749 = vrot.slane %v1744, %v1748
      %v1750 = vlaneseq
      %v1751 = vshrl.u32 %v1750, 7
      %v1752 = vsub.s32 1, %v1751
      %v1753 = vrot.slane %v1744, %v1752
      %v1756 = vmul.f32 %v1742, %v1749
      %v1757 = vmul.f32 %v1743, %v1753
      %v1758 = vld [vmem:[%s6] sm:$0x3]
      %v1760 = vlaneseq
      %v1761 = vshrl.u32 %v1760, 7
      %v1762 = vsub.s32 0, %v1761
      %v1763 = vrot.slane %v1758, %v1762
      %v1764 = vlaneseq
      %v1765 = vshrl.u32 %v1764, 7
      %v1766 = vsub.s32 1, %v1765
      %v1767 = vrot.slane %v1758, %v1766
      %v1770 = vadd.f32 %v1756, %v1763
      %v1771 = vadd.f32 %v1757, %v1767
      %v1772 = vpack.c.bf16 %v1770, %v1770
      %v1773 = vpack.c.bf16 %v1771, %v1771
      %v1776 = vunpack.c.l.b16 %v1772
      %v1777 = vunpack.c.l.b16 %v1773
      %v1778 = vpack.c.b16 %v1777, %v1776
      %1780 = vst [vmem:[%s278] sm:$0xff] %v1778
      %p1781 = scmp.lt.s32.totalorder %s18, 1
      %s1782 = scalar_select %p1781, %s18, 1
      %s1783 = smul.addr %s1782, 2
      %s1784 = smul.addr %s1783, 4
      %s1785 = scalar_lea.vmem %s7, %s1784
      // Predicated region
      $region49: #{discriminator_forward.9} parent=47 // pred_check
        %p1786 = pneg %p188
      $region50: #{discriminator_forward.9} parent=47 // pred_check_branch
        %1788 = sbr.rel (%p1786) target = $region52
      $region51: #{discriminator_forward.9} parent=47 // pred_region
        _
      $region52: #{discriminator_forward.9} parent=47 // pred_fallthru
        _
    $region48: #{discriminator_forward.9} parent=5 // pred_fallthru
      _
    %p1789 = scmp.le.s32.totalorder 2, %s13
    // Predicated region
    $region53: #{discriminator_forward.9} parent=5 // pred_check
      %p1790 = pneg %p1789
    $region54: #{discriminator_forward.9} parent=5 // pred_check_branch
      %1792 = sbr.rel (%p1790) target = $region56
    $region55: #{discriminator_forward.9} parent=5 // pred_region
      %s1793 = ssub.s32 %s13, 2
      // Predicated region
      $region57: #{discriminator_forward.9} parent=55 // pred_check
        %p1794 = pneg %p194
      $region58: #{discriminator_forward.9} parent=55 // pred_check_branch
        %1796 = sbr.rel (%p1794) target = $region60
      $region59: #{discriminator_forward.9} parent=55 // pred_region
        %p1797 = scmp.lt.s32.totalorder %s19, 1
        %s1798 = scalar_select %p1797, %s19, 1
        %s1799 = smul.addr %s1798, 2
        %s1800 = smul.addr %s1799, 4
        %s1801 = scalar_lea.vmem %s7, %s1800
      $region60: #{discriminator_forward.9} parent=55 // pred_fallthru
        _
    $region56: #{discriminator_forward.9} parent=5 // pred_fallthru
      _
  $region6: #{discriminator_forward.9} parent=0 // loop_footer
    %s17 = sadd.s32 1, %s13
  $region7: #{discriminator_forward.9} parent=0 // loop_footer_branch
    %12 = sbr.rel target = $region3
  $region8: #{discriminator_forward.9} parent=0 // loop_exit
    _

// kernel: discriminator_forward.7
$region0: #{discriminator_forward.7}
  #allocation0 [shape = 'u32[]', space=smem, size = 0x4, offset = 0x4, fixed_abs, tag = 'smem constant byte address 0x4 - core index']
  #allocation1 [shape = 'u32[144,128]{1,0:T(1,128)}', space=vmem, size = 0x12000, scoped, tag = 'internal scratch']
  %s0 = inlined_call_operand.vmem [shape: bf16[2,8,256], index: 0, kind: input, shape index: {}]
  %s1 = inlined_call_operand.hbm [shape: bf16[256,768], index: 1, kind: input, shape index: {}]
  %s2 = inlined_call_operand.vmem [shape: f32[1,768], index: 2, kind: input, shape index: {}]
  %s3 = inlined_call_operand.hbm [shape: bf16[256,256], index: 3, kind: input, shape index: {}]
  %s4 = inlined_call_operand.vmem [shape: f32[1,256], index: 4, kind: input, shape index: {}]
  %s5 = inlined_call_operand.vmem [shape: f32[1,256], index: 5, kind: input, shape index: {}]
  %s6 = inlined_call_operand.vmem [shape: f32[1,256], index: 6, kind: input, shape index: {}]
  %s7 = inlined_call_operand.vmem [shape: bf16[2,8,256], index: 7, kind: output, shape index: {}]
  %s8 = sld [smem:[#allocation0]]
  $region69: #{discriminator_forward.7} parent=0
    _
  %s10 = ssub.s32 1, %s8
  %s11 = scalar_select 0, %s10, %s8
  $region1: #{discriminator_forward.7} parent=0
    #allocation2 [shape = 'u8[393216]{0}', space=vmem, size = 0x60000, scoped, tag = 'input window, operand 1, single buffered']
    #allocation3 [shape = 's32[2]{0}', space=sflag, size = 0x8, scoped, tag = 'scoped memory for discriminator_forward.7']
    #allocation4 [shape = 'u8[131072]{0}', space=vmem, size = 0x20000, scoped, tag = 'input window, operand 3, single buffered']
    #allocation5 [shape = 's32[1]{0}', space=sflag, size = 0x4, scoped, tag = 'scoped memory for discriminator_forward.7']
    %12 = vsyncpa [#allocation3], 0
    %13 = vsyncpa [#allocation5], 0
    loop: start=0, step=1, limit=4
    $region2: #{discriminator_forward.7} parent=1 // loop_pre_header
      _
    $region3: #{discriminator_forward.7} parent=1 // loop_header
      %s15 = sphi 0, %s19
      %p16 = scmp.ge.s32.totalorder %s15, 4
      %s25 = sphi 0, %s27
      %s28 = sphi 0, %s25
      %s29 = sphi 0, %s28
      %s45 = sphi 0, %s29
      %s49 = sphi 0, %s49
      %s51 = sphi 0, %s49
      %s52 = sphi 0, %s51
      %s66 = sphi 0, %s52
      %s70 = sphi 0, %s70
      %s72 = sphi 0, %s70
      %s73 = sphi 0, %s72
      %s87 = sphi 0, %s73
      %s91 = sphi 0, %s91
      %s93 = sphi 0, %s91
      %s94 = sphi 0, %s93
      %s108 = sphi 0, %s94
      %s112 = sphi 0, %s112
      %s114 = sphi 0, %s112
      %s115 = sphi 0, %s114
      %s129 = sphi 0, %s115
      %s133 = sphi 0, %s133
      %s135 = sphi 0, %s133
      %s136 = sphi 0, %s135
      %s150 = sphi 0, %s136
      %s154 = sphi 0, %s154
      %s156 = sphi 0, %s154
      %s157 = sphi 0, %s156
      %s171 = sphi 0, %s157
      %s177 = sphi 0, %s179
      %s180 = sphi 0, %s177
      %s181 = sphi 0, %s180
      %s197 = sphi 0, %s181
    $region4: #{discriminator_forward.7} parent=1 // loop_header_branch
      %18 = sbr.rel (%p16) target = $region8
    $region5: #{discriminator_forward.7} parent=1 // loop_body
      %s20 = ssub.s32 %s15, 1
      %s21 = ssub.s32 %s15, 2
      %s22 = sadd.s32 %s15, 1
      %s23 = ssub.s32 %s15, %s22
      %p24 = scmp.eq.s32.totalorder %s23, 0
      %s26 = sadd.s32 %s25, 1
      %s27 = scalar_select %p24, %s25, %s26
      %p30 = pneg %p24
      %p31 = scmp.eq.s32.totalorder %s15, 1
      %p32 = por %p30, %p31
      %p33 = scmp.ne.s32.totalorder %s25, %s28
      %p34 = scmp.eq.s32.totalorder %s15, 0
      %p35 = por %p33, %p34
      %p36 = scmp.ne.s32.totalorder %s25, %s28
      %p37 = scmp.eq.s32.totalorder %s20, 1
      %p38 = por %p36, %p37
      %p39 = scmp.ne.s32.totalorder %s28, %s29
      %p40 = scmp.eq.s32.totalorder %s20, 0
      %p41 = por %p39, %p40
      %p42 = scmp.ne.s32.totalorder %s28, %s29
      %p43 = scmp.eq.s32.totalorder %s21, 1
      %p44 = por %p42, %p43
      %p46 = scmp.ne.s32.totalorder %s29, %s45
      %p47 = scmp.eq.s32.totalorder %s21, 0
      %p48 = por %p46, %p47
      %s50 = sadd.s32 %s49, 1
      %p53 = scmp.eq.s32.totalorder %s15, 1
      %p54 = scmp.ne.s32.totalorder %s49, %s51
      %p55 = scmp.eq.s32.totalorder %s15, 0
      %p56 = por %p54, %p55
      %p57 = scmp.ne.s32.totalorder %s49, %s51
      %p58 = scmp.eq.s32.totalorder %s20, 1
      %p59 = por %p57, %p58
      %p60 = scmp.ne.s32.totalorder %s51, %s52
      %p61 = scmp.eq.s32.totalorder %s20, 0
      %p62 = por %p60, %p61
      %p63 = scmp.ne.s32.totalorder %s51, %s52
      %p64 = scmp.eq.s32.totalorder %s21, 1
      %p65 = por %p63, %p64
      %p67 = scmp.ne.s32.totalorder %s52, %s66
      %p68 = scmp.eq.s32.totalorder %s21, 0
      %p69 = por %p67, %p68
      %s71 = sadd.s32 %s70, 1
      %p74 = scmp.eq.s32.totalorder %s15, 1
      %p75 = scmp.ne.s32.totalorder %s70, %s72
      %p76 = scmp.eq.s32.totalorder %s15, 0
      %p77 = por %p75, %p76
      %p78 = scmp.ne.s32.totalorder %s70, %s72
      %p79 = scmp.eq.s32.totalorder %s20, 1
      %p80 = por %p78, %p79
      %p81 = scmp.ne.s32.totalorder %s72, %s73
      %p82 = scmp.eq.s32.totalorder %s20, 0
      %p83 = por %p81, %p82
      %p84 = scmp.ne.s32.totalorder %s72, %s73
      %p85 = scmp.eq.s32.totalorder %s21, 1
      %p86 = por %p84, %p85
      %p88 = scmp.ne.s32.totalorder %s73, %s87
      %p89 = scmp.eq.s32.totalorder %s21, 0
      %p90 = por %p88, %p89
      %s92 = sadd.s32 %s91, 1
      %p95 = scmp.eq.s32.totalorder %s15, 1
      %p96 = scmp.ne.s32.totalorder %s91, %s93
      %p97 = scmp.eq.s32.totalorder %s15, 0
      %p98 = por %p96, %p97
      %p99 = scmp.ne.s32.totalorder %s91, %s93
      %p100 = scmp.eq.s32.totalorder %s20, 1
      %p101 = por %p99, %p100
      %p102 = scmp.ne.s32.totalorder %s93, %s94
      %p103 = scmp.eq.s32.totalorder %s20, 0
      %p104 = por %p102, %p103
      %p105 = scmp.ne.s32.totalorder %s93, %s94
      %p106 = scmp.eq.s32.totalorder %s21, 1
      %p107 = por %p105, %p106
      %p109 = scmp.ne.s32.totalorder %s94, %s108
      %p110 = scmp.eq.s32.totalorder %s21, 0
      %p111 = por %p109, %p110
      %s113 = sadd.s32 %s112, 1
      %p116 = scmp.eq.s32.totalorder %s15, 1
      %p117 = scmp.ne.s32.totalorder %s112, %s114
      %p118 = scmp.eq.s32.totalorder %s15, 0
      %p119 = por %p117, %p118
      %p120 = scmp.ne.s32.totalorder %s112, %s114
      %p121 = scmp.eq.s32.totalorder %s20, 1
      %p122 = por %p120, %p121
      %p123 = scmp.ne.s32.totalorder %s114, %s115
      %p124 = scmp.eq.s32.totalorder %s20, 0
      %p125 = por %p123, %p124
      %p126 = scmp.ne.s32.totalorder %s114, %s115
      %p127 = scmp.eq.s32.totalorder %s21, 1
      %p128 = por %p126, %p127
      %p130 = scmp.ne.s32.totalorder %s115, %s129
      %p131 = scmp.eq.s32.totalorder %s21, 0
      %p132 = por %p130, %p131
      %s134 = sadd.s32 %s133, 1
      %p137 = scmp.eq.s32.totalorder %s15, 1
      %p138 = scmp.ne.s32.totalorder %s133, %s135
      %p139 = scmp.eq.s32.totalorder %s15, 0
      %p140 = por %p138, %p139
      %p141 = scmp.ne.s32.totalorder %s133, %s135
      %p142 = scmp.eq.s32.totalorder %s20, 1
      %p143 = por %p141, %p142
      %p144 = scmp.ne.s32.totalorder %s135, %s136
      %p145 = scmp.eq.s32.totalorder %s20, 0
      %p146 = por %p144, %p145
      %p147 = scmp.ne.s32.totalorder %s135, %s136
      %p148 = scmp.eq.s32.totalorder %s21, 1
      %p149 = por %p147, %p148
      %p151 = scmp.ne.s32.totalorder %s136, %s150
      %p152 = scmp.eq.s32.totalorder %s21, 0
      %p153 = por %p151, %p152
      %s155 = sadd.s32 %s154, 1
      %p158 = scmp.eq.s32.totalorder %s15, 1
      %p159 = scmp.ne.s32.totalorder %s154, %s156
      %p160 = scmp.eq.s32.totalorder %s15, 0
      %p161 = por %p159, %p160
      %p162 = scmp.ne.s32.totalorder %s154, %s156
      %p163 = scmp.eq.s32.totalorder %s20, 1
      %p164 = por %p162, %p163
      %p165 = scmp.ne.s32.totalorder %s156, %s157
      %p166 = scmp.eq.s32.totalorder %s20, 0
      %p167 = por %p165, %p166
      %p168 = scmp.ne.s32.totalorder %s156, %s157
      %p169 = scmp.eq.s32.totalorder %s21, 1
      %p170 = por %p168, %p169
      %p172 = scmp.ne.s32.totalorder %s157, %s171
      %p173 = scmp.eq.s32.totalorder %s21, 0
      %p174 = por %p172, %p173
      %s175 = ssub.s32 %s15, %s22
      %p176 = scmp.eq.s32.totalorder %s175, 0
      %s178 = sadd.s32 %s177, 1
      %s179 = scalar_select %p176, %s177, %s178
      %p182 = pneg %p176
      %p183 = scmp.eq.s32.totalorder %s15, 1
      %p184 = por %p182, %p183
      %p185 = scmp.ne.s32.totalorder %s177, %s180
      %p186 = scmp.eq.s32.totalorder %s15, 0
      %p187 = por %p185, %p186
      %p188 = scmp.ne.s32.totalorder %s177, %s180
      %p189 = scmp.eq.s32.totalorder %s20, 1
      %p190 = por %p188, %p189
      %p191 = scmp.ne.s32.totalorder %s180, %s181
      %p192 = scmp.eq.s32.totalorder %s20, 0
      %p193 = por %p191, %p192
      %p194 = scmp.ne.s32.totalorder %s180, %s181
      %p195 = scmp.eq.s32.totalorder %s21, 1
      %p196 = por %p194, %p195
      %p198 = scmp.ne.s32.totalorder %s181, %s197
      %p199 = scmp.eq.s32.totalorder %s21, 0
      %p200 = por %p198, %p199
      %p201 = scmp.le.s32.totalorder 1, %s15
      %p202 = scmp.lt.s32.totalorder %s15, 3
      %p203 = pnand %p201, %p202
      %p204 = pneg %p203
      // Predicated region
      $region9: #{discriminator_forward.7} parent=5 // pred_check
        _
      $region10: #{discriminator_forward.7} parent=5 // pred_check_branch
        %206 = sbr.rel (%p203) target = $region12
      $region11: #{discriminator_forward.7} parent=5 // pred_region
        %s207 = ssub.s32 %s15, 1
        // Predicated region
        $region13: #{discriminator_forward.7} parent=11 // pred_check
          %p208 = pneg %p62
        $region14: #{discriminator_forward.7} parent=11 // pred_check_branch
          %210 = sbr.rel (%p208) target = $region16
        $region15: #{discriminator_forward.7} parent=11 // pred_region
          %s212 = ssub.s32 12288, 12288
          %213 = vsyncadd [#allocation3], %s212
          %s214 = sshll.u32 [#allocation2], 4
          %s215 = int_to_ptr.vmem [resolvable:$true] %s214
          %220 = dma.hbm_to_vmem [thread:$0]  %s1, 12288, %s215, [#allocation3], 384, 384, 24
        $region16: #{discriminator_forward.7} parent=11 // pred_fallthru
          _
        // Predicated region
        $region17: #{discriminator_forward.7} parent=11 // pred_check
          %p221 = pneg %p83
        $region18: #{discriminator_forward.7} parent=11 // pred_check_branch
          %223 = sbr.rel (%p221) target = $region20
        $region19: #{discriminator_forward.7} parent=11 // pred_region
          _
        $region20: #{discriminator_forward.7} parent=11 // pred_fallthru
          _
        // Predicated region
        $region21: #{discriminator_forward.7} parent=11 // pred_check
          %p224 = pneg %p104
        $region22: #{discriminator_forward.7} parent=11 // pred_check_branch
          %226 = sbr.rel (%p224) target = $region24
        $region23: #{discriminator_forward.7} parent=11 // pred_region
          %s228 = ssub.s32 4096, 4096
          %229 = vsyncadd [#allocation5], %s228
          %s230 = sshll.u32 [#allocation4], 4
          %s231 = int_to_ptr.vmem [resolvable:$true] %s230
          %236 = dma.hbm_to_vmem [thread:$0]  %s3, 4096, %s231, [#allocation5], 128, 128, 8
        $region24: #{discriminator_forward.7} parent=11 // pred_fallthru
          _
        // Predicated region
        $region25: #{discriminator_forward.7} parent=11 // pred_check
          %p237 = pneg %p125
        $region26: #{discriminator_forward.7} parent=11 // pred_check_branch
          %239 = sbr.rel (%p237) target = $region28
        $region27: #{discriminator_forward.7} parent=11 // pred_region
          _
        $region28: #{discriminator_forward.7} parent=11 // pred_fallthru
          _
        // Predicated region
        $region29: #{discriminator_forward.7} parent=11 // pred_check
          %p240 = pneg %p146
        $region30: #{discriminator_forward.7} parent=11 // pred_check_branch
          %242 = sbr.rel (%p240) target = $region32
        $region31: #{discriminator_forward.7} parent=11 // pred_region
          _
        $region32: #{discriminator_forward.7} parent=11 // pred_fallthru
          _
        // Predicated region
        $region33: #{discriminator_forward.7} parent=11 // pred_check
          %p243 = pneg %p167
        $region34: #{discriminator_forward.7} parent=11 // pred_check_branch
          %245 = sbr.rel (%p243) target = $region36
        $region35: #{discriminator_forward.7} parent=11 // pred_region
          _
        $region36: #{discriminator_forward.7} parent=11 // pred_fallthru
          _
      $region12: #{discriminator_forward.7} parent=5 // pred_fallthru
        _
      %p246 = scmp.lt.s32.totalorder %s15, 2
      // Predicated region
      $region37: #{discriminator_forward.7} parent=5 // pred_check
        %p247 = pneg %p246
      $region38: #{discriminator_forward.7} parent=5 // pred_check_branch
        %249 = sbr.rel (%p247) target = $region40
      $region39: #{discriminator_forward.7} parent=5 // pred_region
        // Predicated region
        $region41: #{discriminator_forward.7} parent=39 // pred_check
          %p250 = pneg %p35
        $region42: #{discriminator_forward.7} parent=39 // pred_check_branch
          %252 = sbr.rel (%p250) target = $region44
        $region43: #{discriminator_forward.7} parent=39 // pred_region
          %p253 = scmp.lt.s32.totalorder %s15, 1
          %s254 = scalar_select %p253, %s15, 1
          %s255 = smul.addr %s254, 2
          %s256 = smul.addr %s255, 4
          %s257 = scalar_lea.vmem %s0, %s256
        $region44: #{discriminator_forward.7} parent=39 // pred_fallthru
          _
      $region40: #{discriminator_forward.7} parent=5 // pred_fallthru
        _
      %p258 = scmp.le.s32.totalorder 1, %s15
      %p259 = scmp.lt.s32.totalorder %s15, 3
      %p260 = pnand %p258, %p259
      %p261 = pneg %p260
      // Predicated region
      $region45: #{discriminator_forward.7} parent=5 // pred_check
        _
      $region46: #{discriminator_forward.7} parent=5 // pred_check_branch
        %263 = sbr.rel (%p260) target = $region48
      $region47: #{discriminator_forward.7} parent=5 // pred_region
        %s264 = ssub.s32 %s15, 1
        // Predicated region
        $region49: #{discriminator_forward.7} parent=47 // pred_check
          %p265 = pneg %p62
        $region50: #{discriminator_forward.7} parent=47 // pred_check_branch
          %267 = sbr.rel (%p265) target = $region52
        $region51: #{discriminator_forward.7} parent=47 // pred_region
          %268 = dma.done [#allocation3], 12288
        $region52: #{discriminator_forward.7} parent=47 // pred_fallthru
          _
        // Predicated region
        $region53: #{discriminator_forward.7} parent=47 // pred_check
          %p269 = pneg %p104
        $region54: #{discriminator_forward.7} parent=47 // pred_check_branch
          %271 = sbr.rel (%p269) target = $region56
        $region55: #{discriminator_forward.7} parent=47 // pred_region
          %272 = dma.done [#allocation5], 4096
        $region56: #{discriminator_forward.7} parent=47 // pred_fallthru
          _
        %p273 = scmp.lt.s32.totalorder %s20, 1
        %s274 = scalar_select %p273, %s20, 1
        %s275 = smul.addr %s274, 2
        %s276 = smul.addr %s275, 4
        %s277 = scalar_lea.vmem %s0, %s276
        %p278 = pneg %p41
        %p279 = pneg %p38
        %p280 = pneg %p62
        %p281 = pneg %p59
        %p282 = pneg %p83
        %p283 = pneg %p80
        %p284 = pneg %p104
        %p285 = pneg %p101
        %p286 = pneg %p125
        %p287 = pneg %p122
        %p288 = pneg %p146
        %p289 = pneg %p143
        %p290 = pneg %p167
        %p291 = pneg %p164
        %p292 = pneg %p193
        %p293 = pneg %p190
        %p294 = scmp.lt.s32.totalorder %s20, 1
        %s295 = scalar_select %p294, %s20, 1
        %s296 = smul.addr %s295, 2
        %s297 = smul.addr %s296, 4
        %s298 = scalar_lea.vmem %s7, %s297
        %p299 = scmp.lt.s32.totalorder %s20, 1
        %s300 = scalar_select %p299, %s20, 1
        %s301 = smul.addr %s300, 2
        %s302 = smul.addr %s301, 4
        %s303 = scalar_lea.vmem %s0, %s302
        %p304 = scmp.lt.s32.totalorder %s20, 1
        %s305 = scalar_select %p304, %s20, 1
        %s306 = smul.addr %s305, 2
        %s307 = smul.addr %s306, 4
        %s308 = scalar_lea.vmem %s7, %s307
        %v310 = vld [vmem:[%s303] sm:$0xff]
        %v311 = vunpack.c.l.bf16 %v310
        %v312 = vunpack.c.h.bf16 %v310
        %v313 = vld [vmem:[#allocation2] sm:$0xff]
        %v314 = vld [vmem:[#allocation2 + $0x8] sm:$0xff]
        %v315 = vld [vmem:[#allocation2 + $0x10] sm:$0xff]
        %v316 = vld [vmem:[#allocation2 + $0x18] sm:$0xff]
        %v317 = vld [vmem:[#allocation2 + $0x20] sm:$0xff]
        %v318 = vld [vmem:[#allocation2 + $0x28] sm:$0xff]
        %v319 = vld [vmem:[#allocation2 + $0x30] sm:$0xff]
        %v320 = vld [vmem:[#allocation2 + $0x38] sm:$0xff]
        %v321 = vld [vmem:[#allocation2 + $0x40] sm:$0xff]
        %v322 = vld [vmem:[#allocation2 + $0x48] sm:$0xff]
        %v323 = vld [vmem:[#allocation2 + $0x50] sm:$0xff]
        %v324 = vld [vmem:[#allocation2 + $0x58] sm:$0xff]
        %v325 = vld [vmem:[#allocation2 + $0x60] sm:$0xff]
        %v326 = vld [vmem:[#allocation2 + $0x68] sm:$0xff]
        %v327 = vld [vmem:[#allocation2 + $0x70] sm:$0xff]
        %v328 = vld [vmem:[#allocation2 + $0x78] sm:$0xff]
        %v329 = vld [vmem:[#allocation2 + $0x80] sm:$0xff]
        %v330 = vld [vmem:[#allocation2 + $0x88] sm:$0xff]
        %v331 = vld [vmem:[#allocation2 + $0x90] sm:$0xff]
        %v332 = vld [vmem:[#allocation2 + $0x98] sm:$0xff]
        %v333 = vld [vmem:[#allocation2 + $0xa0] sm:$0xff]
        %v334 = vld [vmem:[#allocation2 + $0xa8] sm:$0xff]
        %v335 = vld [vmem:[#allocation2 + $0xb0] sm:$0xff]
        %v336 = vld [vmem:[#allocation2 + $0xb8] sm:$0xff]
        %v337 = vld [vmem:[#allocation2 + $0xc0] sm:$0xff]
        %v338 = vld [vmem:[#allocation2 + $0xc8] sm:$0xff]
        %v339 = vld [vmem:[#allocation2 + $0xd0] sm:$0xff]
        %v340 = vld [vmem:[#allocation2 + $0xd8] sm:$0xff]
        %v341 = vld [vmem:[#allocation2 + $0xe0] sm:$0xff]
        %v342 = vld [vmem:[#allocation2 + $0xe8] sm:$0xff]
        %v343 = vld [vmem:[#allocation2 + $0xf0] sm:$0xff]
        %v344 = vld [vmem:[#allocation2 + $0xf8] sm:$0xff]
        %v345 = vld [vmem:[#allocation2 + $0x100] sm:$0xff]
        %v346 = vld [vmem:[#allocation2 + $0x108] sm:$0xff]
        %v347 = vld [vmem:[#allocation2 + $0x110] sm:$0xff]
        %v348 = vld [vmem:[#allocation2 + $0x118] sm:$0xff]
        %v349 = vld [vmem:[#allocation2 + $0x120] sm:$0xff]
        %v350 = vld [vmem:[#allocation2 + $0x128] sm:$0xff]
        %v351 = vld [vmem:[#allocation2 + $0x130] sm:$0xff]
        %v352 = vld [vmem:[#allocation2 + $0x138] sm:$0xff]
        %v353 = vld [vmem:[#allocation2 + $0x140] sm:$0xff]
        %v354 = vld [vmem:[#allocation2 + $0x148] sm:$0xff]
        %v355 = vld [vmem:[#allocation2 + $0x150] sm:$0xff]
        %v356 = vld [vmem:[#allocation2 + $0x158] sm:$0xff]
        %v357 = vld [vmem:[#allocation2 + $0x160] sm:$0xff]
        %v358 = vld [vmem:[#allocation2 + $0x168] sm:$0xff]
        %v359 = vld [vmem:[#allocation2 + $0x170] sm:$0xff]
        %v360 = vld [vmem:[#allocation2 + $0x178] sm:$0xff]
        %v361 = vld [vmem:[#allocation2 + $0x180] sm:$0xff]
        %v362 = vld [vmem:[#allocation2 + $0x188] sm:$0xff]
        %v363 = vld [vmem:[#allocation2 + $0x190] sm:$0xff]
        %v364 = vld [vmem:[#allocation2 + $0x198] sm:$0xff]
        %v365 = vld [vmem:[#allocation2 + $0x1a0] sm:$0xff]
        %v366 = vld [vmem:[#allocation2 + $0x1a8] sm:$0xff]
        %v367 = vld [vmem:[#allocation2 + $0x1b0] sm:$0xff]
        %v368 = vld [vmem:[#allocation2 + $0x1b8] sm:$0xff]
        %v369 = vld [vmem:[#allocation2 + $0x1c0] sm:$0xff]
        %v370 = vld [vmem:[#allocation2 + $0x1c8] sm:$0xff]
        %v371 = vld [vmem:[#allocation2 + $0x1d0] sm:$0xff]
        %v372 = vld [vmem:[#allocation2 + $0x1d8] sm:$0xff]
        %v373 = vld [vmem:[#allocation2 + $0x1e0] sm:$0xff]
        %v374 = vld [vmem:[#allocation2 + $0x1e8] sm:$0xff]
        %v375 = vld [vmem:[#allocation2 + $0x1f0] sm:$0xff]
        %v376 = vld [vmem:[#allocation2 + $0x1f8] sm:$0xff]
        %v377 = vld [vmem:[#allocation2 + $0x200] sm:$0xff]
        %v378 = vld [vmem:[#allocation2 + $0x208] sm:$0xff]
        %v379 = vld [vmem:[#allocation2 + $0x210] sm:$0xff]
        %v380 = vld [vmem:[#allocation2 + $0x218] sm:$0xff]
        %v381 = vld [vmem:[#allocation2 + $0x220] sm:$0xff]
        %v382 = vld [vmem:[#allocation2 + $0x228] sm:$0xff]
        %v383 = vld [vmem:[#allocation2 + $0x230] sm:$0xff]
        %v384 = vld [vmem:[#allocation2 + $0x238] sm:$0xff]
        %v385 = vld [vmem:[#allocation2 + $0x240] sm:$0xff]
        %v386 = vld [vmem:[#allocation2 + $0x248] sm:$0xff]
        %v387 = vld [vmem:[#allocation2 + $0x250] sm:$0xff]
        %v388 = vld [vmem:[#allocation2 + $0x258] sm:$0xff]
        %v389 = vld [vmem:[#allocation2 + $0x260] sm:$0xff]
        %v390 = vld [vmem:[#allocation2 + $0x268] sm:$0xff]
        %v391 = vld [vmem:[#allocation2 + $0x270] sm:$0xff]
        %v392 = vld [vmem:[#allocation2 + $0x278] sm:$0xff]
        %v393 = vld [vmem:[#allocation2 + $0x280] sm:$0xff]
        %v394 = vld [vmem:[#allocation2 + $0x288] sm:$0xff]
        %v395 = vld [vmem:[#allocation2 + $0x290] sm:$0xff]
        %v396 = vld [vmem:[#allocation2 + $0x298] sm:$0xff]
        %v397 = vld [vmem:[#allocation2 + $0x2a0] sm:$0xff]
        %v398 = vld [vmem:[#allocation2 + $0x2a8] sm:$0xff]
        %v399 = vld [vmem:[#allocation2 + $0x2b0] sm:$0xff]
        %v400 = vld [vmem:[#allocation2 + $0x2b8] sm:$0xff]
        %v401 = vld [vmem:[#allocation2 + $0x2c0] sm:$0xff]
        %v402 = vld [vmem:[#allocation2 + $0x2c8] sm:$0xff]
        %v403 = vld [vmem:[#allocation2 + $0x2d0] sm:$0xff]
        %v404 = vld [vmem:[#allocation2 + $0x2d8] sm:$0xff]
        %v405 = vld [vmem:[#allocation2 + $0x2e0] sm:$0xff]
        %v406 = vld [vmem:[#allocation2 + $0x2e8] sm:$0xff]
        %v407 = vld [vmem:[#allocation2 + $0x2f0] sm:$0xff]
        %v408 = vld [vmem:[#allocation2 + $0x2f8] sm:$0xff]
        %v409 = vld [vmem:[%s2] sm:$0x3f]
        %v411 = vlaneseq
        %v412 = vshrl.u32 %v411, 7
        %v413 = vsub.s32 0, %v412
        %v414 = vrot.slane %v409, %v413
        %v415 = vlaneseq
        %v416 = vshrl.u32 %v415, 7
        %v417 = vsub.s32 1, %v416
        %v418 = vrot.slane %v409, %v417
        %v419 = vlaneseq
        %v420 = vshrl.u32 %v419, 7
        %v421 = vsub.s32 2, %v420
        %v422 = vrot.slane %v409, %v421
        %v423 = vlaneseq
        %v424 = vshrl.u32 %v423, 7
        %v425 = vsub.s32 3, %v424
        %v426 = vrot.slane %v409, %v425
        %v427 = vlaneseq
        %v428 = vshrl.u32 %v427, 7
        %v429 = vsub.s32 4, %v428
        %v430 = vrot.slane %v409, %v429
        %v431 = vlaneseq
        %v432 = vshrl.u32 %v431, 7
        %v433 = vsub.s32 5, %v432
        %v434 = vrot.slane %v409, %v433
        %v442 = vunpack.c.l.b16 %v310
        %v443 = vunpack.c.h.b16 %v310
        %v444 = vpack.c.b16 %v442, %v442
        %v445 = vpack.c.b16 %v443, %v443
        %v544 = vunpack.c.l.b16 %v313
        %v545 = vunpack.c.h.b16 %v313
        %v546 = vunpack.c.l.b16 %v314
        %v547 = vunpack.c.h.b16 %v314
        %v548 = vunpack.c.l.b16 %v315
        %v549 = vunpack.c.h.b16 %v315
        %v550 = vunpack.c.l.b16 %v316
        %v551 = vunpack.c.h.b16 %v316
        %v552 = vunpack.c.l.b16 %v317
        %v553 = vunpack.c.h.b16 %v317
        %v554 = vunpack.c.l.b16 %v318
        %v555 = vunpack.c.h.b16 %v318
        %v556 = vunpack.c.l.b16 %v319
        %v557 = vunpack.c.h.b16 %v319
        %v558 = vunpack.c.l.b16 %v320
        %v559 = vunpack.c.h.b16 %v320
        %v560 = vunpack.c.l.b16 %v321
        %v561 = vunpack.c.h.b16 %v321
        %v562 = vunpack.c.l.b16 %v322
        %v563 = vunpack.c.h.b16 %v322
        %v564 = vunpack.c.l.b16 %v323
        %v565 = vunpack.c.h.b16 %v323
        %v566 = vunpack.c.l.b16 %v324
        %v567 = vunpack.c.h.b16 %v324
        %v568 = vunpack.c.l.b16 %v325
        %v569 = vunpack.c.h.b16 %v325
        %v570 = vunpack.c.l.b16 %v326
        %v571 = vunpack.c.h.b16 %v326
        %v572 = vunpack.c.l.b16 %v327
        %v573 = vunpack.c.h.b16 %v327
        %v574 = vunpack.c.l.b16 %v328
        %v575 = vunpack.c.h.b16 %v328
        %v576 = vunpack.c.l.b16 %v329
        %v577 = vunpack.c.h.b16 %v329
        %v578 = vunpack.c.l.b16 %v330
        %v579 = vunpack.c.h.b16 %v330
        %v580 = vunpack.c.l.b16 %v331
        %v581 = vunpack.c.h.b16 %v331
        %v582 = vunpack.c.l.b16 %v332
        %v583 = vunpack.c.h.b16 %v332
        %v584 = vunpack.c.l.b16 %v333
        %v585 = vunpack.c.h.b16 %v333
        %v586 = vunpack.c.l.b16 %v334
        %v587 = vunpack.c.h.b16 %v334
        %v588 = vunpack.c.l.b16 %v335
        %v589 = vunpack.c.h.b16 %v335
        %v590 = vunpack.c.l.b16 %v336
        %v591 = vunpack.c.h.b16 %v336
        %v592 = vunpack.c.l.b16 %v337
        %v593 = vunpack.c.h.b16 %v337
        %v594 = vunpack.c.l.b16 %v338
        %v595 = vunpack.c.h.b16 %v338
        %v596 = vunpack.c.l.b16 %v339
        %v597 = vunpack.c.h.b16 %v339
        %v598 = vunpack.c.l.b16 %v340
        %v599 = vunpack.c.h.b16 %v340
        %v600 = vunpack.c.l.b16 %v341
        %v601 = vunpack.c.h.b16 %v341
        %v602 = vunpack.c.l.b16 %v342
        %v603 = vunpack.c.h.b16 %v342
        %v604 = vunpack.c.l.b16 %v343
        %v605 = vunpack.c.h.b16 %v343
        %v606 = vunpack.c.l.b16 %v344
        %v607 = vunpack.c.h.b16 %v344
        %v608 = vunpack.c.l.b16 %v345
        %v609 = vunpack.c.h.b16 %v345
        %v610 = vunpack.c.l.b16 %v346
        %v611 = vunpack.c.h.b16 %v346
        %v612 = vunpack.c.l.b16 %v347
        %v613 = vunpack.c.h.b16 %v347
        %v614 = vunpack.c.l.b16 %v348
        %v615 = vunpack.c.h.b16 %v348
        %v616 = vunpack.c.l.b16 %v349
        %v617 = vunpack.c.h.b16 %v349
        %v618 = vunpack.c.l.b16 %v350
        %v619 = vunpack.c.h.b16 %v350
        %v620 = vunpack.c.l.b16 %v351
        %v621 = vunpack.c.h.b16 %v351
        %v622 = vunpack.c.l.b16 %v352
        %v623 = vunpack.c.h.b16 %v352
        %v624 = vunpack.c.l.b16 %v353
        %v625 = vunpack.c.h.b16 %v353
        %v626 = vunpack.c.l.b16 %v354
        %v627 = vunpack.c.h.b16 %v354
        %v628 = vunpack.c.l.b16 %v355
        %v629 = vunpack.c.h.b16 %v355
        %v630 = vunpack.c.l.b16 %v356
        %v631 = vunpack.c.h.b16 %v356
        %v632 = vunpack.c.l.b16 %v357
        %v633 = vunpack.c.h.b16 %v357
        %v634 = vunpack.c.l.b16 %v358
        %v635 = vunpack.c.h.b16 %v358
        %v636 = vunpack.c.l.b16 %v359
        %v637 = vunpack.c.h.b16 %v359
        %v638 = vunpack.c.l.b16 %v360
        %v639 = vunpack.c.h.b16 %v360
        %v640 = vunpack.c.l.b16 %v361
        %v641 = vunpack.c.h.b16 %v361
        %v642 = vunpack.c.l.b16 %v362
        %v643 = vunpack.c.h.b16 %v362
        %v644 = vunpack.c.l.b16 %v363
        %v645 = vunpack.c.h.b16 %v363
        %v646 = vunpack.c.l.b16 %v364
        %v647 = vunpack.c.h.b16 %v364
        %v648 = vunpack.c.l.b16 %v365
        %v649 = vunpack.c.h.b16 %v365
        %v650 = vunpack.c.l.b16 %v366
        %v651 = vunpack.c.h.b16 %v366
        %v652 = vunpack.c.l.b16 %v367
        %v653 = vunpack.c.h.b16 %v367
        %v654 = vunpack.c.l.b16 %v368
        %v655 = vunpack.c.h.b16 %v368
        %v656 = vunpack.c.l.b16 %v369
        %v657 = vunpack.c.h.b16 %v369
        %v658 = vunpack.c.l.b16 %v370
        %v659 = vunpack.c.h.b16 %v370
        %v660 = vunpack.c.l.b16 %v371
        %v661 = vunpack.c.h.b16 %v371
        %v662 = vunpack.c.l.b16 %v372
        %v663 = vunpack.c.h.b16 %v372
        %v664 = vunpack.c.l.b16 %v373
        %v665 = vunpack.c.h.b16 %v373
        %v666 = vunpack.c.l.b16 %v374
        %v667 = vunpack.c.h.b16 %v374
        %v668 = vunpack.c.l.b16 %v375
        %v669 = vunpack.c.h.b16 %v375
        %v670 = vunpack.c.l.b16 %v376
        %v671 = vunpack.c.h.b16 %v376
        %v672 = vunpack.c.l.b16 %v377
        %v673 = vunpack.c.h.b16 %v377
        %v674 = vunpack.c.l.b16 %v378
        %v675 = vunpack.c.h.b16 %v378
        %v676 = vunpack.c.l.b16 %v379
        %v677 = vunpack.c.h.b16 %v379
        %v678 = vunpack.c.l.b16 %v380
        %v679 = vunpack.c.h.b16 %v380
        %v680 = vunpack.c.l.b16 %v381
        %v681 = vunpack.c.h.b16 %v381
        %v682 = vunpack.c.l.b16 %v382
        %v683 = vunpack.c.h.b16 %v382
        %v684 = vunpack.c.l.b16 %v383
        %v685 = vunpack.c.h.b16 %v383
        %v686 = vunpack.c.l.b16 %v384
        %v687 = vunpack.c.h.b16 %v384
        %v688 = vunpack.c.l.b16 %v385
        %v689 = vunpack.c.h.b16 %v385
        %v690 = vunpack.c.l.b16 %v386
        %v691 = vunpack.c.h.b16 %v386
        %v692 = vunpack.c.l.b16 %v387
        %v693 = vunpack.c.h.b16 %v387
        %v694 = vunpack.c.l.b16 %v388
        %v695 = vunpack.c.h.b16 %v388
        %v696 = vunpack.c.l.b16 %v389
        %v697 = vunpack.c.h.b16 %v389
        %v698 = vunpack.c.l.b16 %v390
        %v699 = vunpack.c.h.b16 %v390
        %v700 = vunpack.c.l.b16 %v391
        %v701 = vunpack.c.h.b16 %v391
        %v702 = vunpack.c.l.b16 %v392
        %v703 = vunpack.c.h.b16 %v392
        %v704 = vunpack.c.l.b16 %v393
        %v705 = vunpack.c.h.b16 %v393
        %v706 = vunpack.c.l.b16 %v394
        %v707 = vunpack.c.h.b16 %v394
        %v708 = vunpack.c.l.b16 %v395
        %v709 = vunpack.c.h.b16 %v395
        %v710 = vunpack.c.l.b16 %v396
        %v711 = vunpack.c.h.b16 %v396
        %v712 = vunpack.c.l.b16 %v397
        %v713 = vunpack.c.h.b16 %v397
        %v714 = vunpack.c.l.b16 %v398
        %v715 = vunpack.c.h.b16 %v398
        %v716 = vunpack.c.l.b16 %v399
        %v717 = vunpack.c.h.b16 %v399
        %v718 = vunpack.c.l.b16 %v400
        %v719 = vunpack.c.h.b16 %v400
        %v720 = vunpack.c.l.b16 %v401
        %v721 = vunpack.c.h.b16 %v401
        %v722 = vunpack.c.l.b16 %v402
        %v723 = vunpack.c.h.b16 %v402
        %v724 = vunpack.c.l.b16 %v403
        %v725 = vunpack.c.h.b16 %v403
        %v726 = vunpack.c.l.b16 %v404
        %v727 = vunpack.c.h.b16 %v404
        %v728 = vunpack.c.l.b16 %v405
        %v729 = vunpack.c.h.b16 %v405
        %v730 = vunpack.c.l.b16 %v406
        %v731 = vunpack.c.h.b16 %v406
        %v732 = vunpack.c.l.b16 %v407
        %v733 = vunpack.c.h.b16 %v407
        %v734 = vunpack.c.l.b16 %v408
        %v735 = vunpack.c.h.b16 %v408
        %v736 = vpack.c.b16 %v550, %v544
        %v737 = vpack.c.b16 %v551, %v545
        %v738 = vpack.c.b16 %v552, %v546
        %v739 = vpack.c.b16 %v553, %v547
        %v740 = vpack.c.b16 %v554, %v548
        %v741 = vpack.c.b16 %v555, %v549
        %v742 = vpack.c.b16 %v562, %v556
        %v743 = vpack.c.b16 %v563, %v557
        %v744 = vpack.c.b16 %v564, %v558
        %v745 = vpack.c.b16 %v565, %v559
        %v746 = vpack.c.b16 %v566, %v560
        %v747 = vpack.c.b16 %v567, %v561
        %v748 = vpack.c.b16 %v574, %v568
        %v749 = vpack.c.b16 %v575, %v569
        %v750 = vpack.c.b16 %v576, %v570
        %v751 = vpack.c.b16 %v577, %v571
        %v752 = vpack.c.b16 %v578, %v572
        %v753 = vpack.c.b16 %v579, %v573
        %v754 = vpack.c.b16 %v586, %v580
        %v755 = vpack.c.b16 %v587, %v581
        %v756 = vpack.c.b16 %v588, %v582
        %v757 = vpack.c.b16 %v589, %v583
        %v758 = vpack.c.b16 %v590, %v584
        %v759 = vpack.c.b16 %v591, %v585
        %v760 = vpack.c.b16 %v598, %v592
        %v761 = vpack.c.b16 %v599, %v593
        %v762 = vpack.c.b16 %v600, %v594
        %v763 = vpack.c.b16 %v601, %v595
        %v764 = vpack.c.b16 %v602, %v596
        %v765 = vpack.c.b16 %v603, %v597
        %v766 = vpack.c.b16 %v610, %v604
        %v767 = vpack.c.b16 %v611, %v605
        %v768 = vpack.c.b16 %v612, %v606
        %v769 = vpack.c.b16 %v613, %v607
        %v770 = vpack.c.b16 %v614, %v608
        %v771 = vpack.c.b16 %v615, %v609
        %v772 = vpack.c.b16 %v622, %v616
        %v773 = vpack.c.b16 %v623, %v617
        %v774 = vpack.c.b16 %v624, %v618
        %v775 = vpack.c.b16 %v625, %v619
        %v776 = vpack.c.b16 %v626, %v620
        %v777 = vpack.c.b16 %v627, %v621
        %v778 = vpack.c.b16 %v634, %v628
        %v779 = vpack.c.b16 %v635, %v629
        %v780 = vpack.c.b16 %v636, %v630
        %v781 = vpack.c.b16 %v637, %v631
        %v782 = vpack.c.b16 %v638, %v632
        %v783 = vpack.c.b16 %v639, %v633
        %v784 = vpack.c.b16 %v646, %v640
        %v785 = vpack.c.b16 %v647, %v641
        %v786 = vpack.c.b16 %v648, %v642
        %v787 = vpack.c.b16 %v649, %v643
        %v788 = vpack.c.b16 %v650, %v644
        %v789 = vpack.c.b16 %v651, %v645
        %v790 = vpack.c.b16 %v658, %v652
        %v791 = vpack.c.b16 %v659, %v653
        %v792 = vpack.c.b16 %v660, %v654
        %v793 = vpack.c.b16 %v661, %v655
        %v794 = vpack.c.b16 %v662, %v656
        %v795 = vpack.c.b16 %v663, %v657
        %v796 = vpack.c.b16 %v670, %v664
        %v797 = vpack.c.b16 %v671, %v665
        %v798 = vpack.c.b16 %v672, %v666
        %v799 = vpack.c.b16 %v673, %v667
        %v800 = vpack.c.b16 %v674, %v668
        %v801 = vpack.c.b16 %v675, %v669
        %v802 = vpack.c.b16 %v682, %v676
        %v803 = vpack.c.b16 %v683, %v677
        %v804 = vpack.c.b16 %v684, %v678
        %v805 = vpack.c.b16 %v685, %v679
        %v806 = vpack.c.b16 %v686, %v680
        %v807 = vpack.c.b16 %v687, %v681
        %v808 = vpack.c.b16 %v694, %v688
        %v809 = vpack.c.b16 %v695, %v689
        %v810 = vpack.c.b16 %v696, %v690
        %v811 = vpack.c.b16 %v697, %v691
        %v812 = vpack.c.b16 %v698, %v692
        %v813 = vpack.c.b16 %v699, %v693
        %v814 = vpack.c.b16 %v706, %v700
        %v815 = vpack.c.b16 %v707, %v701
        %v816 = vpack.c.b16 %v708, %v702
        %v817 = vpack.c.b16 %v709, %v703
        %v818 = vpack.c.b16 %v710, %v704
        %v819 = vpack.c.b16 %v711, %v705
        %v820 = vpack.c.b16 %v718, %v712
        %v821 = vpack.c.b16 %v719, %v713
        %v822 = vpack.c.b16 %v720, %v714
        %v823 = vpack.c.b16 %v721, %v715
        %v824 = vpack.c.b16 %v722, %v716
        %v825 = vpack.c.b16 %v723, %v717
        %v826 = vpack.c.b16 %v730, %v724
        %v827 = vpack.c.b16 %v731, %v725
        %v828 = vpack.c.b16 %v732, %v726
        %v829 = vpack.c.b16 %v733, %v727
        %v830 = vpack.c.b16 %v734, %v728
        %v831 = vpack.c.b16 %v735, %v729
        %928 = vmatprep.subr.bf16.mxu0 %v779
        %929 = vmatpush1.bf16.msra.mxu0 %v778
        %930 = vmatprep.subr.bf16.mxu0 %v773
        %931 = vmatpush1.bf16.msra.mxu0 %v772
        %932 = vmatprep.subr.bf16.mxu0 %v767
        %933 = vmatpush1.bf16.msra.mxu0 %v766
        %934 = vmatprep.subr.bf16.mxu0 %v761
        %935 = vmatpush1.bf16.msra.mxu0 %v760
        %936 = vmatprep.subr.bf16.mxu0 %v755
        %937 = vmatpush1.bf16.msra.mxu0 %v754
        %938 = vmatprep.subr.bf16.mxu0 %v749
        %939 = vmatpush1.bf16.msra.mxu0 %v748
        %940 = vmatprep.subr.bf16.mxu0 %v743
        %941 = vmatpush1.bf16.msra.mxu0 %v742
        %942 = vmatprep.subr.bf16.mxu0 %v737
        %943 = vmatpush1.bf16.msra.mxu0 %v736
        %944 = vmatprep.subr.bf16.mxu0 %v827
        %945 = vmatpush2.bf16.msra.mxu0 %v826
        %946 = vmatprep.subr.bf16.mxu0 %v821
        %947 = vmatpush2.bf16.msra.mxu0 %v820
        %948 = vmatprep.subr.bf16.mxu0 %v815
        %949 = vmatpush2.bf16.msra.mxu0 %v814
        %950 = vmatprep.subr.bf16.mxu0 %v809
        %951 = vmatpush2.bf16.msra.mxu0 %v808
        %952 = vmatprep.subr.bf16.mxu0 %v803
        %953 = vmatpush2.bf16.msra.mxu0 %v802
        %954 = vmatprep.subr.bf16.mxu0 %v797
        %955 = vmatpush2.bf16.msra.mxu0 %v796
        %956 = vmatprep.subr.bf16.mxu0 %v791
        %957 = vmatpush2.bf16.msra.mxu0 %v790
        %958 = vmatprep.subr.bf16.mxu0 %v785
        %959 = vmatpush2.bf16.msra.mxu0 %v784
        %960 = vmatprep.mubr.bf16.mxu0 %v445
        %961 = vmatmul.mubr.bf16.gmra.mxu0 %v444
        %v962 = vpop.f32.mrf.mxu0
        %v963 = vadd.f32 %v414, %v962
        %v964 = vpop.f32.mrf.mxu0
        %v965 = vadd.f32 %v418, %v964
        %v966 = vpop.f32.mrf.mxu0
        %v967 = vpop.f32.mrf.mxu0
        %968 = vdwg.mxu0
        %969 = vmatprep.subr.bf16.mxu0 %v781
        %970 = vmatpush1.bf16.msra.mxu0 %v780
        %971 = vmatprep.subr.bf16.mxu0 %v775
        %972 = vmatpush1.bf16.msra.mxu0 %v774
        %973 = vmatprep.subr.bf16.mxu0 %v769
        %974 = vmatpush1.bf16.msra.mxu0 %v768
        %975 = vmatprep.subr.bf16.mxu0 %v763
        %976 = vmatpush1.bf16.msra.mxu0 %v762
        %977 = vmatprep.subr.bf16.mxu0 %v757
        %978 = vmatpush1.bf16.msra.mxu0 %v756
        %979 = vmatprep.subr.bf16.mxu0 %v751
        %980 = vmatpush1.bf16.msra.mxu0 %v750
        %981 = vmatprep.subr.bf16.mxu0 %v745
        %982 = vmatpush1.bf16.msra.mxu0 %v744
        %983 = vmatprep.subr.bf16.mxu0 %v739
        %984 = vmatpush1.bf16.msra.mxu0 %v738
        %985 = vmatprep.subr.bf16.mxu0 %v829
        %986 = vmatpush2.bf16.msra.mxu0 %v828
        %987 = vmatprep.subr.bf16.mxu0 %v823
        %988 = vmatpush2.bf16.msra.mxu0 %v822
        %989 = vmatprep.subr.bf16.mxu0 %v817
        %990 = vmatpush2.bf16.msra.mxu0 %v816
        %991 = vmatprep.subr.bf16.mxu0 %v811
        %992 = vmatpush2.bf16.msra.mxu0 %v810
        %993 = vmatprep.subr.bf16.mxu0 %v805
        %994 = vmatpush2.bf16.msra.mxu0 %v804
        %995 = vmatprep.subr.bf16.mxu0 %v799
        %996 = vmatpush2.bf16.msra.mxu0 %v798
        %997 = vmatprep.subr.bf16.mxu0 %v793
        %998 = vmatpush2.bf16.msra.mxu0 %v792
        %999 = vmatprep.subr.bf16.mxu0 %v787
        %1000 = vmatpush2.bf16.msra.mxu0 %v786
        %1001 = vmatprep.mubr.bf16.mxu0 %v445
        %1002 = vmatmul.mubr.bf16.gmra.mxu0 %v444
        %v1003 = vpop.f32.mrf.mxu0
        %v1004 = vadd.f32 %v422, %v1003
        %v1005 = vpop.f32.mrf.mxu0
        %v1006 = vadd.f32 %v426, %v1005
        %v1007 = vpop.f32.mrf.mxu0
        %v1008 = vpop.f32.mrf.mxu0
        %1009 = vdwg.mxu0
        %1010 = vmatprep.subr.bf16.mxu0 %v783
        %1011 = vmatpush1.bf16.msra.mxu0 %v782
        %1012 = vmatprep.subr.bf16.mxu0 %v777
        %1013 = vmatpush1.bf16.msra.mxu0 %v776
        %1014 = vmatprep.subr.bf16.mxu0 %v771
        %1015 = vmatpush1.bf16.msra.mxu0 %v770
        %1016 = vmatprep.subr.bf16.mxu0 %v765
        %1017 = vmatpush1.bf16.msra.mxu0 %v764
        %1018 = vmatprep.subr.bf16.mxu0 %v759
        %1019 = vmatpush1.bf16.msra.mxu0 %v758
        %1020 = vmatprep.subr.bf16.mxu0 %v753
        %1021 = vmatpush1.bf16.msra.mxu0 %v752
        %1022 = vmatprep.subr.bf16.mxu0 %v747
        %1023 = vmatpush1.bf16.msra.mxu0 %v746
        %1024 = vmatprep.subr.bf16.mxu0 %v741
        %1025 = vmatpush1.bf16.msra.mxu0 %v740
        %1026 = vmatprep.subr.bf16.mxu0 %v831
        %1027 = vmatpush2.bf16.msra.mxu0 %v830
        %1028 = vmatprep.subr.bf16.mxu0 %v825
        %1029 = vmatpush2.bf16.msra.mxu0 %v824
        %1030 = vmatprep.subr.bf16.mxu0 %v819
        %1031 = vmatpush2.bf16.msra.mxu0 %v818
        %1032 = vmatprep.subr.bf16.mxu0 %v813
        %1033 = vmatpush2.bf16.msra.mxu0 %v812
        %1034 = vmatprep.subr.bf16.mxu0 %v807
        %1035 = vmatpush2.bf16.msra.mxu0 %v806
        %1036 = vmatprep.subr.bf16.mxu0 %v801
        %1037 = vmatpush2.bf16.msra.mxu0 %v800
        %1038 = vmatprep.subr.bf16.mxu0 %v795
        %1039 = vmatpush2.bf16.msra.mxu0 %v794
        %1040 = vmatprep.subr.bf16.mxu0 %v789
        %1041 = vmatpush2.bf16.msra.mxu0 %v788
        %1042 = vmatprep.mubr.bf16.mxu0 %v445
        %1043 = vmatmul.mubr.bf16.gmra.mxu0 %v444
        %v1044 = vpop.f32.mrf.mxu0
        %v1045 = vadd.f32 %v430, %v1044
        %v1046 = vpop.f32.mrf.mxu0
        %v1047 = vadd.f32 %v434, %v1046
        %v1048 = vpop.f32.mrf.mxu0
        %v1049 = vpop.f32.mrf.mxu0
        %1050 = vdwg.mxu0
        %v1051 = vpack.c.bf16 %v963, %v963
        %v1052 = vpack.c.bf16 %v965, %v965
        %v1053 = vpack.c.bf16 %v1004, %v1004
        %v1054 = vpack.c.bf16 %v1006, %v1006
        %v1055 = vpack.c.bf16 %v1045, %v1045
        %v1056 = vpack.c.bf16 %v1047, %v1047
        %vm1057 = vcmask 523264
        %v1059 = vsel %vm1057, %v1051, 0
        %v1062 = vsel %vm1057, %v1053, 0
        %1064 = vmatprep.subr.bf16.mxu0 0
        %1065 = vmatpush1.bf16.xpose.msra.mxu0 0
        %1066 = vmatprep.subr.bf16.mxu0 0
        %1067 = vmatpush1.bf16.xpose.msra.mxu0 0
        %1068 = vmatprep.subr.bf16.mxu0 0
        %1069 = vmatpush1.bf16.xpose.msra.mxu0 0
        %1070 = vmatprep.subr.bf16.mxu0 0
        %1071 = vmatpush1.bf16.xpose.msra.mxu0 0
        %1072 = vmatprep.subr.bf16.mxu0 0
        %1073 = vmatpush1.bf16.xpose.msra.mxu0 0
        %1074 = vmatprep.subr.bf16.mxu0 0
        %1075 = vmatpush1.bf16.xpose.msra.mxu0 0
        %1076 = vmatprep.subr.bf16.mxu0 0
        %1077 = vmatpush1.bf16.xpose.msra.mxu0 0
        %1078 = vmatprep.subr.bf16.mxu0 0
        %1079 = vmatpush1.bf16.xpose.msra.mxu0 %v1062
        %1080 = vmatprep.subr.bf16.mxu0 0
        %1081 = vmatpush2.bf16.xpose.msra.mxu0 0
        %1082 = vmatprep.subr.bf16.mxu0 0
        %1083 = vmatpush2.bf16.xpose.msra.mxu0 0
        %1084 = vmatprep.subr.bf16.mxu0 0
        %1085 = vmatpush2.bf16.xpose.msra.mxu0 0
        %1086 = vmatprep.subr.bf16.mxu0 0
        %1087 = vmatpush2.bf16.xpose.msra.mxu0 0
        %1088 = vmatprep.subr.bf16.mxu0 0
        %1089 = vmatpush2.bf16.xpose.msra.mxu0 0
        %1090 = vmatprep.subr.bf16.mxu0 0
        %1091 = vmatpush2.bf16.xpose.msra.mxu0 0
        %1092 = vmatprep.subr.bf16.mxu0 0
        %1093 = vmatpush2.bf16.xpose.msra.mxu0 0
        %1094 = vmatprep.subr.bf16.mxu0 0
        %1095 = vmatpush2.bf16.xpose.msra.mxu0 0
        %1096 = vmatprep.mubr.bf16.mxu0 0
        %1097 = vmatmul.mubr.bf16.gmra.mxu0 %v1059
        %v1098 = vpop.f32.mrf.mxu0
        %v1099 = vadd.f32 0.0, %v1098
        %v1100 = vpop.f32.mrf.mxu0
        %v1101 = vpop.f32.mrf.mxu0
        %v1102 = vpop.f32.mrf.mxu0
        %1103 = vdwg.mxu0
        %v1104 = vmul.f32 %v1099, 0.125
        %vm1105 = vcmask 64512
        %v1106 = vsel %vm1105, %v1104, -inf
        %1107 = vmax.xlane.f32.xlu0 %v1106
        %v1108 = vpop.xlane.xlu0 %1107
        %v1109 = vsub.f32 %v1104, %v1108
        %v1110 = vmul.f32 %v1109, 1.442695
        %v1111 = vpow.pop %v1110
        %v1112 = vsel %vm1105, %v1111, 0.0
        %1113 = vadd.xlane.f32.xlu0 %v1112
        %v1114 = vpop.xlane.xlu0 %1113
        %v1115 = vrcp.pop %v1114
        %v1116 = vmul.f32 %v1111, %v1115
        %v1117 = vpack.c.bf16 %v1116, %v1116
        %v1119 = vsel %vm1105, %v1117, 0
        %vm1121 = vcmask 1043456
        %v1123 = vsel %vm1121, %v1055, 0
        %1125 = vmatprep.subr.bf16.mxu0 0
        %1126 = vmatpush1.bf16.msra.mxu0 0
        %1127 = vmatprep.subr.bf16.mxu0 0
        %1128 = vmatpush1.bf16.msra.mxu0 0
        %1129 = vmatprep.subr.bf16.mxu0 0
        %1130 = vmatpush1.bf16.msra.mxu0 0
        %1131 = vmatprep.subr.bf16.mxu0 0
        %1132 = vmatpush1.bf16.msra.mxu0 0
        %1133 = vmatprep.subr.bf16.mxu0 0
        %1134 = vmatpush1.bf16.msra.mxu0 0
        %1135 = vmatprep.subr.bf16.mxu0 0
        %1136 = vmatpush1.bf16.msra.mxu0 0
        %1137 = vmatprep.subr.bf16.mxu0 0
        %1138 = vmatpush1.bf16.msra.mxu0 0
        %1139 = vmatprep.subr.bf16.mxu0 0
        %1140 = vmatpush1.bf16.msra.mxu0 %v1123
        %1141 = vmatprep.subr.bf16.mxu0 0
        %1142 = vmatpush2.bf16.msra.mxu0 0
        %1143 = vmatprep.subr.bf16.mxu0 0
        %1144 = vmatpush2.bf16.msra.mxu0 0
        %1145 = vmatprep.subr.bf16.mxu0 0
        %1146 = vmatpush2.bf16.msra.mxu0 0
        %1147 = vmatprep.subr.bf16.mxu0 0
        %1148 = vmatpush2.bf16.msra.mxu0 0
        %1149 = vmatprep.subr.bf16.mxu0 0
        %1150 = vmatpush2.bf16.msra.mxu0 0
        %1151 = vmatprep.subr.bf16.mxu0 0
        %1152 = vmatpush2.bf16.msra.mxu0 0
        %1153 = vmatprep.subr.bf16.mxu0 0
        %1154 = vmatpush2.bf16.msra.mxu0 0
        %1155 = vmatprep.subr.bf16.mxu0 0
        %1156 = vmatpush2.bf16.msra.mxu0 0
        %1157 = vmatprep.mubr.bf16.mxu0 0
        %1158 = vmatmul.mubr.bf16.gmra.mxu0 %v1119
        %v1159 = vpop.f32.mrf.mxu0
        %v1160 = vadd.f32 0.0, %v1159
        %v1161 = vpop.f32.mrf.mxu0
        %v1162 = vpop.f32.mrf.mxu0
        %v1163 = vpop.f32.mrf.mxu0
        %1164 = vdwg.mxu0
        %1166 = vrot.lane.b32.xlu0 %v1051, 64
        %v1167 = vpop.permute.xlu0 %1166
        %1169 = vrot.lane.b32.xlu0 %v1053, 64
        %v1170 = vpop.permute.xlu0 %1169
        %v1172 = vsel %vm1057, %v1167, 0
        %v1175 = vsel %vm1057, %v1170, 0
        %1177 = vmatprep.subr.bf16.mxu0 0
        %1178 = vmatpush1.bf16.xpose.msra.mxu0 0
        %1179 = vmatprep.subr.bf16.mxu0 0
        %1180 = vmatpush1.bf16.xpose.msra.mxu0 0
        %1181 = vmatprep.subr.bf16.mxu0 0
        %1182 = vmatpush1.bf16.xpose.msra.mxu0 0
        %1183 = vmatprep.subr.bf16.mxu0 0
        %1184 = vmatpush1.bf16.xpose.msra.mxu0 0
        %1185 = vmatprep.subr.bf16.mxu0 0
        %1186 = vmatpush1.bf16.xpose.msra.mxu0 0
        %1187 = vmatprep.subr.bf16.mxu0 0
        %1188 = vmatpush1.bf16.xpose.msra.mxu0 0
        %1189 = vmatprep.subr.bf16.mxu0 0
        %1190 = vmatpush1.bf16.xpose.msra.mxu0 0
        %1191 = vmatprep.subr.bf16.mxu0 0
        %1192 = vmatpush1.bf16.xpose.msra.mxu0 %v1175
        %1193 = vmatprep.subr.bf16.mxu0 0
        %1194 = vmatpush2.bf16.xpose.msra.mxu0 0
        %1195 = vmatprep.subr.bf16.mxu0 0
        %1196 = vmatpush2.bf16.xpose.msra.mxu0 0
        %1197 = vmatprep.subr.bf16.mxu0 0
        %1198 = vmatpush2.bf16.xpose.msra.mxu0 0
        %1199 = vmatprep.subr.bf16.mxu0 0
        %1200 = vmatpush2.bf16.xpose.msra.mxu0 0
        %1201 = vmatprep.subr.bf16.mxu0 0
        %1202 = vmatpush2.bf16.xpose.msra.mxu0 0
        %1203 = vmatprep.subr.bf16.mxu0 0
        %1204 = vmatpush2.bf16.xpose.msra.mxu0 0
        %1205 = vmatprep.subr.bf16.mxu0 0
        %1206 = vmatpush2.bf16.xpose.msra.mxu0 0
        %1207 = vmatprep.subr.bf16.mxu0 0
        %1208 = vmatpush2.bf16.xpose.msra.mxu0 0
        %1209 = vmatprep.mubr.bf16.mxu0 0
        %1210 = vmatmul.mubr.bf16.gmra.mxu0 %v1172
        %v1211 = vpop.f32.mrf.mxu0
        %v1212 = vadd.f32 0.0, %v1211
        %v1213 = vpop.f32.mrf.mxu0
        %v1214 = vpop.f32.mrf.mxu0
        %v1215 = vpop.f32.mrf.mxu0
        %1216 = vdwg.mxu0
        %v1217 = vmul.f32 %v1212, 0.125
        %v1218 = vsel %vm1105, %v1217, -inf
        %1219 = vmax.xlane.f32.xlu0 %v1218
        %v1220 = vpop.xlane.xlu0 %1219
        %v1221 = vsub.f32 %v1217, %v1220
        %v1222 = vmul.f32 %v1221, 1.442695
        %v1223 = vpow.pop %v1222
        %v1224 = vsel %vm1105, %v1223, 0.0
        %1225 = vadd.xlane.f32.xlu0 %v1224
        %v1226 = vpop.xlane.xlu0 %1225
        %v1227 = vrcp.pop %v1226
        %v1228 = vmul.f32 %v1223, %v1227
        %v1229 = vpack.c.bf16 %v1228, %v1228
        %1231 = vrot.lane.b32.xlu0 %v1055, 64
        %v1232 = vpop.permute.xlu0 %1231
        %v1234 = vsel %vm1105, %v1229, 0
        %v1237 = vsel %vm1121, %v1232, 0
        %1239 = vmatprep.subr.bf16.mxu0 0
        %1240 = vmatpush1.bf16.msra.mxu0 0
        %1241 = vmatprep.subr.bf16.mxu0 0
        %1242 = vmatpush1.bf16.msra.mxu0 0
        %1243 = vmatprep.subr.bf16.mxu0 0
        %1244 = vmatpush1.bf16.msra.mxu0 0
        %1245 = vmatprep.subr.bf16.mxu0 0
        %1246 = vmatpush1.bf16.msra.mxu0 0
        %1247 = vmatprep.subr.bf16.mxu0 0
        %1248 = vmatpush1.bf16.msra.mxu0 0
        %1249 = vmatprep.subr.bf16.mxu0 0
        %1250 = vmatpush1.bf16.msra.mxu0 0
        %1251 = vmatprep.subr.bf16.mxu0 0
        %1252 = vmatpush1.bf16.msra.mxu0 0
        %1253 = vmatprep.subr.bf16.mxu0 0
        %1254 = vmatpush1.bf16.msra.mxu0 %v1237
        %1255 = vmatprep.subr.bf16.mxu0 0
        %1256 = vmatpush2.bf16.msra.mxu0 0
        %1257 = vmatprep.subr.bf16.mxu0 0
        %1258 = vmatpush2.bf16.msra.mxu0 0
        %1259 = vmatprep.subr.bf16.mxu0 0
        %1260 = vmatpush2.bf16.msra.mxu0 0
        %1261 = vmatprep.subr.bf16.mxu0 0
        %1262 = vmatpush2.bf16.msra.mxu0 0
        %1263 = vmatprep.subr.bf16.mxu0 0
        %1264 = vmatpush2.bf16.msra.mxu0 0
        %1265 = vmatprep.subr.bf16.mxu0 0
        %1266 = vmatpush2.bf16.msra.mxu0 0
        %1267 = vmatprep.subr.bf16.mxu0 0
        %1268 = vmatpush2.bf16.msra.mxu0 0
        %1269 = vmatprep.subr.bf16.mxu0 0
        %1270 = vmatpush2.bf16.msra.mxu0 0
        %1271 = vmatprep.mubr.bf16.mxu0 0
        %1272 = vmatmul.mubr.bf16.gmra.mxu0 %v1234
        %v1273 = vpop.f32.mrf.mxu0
        %v1274 = vadd.f32 0.0, %v1273
        %v1275 = vpop.f32.mrf.mxu0
        %v1276 = vpop.f32.mrf.mxu0
        %v1277 = vpop.f32.mrf.mxu0
        %1278 = vdwg.mxu0
        %v1280 = vsel %vm1057, %v1052, 0
        %v1283 = vsel %vm1057, %v1054, 0
        %1285 = vmatprep.subr.bf16.mxu0 0
        %1286 = vmatpush1.bf16.xpose.msra.mxu0 0
        %1287 = vmatprep.subr.bf16.mxu0 0
        %1288 = vmatpush1.bf16.xpose.msra.mxu0 0
        %1289 = vmatprep.subr.bf16.mxu0 0
        %1290 = vmatpush1.bf16.xpose.msra.mxu0 0
        %1291 = vmatprep.subr.bf16.mxu0 0
        %1292 = vmatpush1.bf16.xpose.msra.mxu0 0
        %1293 = vmatprep.subr.bf16.mxu0 0
        %1294 = vmatpush1.bf16.xpose.msra.mxu0 0
        %1295 = vmatprep.subr.bf16.mxu0 0
        %1296 = vmatpush1.bf16.xpose.msra.mxu0 0
        %1297 = vmatprep.subr.bf16.mxu0 0
        %1298 = vmatpush1.bf16.xpose.msra.mxu0 0
        %1299 = vmatprep.subr.bf16.mxu0 0
        %1300 = vmatpush1.bf16.xpose.msra.mxu0 %v1283
        %1301 = vmatprep.subr.bf16.mxu0 0
        %1302 = vmatpush2.bf16.xpose.msra.mxu0 0
        %1303 = vmatprep.subr.bf16.mxu0 0
        %1304 = vmatpush2.bf16.xpose.msra.mxu0 0
        %1305 = vmatprep.subr.bf16.mxu0 0
        %1306 = vmatpush2.bf16.xpose.msra.mxu0 0
        %1307 = vmatprep.subr.bf16.mxu0 0
        %1308 = vmatpush2.bf16.xpose.msra.mxu0 0
        %1309 = vmatprep.subr.bf16.mxu0 0
        %1310 = vmatpush2.bf16.xpose.msra.mxu0 0
        %1311 = vmatprep.subr.bf16.mxu0 0
        %1312 = vmatpush2.bf16.xpose.msra.mxu0 0
        %1313 = vmatprep.subr.bf16.mxu0 0
        %1314 = vmatpush2.bf16.xpose.msra.mxu0 0
        %1315 = vmatprep.subr.bf16.mxu0 0
        %1316 = vmatpush2.bf16.xpose.msra.mxu0 0
        %1317 = vmatprep.mubr.bf16.mxu0 0
        %1318 = vmatmul.mubr.bf16.gmra.mxu0 %v1280
        %v1319 = vpop.f32.mrf.mxu0
        %v1320 = vadd.f32 0.0, %v1319
        %v1321 = vpop.f32.mrf.mxu0
        %v1322 = vpop.f32.mrf.mxu0
        %v1323 = vpop.f32.mrf.mxu0
        %1324 = vdwg.mxu0
        %v1325 = vmul.f32 %v1320, 0.125
        %v1326 = vsel %vm1105, %v1325, -inf
        %1327 = vmax.xlane.f32.xlu0 %v1326
        %v1328 = vpop.xlane.xlu0 %1327
        %v1329 = vsub.f32 %v1325, %v1328
        %v1330 = vmul.f32 %v1329, 1.442695
        %v1331 = vpow.pop %v1330
        %v1332 = vsel %vm1105, %v1331, 0.0
        %1333 = vadd.xlane.f32.xlu0 %v1332
        %v1334 = vpop.xlane.xlu0 %1333
        %v1335 = vrcp.pop %v1334
        %v1336 = vmul.f32 %v1331, %v1335
        %v1337 = vpack.c.bf16 %v1336, %v1336
        %v1339 = vsel %vm1105, %v1337, 0
        %v1342 = vsel %vm1121, %v1056, 0
        %1344 = vmatprep.subr.bf16.mxu0 0
        %1345 = vmatpush1.bf16.msra.mxu0 0
        %1346 = vmatprep.subr.bf16.mxu0 0
        %1347 = vmatpush1.bf16.msra.mxu0 0
        %1348 = vmatprep.subr.bf16.mxu0 0
        %1349 = vmatpush1.bf16.msra.mxu0 0
        %1350 = vmatprep.subr.bf16.mxu0 0
        %1351 = vmatpush1.bf16.msra.mxu0 0
        %1352 = vmatprep.subr.bf16.mxu0 0
        %1353 = vmatpush1.bf16.msra.mxu0 0
        %1354 = vmatprep.subr.bf16.mxu0 0
        %1355 = vmatpush1.bf16.msra.mxu0 0
        %1356 = vmatprep.subr.bf16.mxu0 0
        %1357 = vmatpush1.bf16.msra.mxu0 0
        %1358 = vmatprep.subr.bf16.mxu0 0
        %1359 = vmatpush1.bf16.msra.mxu0 %v1342
        %1360 = vmatprep.subr.bf16.mxu0 0
        %1361 = vmatpush2.bf16.msra.mxu0 0
        %1362 = vmatprep.subr.bf16.mxu0 0
        %1363 = vmatpush2.bf16.msra.mxu0 0
        %1364 = vmatprep.subr.bf16.mxu0 0
        %1365 = vmatpush2.bf16.msra.mxu0 0
        %1366 = vmatprep.subr.bf16.mxu0 0
        %1367 = vmatpush2.bf16.msra.mxu0 0
        %1368 = vmatprep.subr.bf16.mxu0 0
        %1369 = vmatpush2.bf16.msra.mxu0 0
        %1370 = vmatprep.subr.bf16.mxu0 0
        %1371 = vmatpush2.bf16.msra.mxu0 0
        %1372 = vmatprep.subr.bf16.mxu0 0
        %1373 = vmatpush2.bf16.msra.mxu0 0
        %1374 = vmatprep.subr.bf16.mxu0 0
        %1375 = vmatpush2.bf16.msra.mxu0 0
        %1376 = vmatprep.mubr.bf16.mxu0 0
        %1377 = vmatmul.mubr.bf16.gmra.mxu0 %v1339
        %v1378 = vpop.f32.mrf.mxu0
        %v1379 = vadd.f32 0.0, %v1378
        %v1380 = vpop.f32.mrf.mxu0
        %v1381 = vpop.f32.mrf.mxu0
        %v1382 = vpop.f32.mrf.mxu0
        %1383 = vdwg.mxu0
        %1385 = vrot.lane.b32.xlu0 %v1052, 64
        %v1386 = vpop.permute.xlu0 %1385
        %1388 = vrot.lane.b32.xlu0 %v1054, 64
        %v1389 = vpop.permute.xlu0 %1388
        %v1391 = vsel %vm1057, %v1386, 0
        %v1394 = vsel %vm1057, %v1389, 0
        %1396 = vmatprep.subr.bf16.mxu0 0
        %1397 = vmatpush1.bf16.xpose.msra.mxu0 0
        %1398 = vmatprep.subr.bf16.mxu0 0
        %1399 = vmatpush1.bf16.xpose.msra.mxu0 0
        %1400 = vmatprep.subr.bf16.mxu0 0
        %1401 = vmatpush1.bf16.xpose.msra.mxu0 0
        %1402 = vmatprep.subr.bf16.mxu0 0
        %1403 = vmatpush1.bf16.xpose.msra.mxu0 0
        %1404 = vmatprep.subr.bf16.mxu0 0
        %1405 = vmatpush1.bf16.xpose.msra.mxu0 0
        %1406 = vmatprep.subr.bf16.mxu0 0
        %1407 = vmatpush1.bf16.xpose.msra.mxu0 0
        %1408 = vmatprep.subr.bf16.mxu0 0
        %1409 = vmatpush1.bf16.xpose.msra.mxu0 0
        %1410 = vmatprep.subr.bf16.mxu0 0
        %1411 = vmatpush1.bf16.xpose.msra.mxu0 %v1394
        %1412 = vmatprep.subr.bf16.mxu0 0
        %1413 = vmatpush2.bf16.xpose.msra.mxu0 0
        %1414 = vmatprep.subr.bf16.mxu0 0
        %1415 = vmatpush2.bf16.xpose.msra.mxu0 0
        %1416 = vmatprep.subr.bf16.mxu0 0
        %1417 = vmatpush2.bf16.xpose.msra.mxu0 0
        %1418 = vmatprep.subr.bf16.mxu0 0
        %1419 = vmatpush2.bf16.xpose.msra.mxu0 0
        %1420 = vmatprep.subr.bf16.mxu0 0
        %1421 = vmatpush2.bf16.xpose.msra.mxu0 0
        %1422 = vmatprep.subr.bf16.mxu0 0
        %1423 = vmatpush2.bf16.xpose.msra.mxu0 0
        %1424 = vmatprep.subr.bf16.mxu0 0
        %1425 = vmatpush2.bf16.xpose.msra.mxu0 0
        %1426 = vmatprep.subr.bf16.mxu0 0
        %1427 = vmatpush2.bf16.xpose.msra.mxu0 0
        %1428 = vmatprep.mubr.bf16.mxu0 0
        %1429 = vmatmul.mubr.bf16.gmra.mxu0 %v1391
        %v1430 = vpop.f32.mrf.mxu0
        %v1431 = vadd.f32 0.0, %v1430
        %v1432 = vpop.f32.mrf.mxu0
        %v1433 = vpop.f32.mrf.mxu0
        %v1434 = vpop.f32.mrf.mxu0
        %1435 = vdwg.mxu0
        %v1436 = vmul.f32 %v1431, 0.125
        %v1437 = vsel %vm1105, %v1436, -inf
        %1438 = vmax.xlane.f32.xlu0 %v1437
        %v1439 = vpop.xlane.xlu0 %1438
        %v1440 = vsub.f32 %v1436, %v1439
        %v1441 = vmul.f32 %v1440, 1.442695
        %v1442 = vpow.pop %v1441
        %v1443 = vsel %vm1105, %v1442, 0.0
        %1444 = vadd.xlane.f32.xlu0 %v1443
        %v1445 = vpop.xlane.xlu0 %1444
        %v1446 = vrcp.pop %v1445
        %v1447 = vmul.f32 %v1442, %v1446
        %v1448 = vpack.c.bf16 %v1447, %v1447
        %1450 = vrot.lane.b32.xlu0 %v1056, 64
        %v1451 = vpop.permute.xlu0 %1450
        %v1453 = vsel %vm1105, %v1448, 0
        %v1456 = vsel %vm1121, %v1451, 0
        %1458 = vmatprep.subr.bf16.mxu0 0
        %1459 = vmatpush1.bf16.msra.mxu0 0
        %1460 = vmatprep.subr.bf16.mxu0 0
        %1461 = vmatpush1.bf16.msra.mxu0 0
        %1462 = vmatprep.subr.bf16.mxu0 0
        %1463 = vmatpush1.bf16.msra.mxu0 0
        %1464 = vmatprep.subr.bf16.mxu0 0
        %1465 = vmatpush1.bf16.msra.mxu0 0
        %1466 = vmatprep.subr.bf16.mxu0 0
        %1467 = vmatpush1.bf16.msra.mxu0 0
        %1468 = vmatprep.subr.bf16.mxu0 0
        %1469 = vmatpush1.bf16.msra.mxu0 0
        %1470 = vmatprep.subr.bf16.mxu0 0
        %1471 = vmatpush1.bf16.msra.mxu0 0
        %1472 = vmatprep.subr.bf16.mxu0 0
        %1473 = vmatpush1.bf16.msra.mxu0 %v1456
        %1474 = vmatprep.subr.bf16.mxu0 0
        %1475 = vmatpush2.bf16.msra.mxu0 0
        %1476 = vmatprep.subr.bf16.mxu0 0
        %1477 = vmatpush2.bf16.msra.mxu0 0
        %1478 = vmatprep.subr.bf16.mxu0 0
        %1479 = vmatpush2.bf16.msra.mxu0 0
        %1480 = vmatprep.subr.bf16.mxu0 0
        %1481 = vmatpush2.bf16.msra.mxu0 0
        %1482 = vmatprep.subr.bf16.mxu0 0
        %1483 = vmatpush2.bf16.msra.mxu0 0
        %1484 = vmatprep.subr.bf16.mxu0 0
        %1485 = vmatpush2.bf16.msra.mxu0 0
        %1486 = vmatprep.subr.bf16.mxu0 0
        %1487 = vmatpush2.bf16.msra.mxu0 0
        %1488 = vmatprep.subr.bf16.mxu0 0
        %1489 = vmatpush2.bf16.msra.mxu0 0
        %1490 = vmatprep.mubr.bf16.mxu0 0
        %1491 = vmatmul.mubr.bf16.gmra.mxu0 %v1453
        %v1492 = vpop.f32.mrf.mxu0
        %v1493 = vadd.f32 0.0, %v1492
        %v1494 = vpop.f32.mrf.mxu0
        %v1495 = vpop.f32.mrf.mxu0
        %v1496 = vpop.f32.mrf.mxu0
        %1497 = vdwg.mxu0
        %1499 = vrot.lane.b32.xlu0 %v1274, 64
        %v1500 = vpop.permute.xlu0 %1499
        %1503 = vrot.lane.b32.xlu0 %v1493, 64
        %v1504 = vpop.permute.xlu0 %1503
        %v1506 = vsel %vm1057, %v1160, %v1500
        %v1507 = vsel %vm1057, %v1379, %v1504
        %v1508 = vpack.c.bf16 %v1506, %v1506
        %v1509 = vpack.c.bf16 %v1507, %v1507
        %v1510 = vld [vmem:[#allocation4] sm:$0xff]
        %v1511 = vld [vmem:[#allocation4 + $0x8] sm:$0xff]
        %v1512 = vld [vmem:[#allocation4 + $0x10] sm:$0xff]
        %v1513 = vld [vmem:[#allocation4 + $0x18] sm:$0xff]
        %v1514 = vld [vmem:[#allocation4 + $0x20] sm:$0xff]
        %v1515 = vld [vmem:[#allocation4 + $0x28] sm:$0xff]
        %v1516 = vld [vmem:[#allocation4 + $0x30] sm:$0xff]
        %v1517 = vld [vmem:[#allocation4 + $0x38] sm:$0xff]
        %v1518 = vld [vmem:[#allocation4 + $0x40] sm:$0xff]
        %v1519 = vld [vmem:[#allocation4 + $0x48] sm:$0xff]
        %v1520 = vld [vmem:[#allocation4 + $0x50] sm:$0xff]
        %v1521 = vld [vmem:[#allocation4 + $0x58] sm:$0xff]
        %v1522 = vld [vmem:[#allocation4 + $0x60] sm:$0xff]
        %v1523 = vld [vmem:[#allocation4 + $0x68] sm:$0xff]
        %v1524 = vld [vmem:[#allocation4 + $0x70] sm:$0xff]
        %v1525 = vld [vmem:[#allocation4 + $0x78] sm:$0xff]
        %v1526 = vld [vmem:[#allocation4 + $0x80] sm:$0xff]
        %v1527 = vld [vmem:[#allocation4 + $0x88] sm:$0xff]
        %v1528 = vld [vmem:[#allocation4 + $0x90] sm:$0xff]
        %v1529 = vld [vmem:[#allocation4 + $0x98] sm:$0xff]
        %v1530 = vld [vmem:[#allocation4 + $0xa0] sm:$0xff]
        %v1531 = vld [vmem:[#allocation4 + $0xa8] sm:$0xff]
        %v1532 = vld [vmem:[#allocation4 + $0xb0] sm:$0xff]
        %v1533 = vld [vmem:[#allocation4 + $0xb8] sm:$0xff]
        %v1534 = vld [vmem:[#allocation4 + $0xc0] sm:$0xff]
        %v1535 = vld [vmem:[#allocation4 + $0xc8] sm:$0xff]
        %v1536 = vld [vmem:[#allocation4 + $0xd0] sm:$0xff]
        %v1537 = vld [vmem:[#allocation4 + $0xd8] sm:$0xff]
        %v1538 = vld [vmem:[#allocation4 + $0xe0] sm:$0xff]
        %v1539 = vld [vmem:[#allocation4 + $0xe8] sm:$0xff]
        %v1540 = vld [vmem:[#allocation4 + $0xf0] sm:$0xff]
        %v1541 = vld [vmem:[#allocation4 + $0xf8] sm:$0xff]
        %v1542 = vld [vmem:[%s4] sm:$0x3]
        %v1544 = vlaneseq
        %v1545 = vshrl.u32 %v1544, 7
        %v1546 = vsub.s32 0, %v1545
        %v1547 = vrot.slane %v1542, %v1546
        %v1548 = vlaneseq
        %v1549 = vshrl.u32 %v1548, 7
        %v1550 = vsub.s32 1, %v1549
        %v1551 = vrot.slane %v1542, %v1550
        %v1586 = vunpack.c.l.b16 %v1510
        %v1587 = vunpack.c.h.b16 %v1510
        %v1588 = vunpack.c.l.b16 %v1511
        %v1589 = vunpack.c.h.b16 %v1511
        %v1590 = vunpack.c.l.b16 %v1512
        %v1591 = vunpack.c.h.b16 %v1512
        %v1592 = vunpack.c.l.b16 %v1513
        %v1593 = vunpack.c.h.b16 %v1513
        %v1594 = vunpack.c.l.b16 %v1514
        %v1595 = vunpack.c.h.b16 %v1514
        %v1596 = vunpack.c.l.b16 %v1515
        %v1597 = vunpack.c.h.b16 %v1515
        %v1598 = vunpack.c.l.b16 %v1516
        %v1599 = vunpack.c.h.b16 %v1516
        %v1600 = vunpack.c.l.b16 %v1517
        %v1601 = vunpack.c.h.b16 %v1517
        %v1602 = vunpack.c.l.b16 %v1518
        %v1603 = vunpack.c.h.b16 %v1518
        %v1604 = vunpack.c.l.b16 %v1519
        %v1605 = vunpack.c.h.b16 %v1519
        %v1606 = vunpack.c.l.b16 %v1520
        %v1607 = vunpack.c.h.b16 %v1520
        %v1608 = vunpack.c.l.b16 %v1521
        %v1609 = vunpack.c.h.b16 %v1521
        %v1610 = vunpack.c.l.b16 %v1522
        %v1611 = vunpack.c.h.b16 %v1522
        %v1612 = vunpack.c.l.b16 %v1523
        %v1613 = vunpack.c.h.b16 %v1523
        %v1614 = vunpack.c.l.b16 %v1524
        %v1615 = vunpack.c.h.b16 %v1524
        %v1616 = vunpack.c.l.b16 %v1525
        %v1617 = vunpack.c.h.b16 %v1525
        %v1618 = vunpack.c.l.b16 %v1526
        %v1619 = vunpack.c.h.b16 %v1526
        %v1620 = vunpack.c.l.b16 %v1527
        %v1621 = vunpack.c.h.b16 %v1527
        %v1622 = vunpack.c.l.b16 %v1528
        %v1623 = vunpack.c.h.b16 %v1528
        %v1624 = vunpack.c.l.b16 %v1529
        %v1625 = vunpack.c.h.b16 %v1529
        %v1626 = vunpack.c.l.b16 %v1530
        %v1627 = vunpack.c.h.b16 %v1530
        %v1628 = vunpack.c.l.b16 %v1531
        %v1629 = vunpack.c.h.b16 %v1531
        %v1630 = vunpack.c.l.b16 %v1532
        %v1631 = vunpack.c.h.b16 %v1532
        %v1632 = vunpack.c.l.b16 %v1533
        %v1633 = vunpack.c.h.b16 %v1533
        %v1634 = vunpack.c.l.b16 %v1534
        %v1635 = vunpack.c.h.b16 %v1534
        %v1636 = vunpack.c.l.b16 %v1535
        %v1637 = vunpack.c.h.b16 %v1535
        %v1638 = vunpack.c.l.b16 %v1536
        %v1639 = vunpack.c.h.b16 %v1536
        %v1640 = vunpack.c.l.b16 %v1537
        %v1641 = vunpack.c.h.b16 %v1537
        %v1642 = vunpack.c.l.b16 %v1538
        %v1643 = vunpack.c.h.b16 %v1538
        %v1644 = vunpack.c.l.b16 %v1539
        %v1645 = vunpack.c.h.b16 %v1539
        %v1646 = vunpack.c.l.b16 %v1540
        %v1647 = vunpack.c.h.b16 %v1540
        %v1648 = vunpack.c.l.b16 %v1541
        %v1649 = vunpack.c.h.b16 %v1541
        %v1650 = vpack.c.b16 %v1588, %v1586
        %v1651 = vpack.c.b16 %v1589, %v1587
        %v1652 = vpack.c.b16 %v1592, %v1590
        %v1653 = vpack.c.b16 %v1593, %v1591
        %v1654 = vpack.c.b16 %v1596, %v1594
        %v1655 = vpack.c.b16 %v1597, %v1595
        %v1656 = vpack.c.b16 %v1600, %v1598
        %v1657 = vpack.c.b16 %v1601, %v1599
        %v1658 = vpack.c.b16 %v1604, %v1602
        %v1659 = vpack.c.b16 %v1605, %v1603
        %v1660 = vpack.c.b16 %v1608, %v1606
        %v1661 = vpack.c.b16 %v1609, %v1607
        %v1662 = vpack.c.b16 %v1612, %v1610
        %v1663 = vpack.c.b16 %v1613, %v1611
        %v1664 = vpack.c.b16 %v1616, %v1614
        %v1665 = vpack.c.b16 %v1617, %v1615
        %v1666 = vpack.c.b16 %v1620, %v1618
        %v1667 = vpack.c.b16 %v1621, %v1619
        %v1668 = vpack.c.b16 %v1624, %v1622
        %v1669 = vpack.c.b16 %v1625, %v1623
        %v1670 = vpack.c.b16 %v1628, %v1626
        %v1671 = vpack.c.b16 %v1629, %v1627
        %v1672 = vpack.c.b16 %v1632, %v1630
        %v1673 = vpack.c.b16 %v1633, %v1631
        %v1674 = vpack.c.b16 %v1636, %v1634
        %v1675 = vpack.c.b16 %v1637, %v1635
        %v1676 = vpack.c.b16 %v1640, %v1638
        %v1677 = vpack.c.b16 %v1641, %v1639
        %v1678 = vpack.c.b16 %v1644, %v1642
        %v1679 = vpack.c.b16 %v1645, %v1643
        %v1680 = vpack.c.b16 %v1648, %v1646
        %v1681 = vpack.c.b16 %v1649, %v1647
        %1714 = vmatprep.subr.bf16.mxu0 %v1665
        %1715 = vmatpush1.bf16.msra.mxu0 %v1664
        %1716 = vmatprep.subr.bf16.mxu0 %v1663
        %1717 = vmatpush1.bf16.msra.mxu0 %v1662
        %1718 = vmatprep.subr.bf16.mxu0 %v1661
        %1719 = vmatpush1.bf16.msra.mxu0 %v1660
        %1720 = vmatprep.subr.bf16.mxu0 %v1659
        %1721 = vmatpush1.bf16.msra.mxu0 %v1658
        %1722 = vmatprep.subr.bf16.mxu0 %v1657
        %1723 = vmatpush1.bf16.msra.mxu0 %v1656
        %1724 = vmatprep.subr.bf16.mxu0 %v1655
        %1725 = vmatpush1.bf16.msra.mxu0 %v1654
        %1726 = vmatprep.subr.bf16.mxu0 %v1653
        %1727 = vmatpush1.bf16.msra.mxu0 %v1652
        %1728 = vmatprep.subr.bf16.mxu0 %v1651
        %1729 = vmatpush1.bf16.msra.mxu0 %v1650
        %1730 = vmatprep.subr.bf16.mxu0 %v1681
        %1731 = vmatpush2.bf16.msra.mxu0 %v1680
        %1732 = vmatprep.subr.bf16.mxu0 %v1679
        %1733 = vmatpush2.bf16.msra.mxu0 %v1678
        %1734 = vmatprep.subr.bf16.mxu0 %v1677
        %1735 = vmatpush2.bf16.msra.mxu0 %v1676
        %1736 = vmatprep.subr.bf16.mxu0 %v1675
        %1737 = vmatpush2.bf16.msra.mxu0 %v1674
        %1738 = vmatprep.subr.bf16.mxu0 %v1673
        %1739 = vmatpush2.bf16.msra.mxu0 %v1672
        %1740 = vmatprep.subr.bf16.mxu0 %v1671
        %1741 = vmatpush2.bf16.msra.mxu0 %v1670
        %1742 = vmatprep.subr.bf16.mxu0 %v1669
        %1743 = vmatpush2.bf16.msra.mxu0 %v1668
        %1744 = vmatprep.subr.bf16.mxu0 %v1667
        %1745 = vmatpush2.bf16.msra.mxu0 %v1666
        %1746 = vmatprep.mubr.bf16.mxu0 %v1509
        %1747 = vmatmul.mubr.bf16.gmra.mxu0 %v1508
        %v1748 = vpop.f32.mrf.mxu0
        %v1749 = vadd.f32 %v1547, %v1748
        %v1750 = vpop.f32.mrf.mxu0
        %v1751 = vadd.f32 %v1551, %v1750
        %v1752 = vpop.f32.mrf.mxu0
        %v1753 = vpop.f32.mrf.mxu0
        %1754 = vdwg.mxu0
        %v1755 = vadd.f32 %v311, %v1749
        %v1756 = vadd.f32 %v312, %v1751
        %v1757 = vadd.f32 %v1755, %v1756
        %1758 = vadd.xlane.f32.xlu0 %v1757
        %v1759 = vpop.xlane.xlu0 %1758
        %v1760 = vrcp.pop 256.0
        %v1761 = vmul.f32 %v1759, %v1760
        %v1762 = vsub.f32 %v1755, %v1761
        %v1763 = vsub.f32 %v1756, %v1761
        %v1764 = vmul.f32 %v1762, %v1762
        %v1765 = vmul.f32 %v1763, %v1763
        %v1766 = vadd.f32 %v1764, %v1765
        %1767 = vadd.xlane.f32.xlu0 %v1766
        %v1768 = vpop.xlane.xlu0 %1767
        %v1769 = vmul.f32 %v1768, %v1760
        %v1770 = vadd.f32 %v1769, 1e-05
        %v1771 = vrsqrt.pop %v1770
        %v1772 = vmul.f32 %v1762, %v1771
        %v1773 = vmul.f32 %v1763, %v1771
        %v1774 = vld [vmem:[%s5] sm:$0x3]
        %v1776 = vlaneseq
        %v1777 = vshrl.u32 %v1776, 7
        %v1778 = vsub.s32 0, %v1777
        %v1779 = vrot.slane %v1774, %v1778
        %v1780 = vlaneseq
        %v1781 = vshrl.u32 %v1780, 7
        %v1782 = vsub.s32 1, %v1781
        %v1783 = vrot.slane %v1774, %v1782
        %v1786 = vmul.f32 %v1772, %v1779
        %v1787 = vmul.f32 %v1773, %v1783
        %v1788 = vld [vmem:[%s6] sm:$0x3]
        %v1790 = vlaneseq
        %v1791 = vshrl.u32 %v1790, 7
        %v1792 = vsub.s32 0, %v1791
        %v1793 = vrot.slane %v1788, %v1792
        %v1794 = vlaneseq
        %v1795 = vshrl.u32 %v1794, 7
        %v1796 = vsub.s32 1, %v1795
        %v1797 = vrot.slane %v1788, %v1796
        %v1800 = vadd.f32 %v1786, %v1793
        %v1801 = vadd.f32 %v1787, %v1797
        %v1802 = vpack.c.bf16 %v1800, %v1800
        %v1803 = vpack.c.bf16 %v1801, %v1801
        %v1806 = vunpack.c.l.b16 %v1802
        %v1807 = vunpack.c.l.b16 %v1803
        %v1808 = vpack.c.b16 %v1807, %v1806
        %1810 = vst [vmem:[%s308] sm:$0xff] %v1808
        %p1811 = scmp.lt.s32.totalorder %s20, 1
        %s1812 = scalar_select %p1811, %s20, 1
        %s1813 = smul.addr %s1812, 2
        %s1814 = smul.addr %s1813, 4
        %s1815 = scalar_lea.vmem %s7, %s1814
        // Predicated region
        $region57: #{discriminator_forward.7} parent=47 // pred_check
          %p1816 = pneg %p190
        $region58: #{discriminator_forward.7} parent=47 // pred_check_branch
          %1818 = sbr.rel (%p1816) target = $region60
        $region59: #{discriminator_forward.7} parent=47 // pred_region
          _
        $region60: #{discriminator_forward.7} parent=47 // pred_fallthru
          _
      $region48: #{discriminator_forward.7} parent=5 // pred_fallthru
        _
      %p1819 = scmp.le.s32.totalorder 2, %s15
      // Predicated region
      $region61: #{discriminator_forward.7} parent=5 // pred_check
        %p1820 = pneg %p1819
      $region62: #{discriminator_forward.7} parent=5 // pred_check_branch
        %1822 = sbr.rel (%p1820) target = $region64
      $region63: #{discriminator_forward.7} parent=5 // pred_region
        %s1823 = ssub.s32 %s15, 2
        // Predicated region
        $region65: #{discriminator_forward.7} parent=63 // pred_check
          %p1824 = pneg %p196
        $region66: #{discriminator_forward.7} parent=63 // pred_check_branch
          %1826 = sbr.rel (%p1824) target = $region68
        $region67: #{discriminator_forward.7} parent=63 // pred_region
          %p1827 = scmp.lt.s32.totalorder %s21, 1
          %s1828 = scalar_select %p1827, %s21, 1
          %s1829 = smul.addr %s1828, 2
          %s1830 = smul.addr %s1829, 4
          %s1831 = scalar_lea.vmem %s7, %s1830
        $region68: #{discriminator_forward.7} parent=63 // pred_fallthru
          _
      $region64: #{discriminator_forward.7} parent=5 // pred_fallthru
        _
    $region6: #{discriminator_forward.7} parent=1 // loop_footer
      %s19 = sadd.s32 1, %s15
    $region7: #{discriminator_forward.7} parent=1 // loop_footer_branch
      %14 = sbr.rel target = $region3
    $region8: #{discriminator_forward.7} parent=1 // loop_exit
      _
    %1832 = vsyncpa [#allocation3], 1
    %s1833 = scalar_lea.sflag [#allocation3], 1
    %1834 = vsyncpa %s1833, 1
    %1835 = vsyncpa [#allocation5], 1

</llo_original>
